<compile_context>
chip_gen: v5e
topology: v5e:2x2
jax: 0.10.0
libtpu: 0.0.40
codegen_flags: <defaults>
</compile_context>

<pallas_src>
import math
import functools

import jax
import jax.numpy as jnp
from jax.experimental import pallas as pl
from jax.experimental.pallas import tpu as pltpu


# ----------------------------------------------------------------------------- #
# Generation-aware sizing helpers
# ----------------------------------------------------------------------------- #
def _round_up(x, m):
    return ((x + m - 1) // m) * m


def _vmem_cap():
    """Physical VMEM capacity in bytes (128 MiB v5e/v6e, 64 MiB v7x)."""
    try:
        cap = int(pltpu.get_tpu_info().vmem_capacity_bytes)
        if cap > 0:
            return cap
    except Exception:
        pass
    return 64 << 20                       # conservative (v7x-sized) fallback


def _pick_tile(s, cap):
    """Query-row tile: 256 on 128-MiB-VMEM parts, 128 on v7x."""
    target = 128 if cap <= (64 << 20) else 256
    if s <= target:
        return s
    for t in range(target, 7, -8):        # largest multiple of 8 <= target dividing s
        if s % t == 0:
            return t
    return s


def _ff_chunk(d_ff, cap):
    if cap > (64 << 20):                  # v5e / v6e: whole d_ff in one pass
        return d_ff
    if d_ff <= 1024:
        return d_ff
    for c in (1024, 512, 256, 128):
        if d_ff % c == 0:
            return c
    return d_ff


def _padded_nbytes(*arrs):
    """VMEM footprint estimate with (8,128) tile padding on the last two dims."""
    total = 0
    for a in arrs:
        shp = list(a.shape)
        if len(shp) >= 1:
            shp[-1] = _round_up(shp[-1], 128)
        if len(shp) >= 2:
            shp[-2] = _round_up(shp[-2], 8)
        total += math.prod(shp) * a.dtype.itemsize
    return total


def _compiler_params(stream_bytes, weight_bytes, scratch_bytes=0,
                     semantics=("parallel", "arbitrary")):
    cap = _vmem_cap()
    ceiling = (cap * 7) // 8              # leave headroom for compiler scratch
    est = 4 * stream_bytes + 2 * weight_bytes + scratch_bytes + (8 << 20)
    limit = int(max(32 << 20, min(ceiling, est)))
    return pltpu.CompilerParams(dimension_semantics=tuple(semantics),
                                vmem_limit_bytes=limit)


def _full_spec(arr):
    # Grid-invariant (VMEM-resident) operand.
    nd = arr.ndim
    return pl.BlockSpec(arr.shape, lambda *_: (0,) * nd)


# ----------------------------------------------------------------------------- #
# In-kernel helpers
# ----------------------------------------------------------------------------- #
def _layer_norm(x, alpha, bias, eps=1e-6):
    """Matches `Norm`: alpha * (x - mean) / (std + eps) + bias (torch std is unbiased)."""
    d = x.shape[-1]
    mean = jnp.mean(x, axis=-1, keepdims=True)
    var = jnp.sum((x - mean) ** 2, axis=-1, keepdims=True) / (d - 1)   # ddof=1 like torch.std
    inv = pl.reciprocal(jnp.sqrt(var) + eps, approx=True)              # EUP slot
    return alpha * (x - mean) * inv + bias


def _project_kv(x_b, wk_ref, bk_ref, wv_ref, bv_ref, k_scr, v_scr, heads):
    """x_b: (S, D) bf16.  Writes per-head K/V (S, dk) bf16 into scratch (H, S, dk)."""
    for h in range(heads):
        k_scr[h] = (jnp.dot(x_b, wk_ref[h], preferred_element_type=jnp.float32)
                    + bk_ref[h]).astype(jnp.bfloat16)
        v_scr[h] = (jnp.dot(x_b, wv_ref[h], preferred_element_type=jnp.float32)
                    + bv_ref[h]).astype(jnp.bfloat16)


def _mha(x2q, bias, k_scr, v_scr, wq_ref, bq_ref, wo_ref, bo, *, heads):
    """Multi-head attention against cached K/V.
    x2q:  (T, D) f32 normalized query-side input.
    bias: (1|T, S) f32 additive mask bias (0 keep / -1e9 masked).
    k_scr/v_scr: (H, S, dk) bf16 scratch refs.
    wq_ref: (H, D, dk) bf16; bq_ref: (H, 1, dk) f32; wo_ref: (H, dk, D) bf16; bo: (1, D) f32.
    Per-head unrolled loop: no lane-axis head slicing, only one (T, S) score tile live."""
    T, D = x2q.shape
    dk = D // heads
    scale = 1.0 / math.sqrt(dk)
    x2q_b = x2q.astype(jnp.bfloat16)
    acc = jnp.zeros((T, D), jnp.float32)
    for h in range(heads):
        # Fold 1/sqrt(dk) into q (O(T*dk) instead of O(T*S) on scores).
        q_h = (jnp.dot(x2q_b, wq_ref[h], preferred_element_type=jnp.float32)
               + bq_ref[h]) * scale
        k_h = k_scr[h]                                   # (S, dk) bf16
        v_h = v_scr[h]
        s = jax.lax.dot_general(q_h.astype(jnp.bfloat16), k_h,
                                (((1,), (1,)), ((), ())),            # q @ k^T (NT matmul)
                                preferred_element_type=jnp.float32)  # (T, S)
        s = s + bias
        s = s - jnp.max(s, axis=-1, keepdims=True)
        p = jnp.exp(s)
        p = p * pl.reciprocal(jnp.sum(p, axis=-1, keepdims=True), approx=True)
        ctx = jnp.dot(p.astype(jnp.bfloat16), v_h,
                      preferred_element_type=jnp.float32)            # (T, dk)
        # Per-head out projection accumulated directly into (T, D): no concat,
        # no (H, T, D) intermediate.
        acc = acc + jnp.dot(ctx.astype(jnp.bfloat16), wo_ref[h],
                            preferred_element_type=jnp.float32)
    return acc + bo


def _feed_forward(x2, w1_ref, bf1_ref, w2_ref, bf2_ref, *, chunk):
    """x2: (T, D) f32.  d_ff processed `chunk` columns at a time (full pass on v5e/v6e)."""
    T, D = x2.shape
    d_ff = w1_ref.shape[1]
    x2b = x2.astype(jnp.bfloat16)
    b2 = bf2_ref[...]
    if chunk >= d_ff:
        h = jnp.dot(x2b, w1_ref[...], preferred_element_type=jnp.float32) + bf1_ref[...]
        h = jnp.maximum(h, 0.0).astype(jnp.bfloat16)     # ReLU (dropout -> identity)
        return jnp.dot(h, w2_ref[...], preferred_element_type=jnp.float32) + b2
    acc = jnp.zeros((T, D), jnp.float32)
    for c in range(0, d_ff, chunk):
        h = (jnp.dot(x2b, w1_ref[:, c:c + chunk], preferred_element_type=jnp.float32)
             + bf1_ref[:, c:c + chunk])
        h = jnp.maximum(h, 0.0).astype(jnp.bfloat16)
        acc = acc + jnp.dot(h, w2_ref[c:c + chunk, :], preferred_element_type=jnp.float32)
    return acc + b2


# ----------------------------------------------------------------------------- #
# Kernels
# ----------------------------------------------------------------------------- #
def encoder_layer_kernel(x_ref, mask_ref,
                         a1_ref, b1_ref,
                         wq_ref, bq_ref, wk_ref, bk_ref, wv_ref, bv_ref, wo_ref, bo_ref,
                         a2_ref, b2_ref,
                         w1_ref, bf1_ref, w2_ref, bf2_ref,
                         o_ref,
                         k_scr, v_scr,
                         *, heads, tq, ff_chunk):
    q_idx = pl.program_id(1)
    a1 = a1_ref[...]
    b1 = b1_ref[...]

    # ---- K/V (and kv-side norm) computed once per batch element ----
    @pl.when(q_idx == 0)
    def _():
        x2kv = _layer_norm(x_ref[...].astype(jnp.float32), a1, b1).astype(jnp.bfloat16)
        _project_kv(x2kv, wk_ref, bk_ref, wv_ref, bv_ref, k_scr, v_scr, heads)

    start = q_idx * tq
    if tq % 8 == 0:
        start = pl.multiple_of(start, tq)
    xq = x_ref[pl.ds(start, tq), :].astype(jnp.float32)      # (tq, D) query-row tile
    sbias = (mask_ref[...] - 1.0) * 1e9                      # (1, S) additive mask bias

    # ---- self-attention sublayer ----
    x2q = _layer_norm(xq, a1, b1)
    x = xq + _mha(x2q, sbias, k_scr, v_scr, wq_ref, bq_ref, wo_ref, bo_ref[...],
                  heads=heads)                               # dropout_1 -> identity
    # ---- feed-forward sublayer ----
    x2 = _layer_norm(x, a2_ref[...], b2_ref[...])
    x = x + _feed_forward(x2, w1_ref, bf1_ref, w2_ref, bf2_ref, chunk=ff_chunk)
    o_ref[...] = x.astype(o_ref.dtype)                       # dropout_2 -> identity


def decoder_layer_kernel(x_ref, enc_ref, tmask_ref, smask_ref,
                         a1_ref, b1_ref,
                         wq1, bq1, wk1, bk1, wv1, bv1, wo1, bo1,
                         a2_ref, b2_ref,
                         wq2, bq2, wk2, bk2, wv2, bv2, wo2, bo2,
                         a3_ref, b3_ref,
                         w1_ref, bf1_ref, w2_ref, bf2_ref,
                         o_ref,
                         k1_scr, v1_scr, k2_scr, v2_scr,
                         *, heads, tq, ff_chunk):
    q_idx = pl.program_id(1)
    a1 = a1_ref[...]
    b1 = b1_ref[...]

    # ---- self-attn K/V (normalized target) + cross-attn K/V (raw encoder outputs),
    #      computed once per batch element ----
    @pl.when(q_idx == 0)
    def _():
        x2kv = _layer_norm(x_ref[...].astype(jnp.float32), a1, b1).astype(jnp.bfloat16)
        _project_kv(x2kv, wk1, bk1, wv1, bv1, k1_scr, v1_scr, heads)
        enc = enc_ref[...].astype(jnp.bfloat16)
        _project_kv(enc, wk2, bk2, wv2, bv2, k2_scr, v2_scr, heads)

    start = q_idx * tq
    if tq % 8 == 0:
        start = pl.multiple_of(start, tq)
    xq = x_ref[pl.ds(start, tq), :].astype(jnp.float32)      # (tq, D)
    tbias = (tmask_ref[...] - 1.0) * 1e9                     # (tq, S_trg)
    sbias = (smask_ref[...] - 1.0) * 1e9                     # (1, S_src)

    # ---- masked self-attention ----
    x2q = _layer_norm(xq, a1, b1)
    x = xq + _mha(x2q, tbias, k1_scr, v1_scr, wq1, bq1, wo1, bo1[...], heads=heads)
    # ---- cross-attention (K/V from raw encoder outputs, as in the reference) ----
    x2 = _layer_norm(x, a2_ref[...], b2_ref[...])
    x = x + _mha(x2, sbias, k2_scr, v2_scr, wq2, bq2, wo2, bo2[...], heads=heads)
    # ---- feed-forward ----
    x2 = _layer_norm(x, a3_ref[...], b3_ref[...])
    x = x + _feed_forward(x2, w1_ref, bf1_ref, w2_ref, bf2_ref, chunk=ff_chunk)
    o_ref[...] = x.astype(o_ref.dtype)


def norm_kernel(x_ref, a_ref, b_ref, o_ref):
    o_ref[...] = _layer_norm(x_ref[...].astype(jnp.float32),
                             a_ref[...], b_ref[...]).astype(o_ref.dtype)


def norm_out_kernel(x_ref, a_ref, b_ref, w_ref, bo_ref, o_ref):
    # decoder final Norm fused with a vocab tile of the output Linear
    x2 = _layer_norm(x_ref[...].astype(jnp.float32), a_ref[...], b_ref[...])
    o_ref[...] = (jnp.dot(x2.astype(jnp.bfloat16), w_ref[...],
                          preferred_element_type=jnp.float32)
                  + bo_ref[...]).astype(o_ref.dtype)


# ----------------------------------------------------------------------------- #
# pallas_call wrappers
# ----------------------------------------------------------------------------- #
def _attn_weight_tuple(a):
    return (a['wq'], a['bq'], a['wk'], a['bk'], a['wv'], a['bv'], a['wo'], a['bo'])


def run_encoder_layer(x, mask, p, *, heads):
    B, S, D = x.shape
    assert D % heads == 0, "d_model must be divisible by heads"
    dk = D // heads
    cap = _vmem_cap()
    tq = _pick_tile(S, cap)
    grid = (B, S // tq)
    ff_chunk = _ff_chunk(p['w1'].shape[1], cap)
    weights = ((p['a1'], p['b1']) + _attn_weight_tuple(p['attn'])
               + (p['a2'], p['b2'], p['w1'], p['bf1'], p['w2'], p['bf2']))
    in_specs = ([pl.BlockSpec((None, S, D), lambda b, q: (b, 0, 0)),   # x (full seq, once/batch)
                 pl.BlockSpec((None, 1, S), lambda b, q: (b, 0, 0))]   # src mask
                + [_full_spec(w) for w in weights])
    scratch = [pltpu.VMEM((heads, S, dk), jnp.bfloat16),               # cached K
               pltpu.VMEM((heads, S, dk), jnp.bfloat16)]               # cached V
    kernel = functools.partial(encoder_layer_kernel, heads=heads, tq=tq, ff_chunk=ff_chunk)
    stream_bytes = (S * D + tq * D) * x.dtype.itemsize + S * mask.dtype.itemsize
    scratch_bytes = 2 * heads * S * max(dk, 128) * 2
    return pl.pallas_call(
        kernel,
        grid=grid,
        out_shape=jax.ShapeDtypeStruct((B, S, D), x.dtype),
        in_specs=in_specs,
        out_specs=pl.BlockSpec((None, tq, D), lambda b, q: (b, q, 0)),
        scratch_shapes=scratch,
        compiler_params=_compiler_params(stream_bytes, _padded_nbytes(*weights),
                                         scratch_bytes,
                                         semantics=("parallel", "arbitrary")),
    )(x, mask, *weights)


def run_decoder_layer(x, enc_out, source_mask, target_mask, p, *, heads):
    B, St, D = x.shape
    Ss = enc_out.shape[1]
    assert D % heads == 0, "d_model must be divisible by heads"
    dk = D // heads
    cap = _vmem_cap()
    tq = _pick_tile(St, cap)
    grid = (B, St // tq)
    ff_chunk = _ff_chunk(p['w1'].shape[1], cap)
    weights = ((p['a1'], p['b1']) + _attn_weight_tuple(p['attn1'])
               + (p['a2'], p['b2']) + _attn_weight_tuple(p['attn2'])
               + (p['a3'], p['b3'], p['w1'], p['bf1'], p['w2'], p['bf2']))
    in_specs = ([pl.BlockSpec((None, St, D), lambda b, q: (b, 0, 0)),    # target x (full seq)
                 pl.BlockSpec((None, Ss, D), lambda b, q: (b, 0, 0)),    # encoder outputs
                 pl.BlockSpec((None, tq, St), lambda b, q: (b, q, 0)),   # target-mask tile
                 pl.BlockSpec((None, 1, Ss), lambda b, q: (b, 0, 0))]    # source mask
                + [_full_spec(w) for w in weights])
    scratch = [pltpu.VMEM((heads, St, dk), jnp.bfloat16),                # self-attn K
               pltpu.VMEM((heads, St, dk), jnp.bfloat16),                # self-attn V
               pltpu.VMEM((heads, Ss, dk), jnp.bfloat16),                # cross-attn K
               pltpu.VMEM((heads, Ss, dk), jnp.bfloat16)]                # cross-attn V
    kernel = functools.partial(decoder_layer_kernel, heads=heads, tq=tq, ff_chunk=ff_chunk)
    stream_bytes = ((St * D + Ss * D + tq * D) * x.dtype.itemsize
                    + tq * St * target_mask.dtype.itemsize
                    + Ss * source_mask.dtype.itemsize)
    scratch_bytes = 2 * heads * (St + Ss) * max(dk, 128) * 2
    return pl.pallas_call(
        kernel,
        grid=grid,
        out_shape=jax.ShapeDtypeStruct((B, St, D), x.dtype),
        in_specs=in_specs,
        out_specs=pl.BlockSpec((None, tq, D), lambda b, q: (b, q, 0)),
        scratch_shapes=scratch,
        compiler_params=_compiler_params(stream_bytes, _padded_nbytes(*weights),
                                         scratch_bytes,
                                         semantics=("parallel", "arbitrary")),
    )(x, enc_out, target_mask, source_mask, *weights)


def run_norm(x, alpha, bias):
    B, S, D = x.shape
    cap = _vmem_cap()
    tq = _pick_tile(S, cap)
    return pl.pallas_call(
        norm_kernel,
        grid=(B, S // tq),
        out_shape=jax.ShapeDtypeStruct((B, S, D), x.dtype),
        in_specs=[pl.BlockSpec((None, tq, D), lambda b, q: (b, q, 0)),
                  _full_spec(alpha), _full_spec(bias)],
        out_specs=pl.BlockSpec((None, tq, D), lambda b, q: (b, q, 0)),
        compiler_params=_compiler_params(2 * tq * D * x.dtype.itemsize,
                                         _padded_nbytes(alpha, bias),
                                         semantics=("parallel", "parallel")),
    )(x, alpha, bias)


def run_norm_out(x, alpha, bias, w_out, b_out):
    """Final decoder Norm fused with the output Linear; vocab padded to 128 lanes
    and tiled over a vocab grid axis (lane-dense stores, bounded w_out VMEM)."""
    B, S, D = x.shape
    V = w_out.shape[-1]
    cap = _vmem_cap()
    tq = _pick_tile(S, cap)
    tv = min(2048, _round_up(V, 128))
    V_pad = _round_up(V, tv)
    if V_pad != V:
        w_pad = jnp.zeros((D, V_pad), w_out.dtype).at[:, :V].set(w_out)
        b_pad = jnp.zeros((1, V_pad), b_out.dtype).at[:, :V].set(b_out)
    else:
        w_pad, b_pad = w_out, b_out
    grid = (B, S // tq, V_pad // tv)
    out = pl.pallas_call(
        norm_out_kernel,
        grid=grid,
        out_shape=jax.ShapeDtypeStruct((B, S, V_pad), jnp.float32),
        in_specs=[pl.BlockSpec((None, tq, D), lambda b, q, v: (b, q, 0)),
                  pl.BlockSpec(alpha.shape, lambda b, q, v: (0, 0)),
                  pl.BlockSpec(bias.shape, lambda b, q, v: (0, 0)),
                  pl.BlockSpec((D, tv), lambda b, q, v: (0, v)),
                  pl.BlockSpec((1, tv), lambda b, q, v: (0, v))],
        out_specs=pl.BlockSpec((None, tq, tv), lambda b, q, v: (b, q, v)),
        compiler_params=_compiler_params((tq * D + tq * tv) * 4,
                                         _padded_nbytes(alpha, bias, b_pad)
                                         + D * tv * w_pad.dtype.itemsize,
                                         semantics=("parallel", "parallel", "parallel")),
    )(x, alpha, bias, w_pad, b_pad)
    return out[:, :, :V]


# ----------------------------------------------------------------------------- #
# Parameter construction (deterministic, mirrors the modules' __init__ shapes)
# ----------------------------------------------------------------------------- #
def build_pe_table(max_seq_len, d_model):
    pos = jnp.arange(max_seq_len, dtype=jnp.float32)[:, None]
    i = jnp.arange(0, d_model, 2, dtype=jnp.float32)
    pe = jnp.zeros((max_seq_len, d_model), dtype=jnp.float32)
    pe = pe.at[:, 0::2].set(jnp.sin(pos / (10000.0 ** (2.0 * i / d_model))))
    pe = pe.at[:, 1::2].set(jnp.cos(pos / (10000.0 ** (2.0 * (i + 1.0) / d_model))))
    return pe


def init_linear(key, d_in, d_out):
    # Stored as (in, out) so y = x @ W + b (nn.Linear semantics).
    k_w, k_b = jax.random.split(key)
    bound = 1.0 / math.sqrt(d_in)
    w = jax.random.uniform(k_w, (d_in, d_out), minval=-bound, maxval=bound, dtype=jnp.float32)
    b = jax.random.uniform(k_b, (1, d_out), minval=-bound, maxval=bound, dtype=jnp.float32)
    return w, b


def init_norm_params(d_model):
    return jnp.ones((1, d_model), jnp.float32), jnp.zeros((1, d_model), jnp.float32)


def init_attention_params(key, d_model, heads):
    dk = d_model // heads
    ks = jax.random.split(key, 4)
    wq, bq = init_linear(ks[0], d_model, d_model)
    wk, bk = init_linear(ks[1], d_model, d_model)
    wv, bv = init_linear(ks[2], d_model, d_model)
    wo, bo = init_linear(ks[3], d_model, d_model)

    def head_w(w):   # (D_in, D_out) -> (H, D_in, dk): head split moved into weight layout
        return jnp.transpose(w.reshape(d_model, heads, dk), (1, 0, 2)).astype(jnp.bfloat16)

    def head_b(b):   # (1, D_out) -> (H, 1, dk)
        return b.reshape(heads, 1, dk)

    return {'wq': head_w(wq), 'bq': head_b(bq),
            'wk': head_w(wk), 'bk': head_b(bk),
            'wv': head_w(wv), 'bv': head_b(bv),
            # out-projection pre-reshaped to (H, dk, D) for the concat-free epilogue
            'wo': wo.reshape(heads, dk, d_model).astype(jnp.bfloat16),
            'bo': bo}


def init_ff_params(key, d_model, d_ff):
    k1, k2 = jax.random.split(key)
    w1, b1 = init_linear(k1, d_model, d_ff)
    w2, b2 = init_linear(k2, d_ff, d_model)
    return {'w1': w1.astype(jnp.bfloat16), 'bf1': b1,
            'w2': w2.astype(jnp.bfloat16), 'bf2': b2}


def init_encoder_layer(key, d_model, heads, d_ff):
    k_attn, k_ff = jax.random.split(key)
    a1, b1 = init_norm_params(d_model)
    a2, b2 = init_norm_params(d_model)
    p = {'a1': a1, 'b1': b1, 'a2': a2, 'b2': b2,
         'attn': init_attention_params(k_attn, d_model, heads)}
    p.update(init_ff_params(k_ff, d_model, d_ff))
    return p


def init_decoder_layer(key, d_model, heads, d_ff):
    k1, k2, k_ff = jax.random.split(key, 3)
    a1, b1 = init_norm_params(d_model)
    a2, b2 = init_norm_params(d_model)
    a3, b3 = init_norm_params(d_model)
    p = {'a1': a1, 'b1': b1, 'a2': a2, 'b2': b2, 'a3': a3, 'b3': b3,
         'attn1': init_attention_params(k1, d_model, heads),
         'attn2': init_attention_params(k2, d_model, heads)}
    p.update(init_ff_params(k_ff, d_model, d_ff))
    return p


def init_transformer_params(key, src_vocab, trg_vocab, d_model, n_layers, heads, d_ff=2048):
    assert d_model % heads == 0
    k_enc, k_dec, k_out = jax.random.split(key, 3)
    enc_keys = jax.random.split(k_enc, n_layers + 1)
    dec_keys = jax.random.split(k_dec, n_layers + 1)
    ena, enb = init_norm_params(d_model)
    dna, dnb = init_norm_params(d_model)
    enc = {'embed': jax.random.normal(enc_keys[0], (src_vocab, d_model), jnp.float32),
           'pe': build_pe_table(200, d_model),
           'norm_alpha': ena, 'norm_bias': enb,
           'layers': [init_encoder_layer(enc_keys[1 + i], d_model, heads, d_ff)
                      for i in range(n_layers)]}
    dec = {'embed': jax.random.normal(dec_keys[0], (trg_vocab, d_model), jnp.float32),
           'pe': build_pe_table(200, d_model),
           'norm_alpha': dna, 'norm_bias': dnb,
           'layers': [init_decoder_layer(dec_keys[1 + i], d_model, heads, d_ff)
                      for i in range(n_layers)]}
    w_out, b_out = init_linear(k_out, d_model, trg_vocab)
    return {'encoder': enc, 'decoder': dec,
            'w_out': w_out.astype(jnp.bfloat16), 'b_out': b_out}


# ----------------------------------------------------------------------------- #
# Forward pass
# ----------------------------------------------------------------------------- #
def embed_and_pe(tokens, embed, pe):
    # Embedder + PositionalEncoder (plain-JAX glue; dropout -> identity).
    # Emit bf16 so inter-layer activations round-trip HBM at half width.
    d_model = embed.shape[-1]
    x = jnp.take(embed, tokens, axis=0) * math.sqrt(d_model)
    x = x + pe[None, :tokens.shape[1], :]
    return x.astype(jnp.bfloat16)


def transformer_forward(source, target, source_mask, target_mask, params, *, heads):
    enc_p, dec_p = params['encoder'], params['decoder']
    # ---------------- Encoder ----------------
    x = embed_and_pe(source, enc_p['embed'], enc_p['pe'])
    for lp in enc_p['layers']:
        x = run_encoder_layer(x, source_mask, lp, heads=heads)
    enc_out = run_norm(x, enc_p['norm_alpha'], enc_p['norm_bias'])
    # ---------------- Decoder ----------------
    y = embed_and_pe(target, dec_p['embed'], dec_p['pe'])
    for lp in dec_p['layers']:
        y = run_decoder_layer(y, enc_out, source_mask, target_mask, lp, heads=heads)
    # final decoder Norm fused with the output Linear
    return run_norm_out(y, dec_p['norm_alpha'], dec_p['norm_bias'],
                        params['w_out'], params['b_out'])


# ----------------------------------------------------------------------------- #
if __name__ == "__main__":
    src_vocab, trg_vocab = 100, 120
    d_model, n_layers, heads = 128, 2, 4
    d_ff = 2048
    B, S_src, S_trg = 2, 8, 10

    key = jax.random.PRNGKey(0)
    k_params, k_src, k_trg = jax.random.split(key, 3)
    params = init_transformer_params(k_params, src_vocab, trg_vocab,
                                     d_model, n_layers, heads, d_ff=d_ff)

    source = jax.random.randint(k_src, (B, S_src), 0, src_vocab, dtype=jnp.int32)
    target = jax.random.randint(k_trg, (B, S_trg), 0, trg_vocab, dtype=jnp.int32)

    # source mask: (B, 1, S_src); pad out the last 2 source tokens of batch 1
    source_mask = jnp.ones((B, 1, S_src), jnp.float32).at[1, 0, S_src - 2:].set(0.0)
    # target mask: (B, S_trg, S_trg) = causal no-peek mask & target pad mask
    trg_pad = jnp.ones((B, S_trg), jnp.float32).at[1, S_trg - 3:].set(0.0)
    causal = jnp.tril(jnp.ones((S_trg, S_trg), jnp.float32))
    target_mask = causal[None, :, :] * trg_pad[:, None, :]

    out = transformer_forward(source, target, source_mask, target_mask, params, heads=heads)
    out = jax.block_until_ready(out)
    assert out.shape == (B, S_trg, trg_vocab)
    assert bool(jnp.all(jnp.isfinite(out)))
    print("KERNEL_OK")
</pallas_src>

<mosaic_0001>
module attributes {stable_mosaic.version = 11 : i64} {
  func.func @encoder_layer_kernel(%arg0: i32, %arg1: i32, %arg2: memref<1x8x128xbf16, #tpu.memory_space<vmem>>, %arg3: memref<1x1x8xf32, #tpu.memory_space<vmem>>, %arg4: memref<1x128xf32, #tpu.memory_space<vmem>>, %arg5: memref<1x128xf32, #tpu.memory_space<vmem>>, %arg6: memref<4x128x32xbf16, #tpu.memory_space<vmem>>, %arg7: memref<4x1x32xf32, #tpu.memory_space<vmem>>, %arg8: memref<4x128x32xbf16, #tpu.memory_space<vmem>>, %arg9: memref<4x1x32xf32, #tpu.memory_space<vmem>>, %arg10: memref<4x128x32xbf16, #tpu.memory_space<vmem>>, %arg11: memref<4x1x32xf32, #tpu.memory_space<vmem>>, %arg12: memref<4x32x128xbf16, #tpu.memory_space<vmem>>, %arg13: memref<1x128xf32, #tpu.memory_space<vmem>>, %arg14: memref<1x128xf32, #tpu.memory_space<vmem>>, %arg15: memref<1x128xf32, #tpu.memory_space<vmem>>, %arg16: memref<128x2048xbf16, #tpu.memory_space<vmem>>, %arg17: memref<1x2048xf32, #tpu.memory_space<vmem>>, %arg18: memref<2048x128xbf16, #tpu.memory_space<vmem>>, %arg19: memref<1x128xf32, #tpu.memory_space<vmem>>, %arg20: memref<1x8x128xbf16, #tpu.memory_space<vmem>>, %arg21: memref<4x8x32xbf16, #tpu.memory_space<vmem>>, %arg22: memref<4x8x32xbf16, #tpu.memory_space<vmem>>) attributes {dimension_semantics = [#tpu.dimension_semantics<parallel>, #tpu.dimension_semantics<arbitrary>], iteration_bounds = array<i64: 2, 1>, scalar_prefetch = 0 : i64, scratch_operands = 2 : i64, tpu.core_type = #tpu.core_type<tc>, window_params = [{transform_indices = @transform_0, window_bounds = array<i64: 1, 8, 128>}, {transform_indices = @transform_1, window_bounds = array<i64: 1, 1, 8>}, {pipeline_mode = #tpu.pipeline_mode<synchronous>, transform_indices = @transform_2, window_bounds = array<i64: 1, 128>}, {pipeline_mode = #tpu.pipeline_mode<synchronous>, transform_indices = @transform_3, window_bounds = array<i64: 1, 128>}, {pipeline_mode = #tpu.pipeline_mode<synchronous>, transform_indices = @transform_4, window_bounds = array<i64: 4, 128, 32>}, {pipeline_mode = #tpu.pipeline_mode<synchronous>, transform_indices = @transform_5, window_bounds = array<i64: 4, 1, 32>}, {pipeline_mode = #tpu.pipeline_mode<synchronous>, transform_indices = @transform_6, window_bounds = array<i64: 4, 128, 32>}, {pipeline_mode = #tpu.pipeline_mode<synchronous>, transform_indices = @transform_7, window_bounds = array<i64: 4, 1, 32>}, {pipeline_mode = #tpu.pipeline_mode<synchronous>, transform_indices = @transform_8, window_bounds = array<i64: 4, 128, 32>}, {pipeline_mode = #tpu.pipeline_mode<synchronous>, transform_indices = @transform_9, window_bounds = array<i64: 4, 1, 32>}, {pipeline_mode = #tpu.pipeline_mode<synchronous>, transform_indices = @transform_10, window_bounds = array<i64: 4, 32, 128>}, {pipeline_mode = #tpu.pipeline_mode<synchronous>, transform_indices = @transform_11, window_bounds = array<i64: 1, 128>}, {pipeline_mode = #tpu.pipeline_mode<synchronous>, transform_indices = @transform_12, window_bounds = array<i64: 1, 128>}, {pipeline_mode = #tpu.pipeline_mode<synchronous>, transform_indices = @transform_13, window_bounds = array<i64: 1, 128>}, {pipeline_mode = #tpu.pipeline_mode<synchronous>, transform_indices = @transform_14, window_bounds = array<i64: 128, 2048>}, {pipeline_mode = #tpu.pipeline_mode<synchronous>, transform_indices = @transform_15, window_bounds = array<i64: 1, 2048>}, {pipeline_mode = #tpu.pipeline_mode<synchronous>, transform_indices = @transform_16, window_bounds = array<i64: 2048, 128>}, {pipeline_mode = #tpu.pipeline_mode<synchronous>, transform_indices = @transform_17, window_bounds = array<i64: 1, 128>}, {transform_indices = @transform_18, window_bounds = array<i64: 1, 8, 128>}]} {
    %c0 = arith.constant 0 : index
    %c0_0 = arith.constant 0 : index
    %0 = vector.load %arg4[%c0, %c0_0] : memref<1x128xf32, #tpu.memory_space<vmem>>, vector<1x128xf32>
    %c0_1 = arith.constant 0 : index
    %c0_2 = arith.constant 0 : index
    %1 = vector.load %arg5[%c0_1, %c0_2] : memref<1x128xf32, #tpu.memory_space<vmem>>, vector<1x128xf32>
    %c0_i32 = arith.constant 0 : i32
    %2 = arith.cmpi eq, %arg1, %c0_i32 : i32
    %3 = arith.extui %2 : i1 to i32
    %c0_i32_3 = arith.constant 0 : i32
    %4 = arith.cmpi ne, %3, %c0_i32_3 : i32
    scf.if %4 {
      %c0_135 = arith.constant 0 : index
      %c0_136 = arith.constant 0 : index
      %c0_137 = arith.constant 0 : index
      %239 = vector.load %arg2[%c0_135, %c0_136, %c0_137] : memref<1x8x128xbf16, #tpu.memory_space<vmem>>, vector<1x8x128xbf16>
      %240 = vector.shape_cast %239 : vector<1x8x128xbf16> to vector<8x128xbf16>
      %241 = arith.extf %240 : vector<8x128xbf16> to vector<8x128xf32>
      %cst_138 = arith.constant dense<0.000000e+00> : vector<8xf32>
      %242 = vector.multi_reduction <add>, %241, %cst_138 [1] : vector<8x128xf32> to vector<8xf32>
      %243 = vector.shape_cast %242 : vector<8xf32> to vector<8x1xf32>
      %cst_139 = arith.constant 1.280000e+02 : f32
      %244 = vector.broadcast %cst_139 : f32 to vector<8x1xf32>
      %245 = arith.divf %243, %244 : vector<8x1xf32>
      %246 = vector.broadcast %245 : vector<8x1xf32> to vector<8x128xf32>
      %247 = arith.subf %241, %246 : vector<8x128xf32>
      %248 = arith.mulf %247, %247 : vector<8x128xf32>
      %cst_140 = arith.constant dense<0.000000e+00> : vector<8xf32>
      %249 = vector.multi_reduction <add>, %248, %cst_140 [1] : vector<8x128xf32> to vector<8xf32>
      %250 = vector.shape_cast %249 : vector<8xf32> to vector<8x1xf32>
      %cst_141 = arith.constant 1.270000e+02 : f32
      %251 = vector.broadcast %cst_141 : f32 to vector<8x1xf32>
      %252 = arith.divf %250, %251 : vector<8x1xf32>
      %253 = math.sqrt %252 : vector<8x1xf32>
      %cst_142 = arith.constant 9.99999997E-7 : f32
      %254 = vector.broadcast %cst_142 : f32 to vector<8x1xf32>
      %255 = arith.addf %253, %254 : vector<8x1xf32>
      %256 = tpu.reciprocal %255 {approx = true} : vector<8x1xf32> -> vector<8x1xf32>
      %257 = vector.broadcast %245 : vector<8x1xf32> to vector<8x128xf32>
      %258 = arith.subf %241, %257 : vector<8x128xf32>
      %259 = vector.broadcast %0 : vector<1x128xf32> to vector<8x128xf32>
      %260 = arith.mulf %259, %258 : vector<8x128xf32>
      %261 = vector.broadcast %256 : vector<8x1xf32> to vector<8x128xf32>
      %262 = arith.mulf %260, %261 : vector<8x128xf32>
      %263 = vector.broadcast %1 : vector<1x128xf32> to vector<8x128xf32>
      %264 = arith.addf %262, %263 : vector<8x128xf32>
      %265 = arith.truncf %264 : vector<8x128xf32> to vector<8x128xbf16>
      %c0_143 = arith.constant 0 : index
      %c0_144 = arith.constant 0 : index
      %c0_145 = arith.constant 0 : index
      %266 = vector.load %arg8[%c0_143, %c0_144, %c0_145] : memref<4x128x32xbf16, #tpu.memory_space<vmem>>, vector<1x128x32xbf16>
      %267 = vector.shape_cast %266 : vector<1x128x32xbf16> to vector<128x32xbf16>
      %cst_146 = arith.constant dense<0.000000e+00> : vector<8x32xf32>
      %268 = tpu.matmul %265, %267, %cst_146 {dimension_numbers = #tpu.dot_dimension_numbers<[1], [0], [0], [1], [0, 0, 1, 1], [], []>} : vector<8x128xbf16>, vector<128x32xbf16>, vector<8x32xf32> -> vector<8x32xf32>
      %c0_147 = arith.constant 0 : index
      %c0_148 = arith.constant 0 : index
      %c0_149 = arith.constant 0 : index
      %269 = vector.load %arg9[%c0_147, %c0_148, %c0_149] : memref<4x1x32xf32, #tpu.memory_space<vmem>>, vector<1x1x32xf32>
      %270 = vector.shape_cast %269 : vector<1x1x32xf32> to vector<1x32xf32>
      %271 = vector.broadcast %270 : vector<1x32xf32> to vector<8x32xf32>
      %272 = arith.addf %268, %271 : vector<8x32xf32>
      %273 = arith.truncf %272 : vector<8x32xf32> to vector<8x32xbf16>
      %c0_150 = arith.constant 0 : index
      %c0_151 = arith.constant 0 : index
      %c0_152 = arith.constant 0 : index
      %274 = vector.load %arg21[%c0_150, %c0_151, %c0_152] : memref<4x8x32xbf16, #tpu.memory_space<vmem>>, vector<1x8x32xbf16>
      %275 = vector.shape_cast %274 : vector<1x8x32xbf16> to vector<8x32xbf16>
      %276 = vector.shape_cast %273 : vector<8x32xbf16> to vector<1x8x32xbf16>
      tpu.vector_store %arg21[%c0_150, %c0_151, %c0_152], %276 {strides = array<i32>} : memref<4x8x32xbf16, #tpu.memory_space<vmem>>, vector<1x8x32xbf16>,
      %c0_153 = arith.constant 0 : index
      %c0_154 = arith.constant 0 : index
      %c0_155 = arith.constant 0 : index
      %277 = vector.load %arg10[%c0_153, %c0_154, %c0_155] : memref<4x128x32xbf16, #tpu.memory_space<vmem>>, vector<1x128x32xbf16>
      %278 = vector.shape_cast %277 : vector<1x128x32xbf16> to vector<128x32xbf16>
      %cst_156 = arith.constant dense<0.000000e+00> : vector<8x32xf32>
      %279 = tpu.matmul %265, %278, %cst_156 {dimension_numbers = #tpu.dot_dimension_numbers<[1], [0], [0], [1], [0, 0, 1, 1], [], []>} : vector<8x128xbf16>, vector<128x32xbf16>, vector<8x32xf32> -> vector<8x32xf32>
      %c0_157 = arith.constant 0 : index
      %c0_158 = arith.constant 0 : index
      %c0_159 = arith.constant 0 : index
      %280 = vector.load %arg11[%c0_157, %c0_158, %c0_159] : memref<4x1x32xf32, #tpu.memory_space<vmem>>, vector<1x1x32xf32>
      %281 = vector.shape_cast %280 : vector<1x1x32xf32> to vector<1x32xf32>
      %282 = vector.broadcast %281 : vector<1x32xf32> to vector<8x32xf32>
      %283 = arith.addf %279, %282 : vector<8x32xf32>
      %284 = arith.truncf %283 : vector<8x32xf32> to vector<8x32xbf16>
      %c0_160 = arith.constant 0 : index
      %c0_161 = arith.constant 0 : index
      %c0_162 = arith.constant 0 : index
      %285 = vector.load %arg22[%c0_160, %c0_161, %c0_162] : memref<4x8x32xbf16, #tpu.memory_space<vmem>>, vector<1x8x32xbf16>
      %286 = vector.shape_cast %285 : vector<1x8x32xbf16> to vector<8x32xbf16>
      %287 = vector.shape_cast %284 : vector<8x32xbf16> to vector<1x8x32xbf16>
      tpu.vector_store %arg22[%c0_160, %c0_161, %c0_162], %287 {strides = array<i32>} : memref<4x8x32xbf16, #tpu.memory_space<vmem>>, vector<1x8x32xbf16>,
      %c1_163 = arith.constant 1 : index
      %c0_164 = arith.constant 0 : index
      %c0_165 = arith.constant 0 : index
      %288 = vector.load %arg8[%c1_163, %c0_164, %c0_165] : memref<4x128x32xbf16, #tpu.memory_space<vmem>>, vector<1x128x32xbf16>
      %289 = vector.shape_cast %288 : vector<1x128x32xbf16> to vector<128x32xbf16>
      %cst_166 = arith.constant dense<0.000000e+00> : vector<8x32xf32>
      %290 = tpu.matmul %265, %289, %cst_166 {dimension_numbers = #tpu.dot_dimension_numbers<[1], [0], [0], [1], [0, 0, 1, 1], [], []>} : vector<8x128xbf16>, vector<128x32xbf16>, vector<8x32xf32> -> vector<8x32xf32>
      %c1_167 = arith.constant 1 : index
      %c0_168 = arith.constant 0 : index
      %c0_169 = arith.constant 0 : index
      %291 = vector.load %arg9[%c1_167, %c0_168, %c0_169] : memref<4x1x32xf32, #tpu.memory_space<vmem>>, vector<1x1x32xf32>
      %292 = vector.shape_cast %291 : vector<1x1x32xf32> to vector<1x32xf32>
      %293 = vector.broadcast %292 : vector<1x32xf32> to vector<8x32xf32>
      %294 = arith.addf %290, %293 : vector<8x32xf32>
      %295 = arith.truncf %294 : vector<8x32xf32> to vector<8x32xbf16>
      %c1_170 = arith.constant 1 : index
      %c0_171 = arith.constant 0 : index
      %c0_172 = arith.constant 0 : index
      %296 = vector.load %arg21[%c1_170, %c0_171, %c0_172] : memref<4x8x32xbf16, #tpu.memory_space<vmem>>, vector<1x8x32xbf16>
      %297 = vector.shape_cast %296 : vector<1x8x32xbf16> to vector<8x32xbf16>
      %298 = vector.shape_cast %295 : vector<8x32xbf16> to vector<1x8x32xbf16>
      tpu.vector_store %arg21[%c1_170, %c0_171, %c0_172], %298 {strides = array<i32>} : memref<4x8x32xbf16, #tpu.memory_space<vmem>>, vector<1x8x32xbf16>,
      %c1_173 = arith.constant 1 : index
      %c0_174 = arith.constant 0 : index
      %c0_175 = arith.constant 0 : index
      %299 = vector.load %arg10[%c1_173, %c0_174, %c0_175] : memref<4x128x32xbf16, #tpu.memory_space<vmem>>, vector<1x128x32xbf16>
      %300 = vector.shape_cast %299 : vector<1x128x32xbf16> to vector<128x32xbf16>
      %cst_176 = arith.constant dense<0.000000e+00> : vector<8x32xf32>
      %301 = tpu.matmul %265, %300, %cst_176 {dimension_numbers = #tpu.dot_dimension_numbers<[1], [0], [0], [1], [0, 0, 1, 1], [], []>} : vector<8x128xbf16>, vector<128x32xbf16>, vector<8x32xf32> -> vector<8x32xf32>
      %c1_177 = arith.constant 1 : index
      %c0_178 = arith.constant 0 : index
      %c0_179 = arith.constant 0 : index
      %302 = vector.load %arg11[%c1_177, %c0_178, %c0_179] : memref<4x1x32xf32, #tpu.memory_space<vmem>>, vector<1x1x32xf32>
      %303 = vector.shape_cast %302 : vector<1x1x32xf32> to vector<1x32xf32>
      %304 = vector.broadcast %303 : vector<1x32xf32> to vector<8x32xf32>
      %305 = arith.addf %301, %304 : vector<8x32xf32>
      %306 = arith.truncf %305 : vector<8x32xf32> to vector<8x32xbf16>
      %c1_180 = arith.constant 1 : index
      %c0_181 = arith.constant 0 : index
      %c0_182 = arith.constant 0 : index
      %307 = vector.load %arg22[%c1_180, %c0_181, %c0_182] : memref<4x8x32xbf16, #tpu.memory_space<vmem>>, vector<1x8x32xbf16>
      %308 = vector.shape_cast %307 : vector<1x8x32xbf16> to vector<8x32xbf16>
      %309 = vector.shape_cast %306 : vector<8x32xbf16> to vector<1x8x32xbf16>
      tpu.vector_store %arg22[%c1_180, %c0_181, %c0_182], %309 {strides = array<i32>} : memref<4x8x32xbf16, #tpu.memory_space<vmem>>, vector<1x8x32xbf16>,
      %c2_183 = arith.constant 2 : index
      %c0_184 = arith.constant 0 : index
      %c0_185 = arith.constant 0 : index
      %310 = vector.load %arg8[%c2_183, %c0_184, %c0_185] : memref<4x128x32xbf16, #tpu.memory_space<vmem>>, vector<1x128x32xbf16>
      %311 = vector.shape_cast %310 : vector<1x128x32xbf16> to vector<128x32xbf16>
      %cst_186 = arith.constant dense<0.000000e+00> : vector<8x32xf32>
      %312 = tpu.matmul %265, %311, %cst_186 {dimension_numbers = #tpu.dot_dimension_numbers<[1], [0], [0], [1], [0, 0, 1, 1], [], []>} : vector<8x128xbf16>, vector<128x32xbf16>, vector<8x32xf32> -> vector<8x32xf32>
      %c2_187 = arith.constant 2 : index
      %c0_188 = arith.constant 0 : index
      %c0_189 = arith.constant 0 : index
      %313 = vector.load %arg9[%c2_187, %c0_188, %c0_189] : memref<4x1x32xf32, #tpu.memory_space<vmem>>, vector<1x1x32xf32>
      %314 = vector.shape_cast %313 : vector<1x1x32xf32> to vector<1x32xf32>
      %315 = vector.broadcast %314 : vector<1x32xf32> to vector<8x32xf32>
      %316 = arith.addf %312, %315 : vector<8x32xf32>
      %317 = arith.truncf %316 : vector<8x32xf32> to vector<8x32xbf16>
      %c2_190 = arith.constant 2 : index
      %c0_191 = arith.constant 0 : index
      %c0_192 = arith.constant 0 : index
      %318 = vector.load %arg21[%c2_190, %c0_191, %c0_192] : memref<4x8x32xbf16, #tpu.memory_space<vmem>>, vector<1x8x32xbf16>
      %319 = vector.shape_cast %318 : vector<1x8x32xbf16> to vector<8x32xbf16>
      %320 = vector.shape_cast %317 : vector<8x32xbf16> to vector<1x8x32xbf16>
      tpu.vector_store %arg21[%c2_190, %c0_191, %c0_192], %320 {strides = array<i32>} : memref<4x8x32xbf16, #tpu.memory_space<vmem>>, vector<1x8x32xbf16>,
      %c2_193 = arith.constant 2 : index
      %c0_194 = arith.constant 0 : index
      %c0_195 = arith.constant 0 : index
      %321 = vector.load %arg10[%c2_193, %c0_194, %c0_195] : memref<4x128x32xbf16, #tpu.memory_space<vmem>>, vector<1x128x32xbf16>
      %322 = vector.shape_cast %321 : vector<1x128x32xbf16> to vector<128x32xbf16>
      %cst_196 = arith.constant dense<0.000000e+00> : vector<8x32xf32>
      %323 = tpu.matmul %265, %322, %cst_196 {dimension_numbers = #tpu.dot_dimension_numbers<[1], [0], [0], [1], [0, 0, 1, 1], [], []>} : vector<8x128xbf16>, vector<128x32xbf16>, vector<8x32xf32> -> vector<8x32xf32>
      %c2_197 = arith.constant 2 : index
      %c0_198 = arith.constant 0 : index
      %c0_199 = arith.constant 0 : index
      %324 = vector.load %arg11[%c2_197, %c0_198, %c0_199] : memref<4x1x32xf32, #tpu.memory_space<vmem>>, vector<1x1x32xf32>
      %325 = vector.shape_cast %324 : vector<1x1x32xf32> to vector<1x32xf32>
      %326 = vector.broadcast %325 : vector<1x32xf32> to vector<8x32xf32>
      %327 = arith.addf %323, %326 : vector<8x32xf32>
      %328 = arith.truncf %327 : vector<8x32xf32> to vector<8x32xbf16>
      %c2_200 = arith.constant 2 : index
      %c0_201 = arith.constant 0 : index
      %c0_202 = arith.constant 0 : index
      %329 = vector.load %arg22[%c2_200, %c0_201, %c0_202] : memref<4x8x32xbf16, #tpu.memory_space<vmem>>, vector<1x8x32xbf16>
      %330 = vector.shape_cast %329 : vector<1x8x32xbf16> to vector<8x32xbf16>
      %331 = vector.shape_cast %328 : vector<8x32xbf16> to vector<1x8x32xbf16>
      tpu.vector_store %arg22[%c2_200, %c0_201, %c0_202], %331 {strides = array<i32>} : memref<4x8x32xbf16, #tpu.memory_space<vmem>>, vector<1x8x32xbf16>,
      %c3_203 = arith.constant 3 : index
      %c0_204 = arith.constant 0 : index
      %c0_205 = arith.constant 0 : index
      %332 = vector.load %arg8[%c3_203, %c0_204, %c0_205] : memref<4x128x32xbf16, #tpu.memory_space<vmem>>, vector<1x128x32xbf16>
      %333 = vector.shape_cast %332 : vector<1x128x32xbf16> to vector<128x32xbf16>
      %cst_206 = arith.constant dense<0.000000e+00> : vector<8x32xf32>
      %334 = tpu.matmul %265, %333, %cst_206 {dimension_numbers = #tpu.dot_dimension_numbers<[1], [0], [0], [1], [0, 0, 1, 1], [], []>} : vector<8x128xbf16>, vector<128x32xbf16>, vector<8x32xf32> -> vector<8x32xf32>
      %c3_207 = arith.constant 3 : index
      %c0_208 = arith.constant 0 : index
      %c0_209 = arith.constant 0 : index
      %335 = vector.load %arg9[%c3_207, %c0_208, %c0_209] : memref<4x1x32xf32, #tpu.memory_space<vmem>>, vector<1x1x32xf32>
      %336 = vector.shape_cast %335 : vector<1x1x32xf32> to vector<1x32xf32>
      %337 = vector.broadcast %336 : vector<1x32xf32> to vector<8x32xf32>
      %338 = arith.addf %334, %337 : vector<8x32xf32>
      %339 = arith.truncf %338 : vector<8x32xf32> to vector<8x32xbf16>
      %c3_210 = arith.constant 3 : index
      %c0_211 = arith.constant 0 : index
      %c0_212 = arith.constant 0 : index
      %340 = vector.load %arg21[%c3_210, %c0_211, %c0_212] : memref<4x8x32xbf16, #tpu.memory_space<vmem>>, vector<1x8x32xbf16>
      %341 = vector.shape_cast %340 : vector<1x8x32xbf16> to vector<8x32xbf16>
      %342 = vector.shape_cast %339 : vector<8x32xbf16> to vector<1x8x32xbf16>
      tpu.vector_store %arg21[%c3_210, %c0_211, %c0_212], %342 {strides = array<i32>} : memref<4x8x32xbf16, #tpu.memory_space<vmem>>, vector<1x8x32xbf16>,
      %c3_213 = arith.constant 3 : index
      %c0_214 = arith.constant 0 : index
      %c0_215 = arith.constant 0 : index
      %343 = vector.load %arg10[%c3_213, %c0_214, %c0_215] : memref<4x128x32xbf16, #tpu.memory_space<vmem>>, vector<1x128x32xbf16>
      %344 = vector.shape_cast %343 : vector<1x128x32xbf16> to vector<128x32xbf16>
      %cst_216 = arith.constant dense<0.000000e+00> : vector<8x32xf32>
      %345 = tpu.matmul %265, %344, %cst_216 {dimension_numbers = #tpu.dot_dimension_numbers<[1], [0], [0], [1], [0, 0, 1, 1], [], []>} : vector<8x128xbf16>, vector<128x32xbf16>, vector<8x32xf32> -> vector<8x32xf32>
      %c3_217 = arith.constant 3 : index
      %c0_218 = arith.constant 0 : index
      %c0_219 = arith.constant 0 : index
      %346 = vector.load %arg11[%c3_217, %c0_218, %c0_219] : memref<4x1x32xf32, #tpu.memory_space<vmem>>, vector<1x1x32xf32>
      %347 = vector.shape_cast %346 : vector<1x1x32xf32> to vector<1x32xf32>
      %348 = vector.broadcast %347 : vector<1x32xf32> to vector<8x32xf32>
      %349 = arith.addf %345, %348 : vector<8x32xf32>
      %350 = arith.truncf %349 : vector<8x32xf32> to vector<8x32xbf16>
      %c3_220 = arith.constant 3 : index
      %c0_221 = arith.constant 0 : index
      %c0_222 = arith.constant 0 : index
      %351 = vector.load %arg22[%c3_220, %c0_221, %c0_222] : memref<4x8x32xbf16, #tpu.memory_space<vmem>>, vector<1x8x32xbf16>
      %352 = vector.shape_cast %351 : vector<1x8x32xbf16> to vector<8x32xbf16>
      %353 = vector.shape_cast %350 : vector<8x32xbf16> to vector<1x8x32xbf16>
      tpu.vector_store %arg22[%c3_220, %c0_221, %c0_222], %353 {strides = array<i32>} : memref<4x8x32xbf16, #tpu.memory_space<vmem>>, vector<1x8x32xbf16>,
    } else {
    }
    %c8_i32 = arith.constant 8 : i32
    %5 = arith.muli %arg1, %c8_i32 : i32
    %6 = tpu.assume_multiple %5, 8 : i32
    %c0_4 = arith.constant 0 : index
    %7 = arith.index_cast %6 : i32 to index
    %c0_5 = arith.constant 0 : index
    %8 = vector.load %arg2[%c0_4, %7, %c0_5] : memref<1x8x128xbf16, #tpu.memory_space<vmem>>, vector<1x8x128xbf16>
    %9 = vector.shape_cast %8 : vector<1x8x128xbf16> to vector<8x128xbf16>
    %10 = arith.extf %9 : vector<8x128xbf16> to vector<8x128xf32>
    %c0_6 = arith.constant 0 : index
    %c0_7 = arith.constant 0 : index
    %c0_8 = arith.constant 0 : index
    %11 = vector.load %arg3[%c0_6, %c0_7, %c0_8] : memref<1x1x8xf32, #tpu.memory_space<vmem>>, vector<1x1x8xf32>
    %12 = vector.shape_cast %11 : vector<1x1x8xf32> to vector<1x8xf32>
    %cst = arith.constant 1.000000e+00 : f32
    %13 = vector.broadcast %cst : f32 to vector<1x8xf32>
    %14 = arith.subf %12, %13 : vector<1x8xf32>
    %cst_9 = arith.constant 1.000000e+09 : f32
    %15 = vector.broadcast %cst_9 : f32 to vector<1x8xf32>
    %16 = arith.mulf %14, %15 : vector<1x8xf32>
    %cst_10 = arith.constant dense<0.000000e+00> : vector<8xf32>
    %17 = vector.multi_reduction <add>, %10, %cst_10 [1] : vector<8x128xf32> to vector<8xf32>
    %18 = vector.shape_cast %17 : vector<8xf32> to vector<8x1xf32>
    %cst_11 = arith.constant 1.280000e+02 : f32
    %19 = vector.broadcast %cst_11 : f32 to vector<8x1xf32>
    %20 = arith.divf %18, %19 : vector<8x1xf32>
    %21 = vector.broadcast %20 : vector<8x1xf32> to vector<8x128xf32>
    %22 = arith.subf %10, %21 : vector<8x128xf32>
    %23 = arith.mulf %22, %22 : vector<8x128xf32>
    %cst_12 = arith.constant dense<0.000000e+00> : vector<8xf32>
    %24 = vector.multi_reduction <add>, %23, %cst_12 [1] : vector<8x128xf32> to vector<8xf32>
    %25 = vector.shape_cast %24 : vector<8xf32> to vector<8x1xf32>
    %cst_13 = arith.constant 1.270000e+02 : f32
    %26 = vector.broadcast %cst_13 : f32 to vector<8x1xf32>
    %27 = arith.divf %25, %26 : vector<8x1xf32>
    %28 = math.sqrt %27 : vector<8x1xf32>
    %cst_14 = arith.constant 9.99999997E-7 : f32
    %29 = vector.broadcast %cst_14 : f32 to vector<8x1xf32>
    %30 = arith.addf %28, %29 : vector<8x1xf32>
    %31 = tpu.reciprocal %30 {approx = true} : vector<8x1xf32> -> vector<8x1xf32>
    %32 = vector.broadcast %20 : vector<8x1xf32> to vector<8x128xf32>
    %33 = arith.subf %10, %32 : vector<8x128xf32>
    %34 = vector.broadcast %0 : vector<1x128xf32> to vector<8x128xf32>
    %35 = arith.mulf %34, %33 : vector<8x128xf32>
    %36 = vector.broadcast %31 : vector<8x1xf32> to vector<8x128xf32>
    %37 = arith.mulf %35, %36 : vector<8x128xf32>
    %38 = vector.broadcast %1 : vector<1x128xf32> to vector<8x128xf32>
    %39 = arith.addf %37, %38 : vector<8x128xf32>
    %c0_15 = arith.constant 0 : index
    %c0_16 = arith.constant 0 : index
    %40 = vector.load %arg13[%c0_15, %c0_16] : memref<1x128xf32, #tpu.memory_space<vmem>>, vector<1x128xf32>
    %41 = arith.truncf %39 : vector<8x128xf32> to vector<8x128xbf16>
    %cst_17 = arith.constant 0.000000e+00 : f32
    %42 = vector.broadcast %cst_17 : f32 to vector<8x128xf32>
    %c0_18 = arith.constant 0 : index
    %c0_19 = arith.constant 0 : index
    %c0_20 = arith.constant 0 : index
    %43 = vector.load %arg6[%c0_18, %c0_19, %c0_20] : memref<4x128x32xbf16, #tpu.memory_space<vmem>>, vector<1x128x32xbf16>
    %44 = vector.shape_cast %43 : vector<1x128x32xbf16> to vector<128x32xbf16>
    %cst_21 = arith.constant dense<0.000000e+00> : vector<8x32xf32>
    %45 = tpu.matmul %41, %44, %cst_21 {dimension_numbers = #tpu.dot_dimension_numbers<[1], [0], [0], [1], [0, 0, 1, 1], [], []>} : vector<8x128xbf16>, vector<128x32xbf16>, vector<8x32xf32> -> vector<8x32xf32>
    %c0_22 = arith.constant 0 : index
    %c0_23 = arith.constant 0 : index
    %c0_24 = arith.constant 0 : index
    %46 = vector.load %arg7[%c0_22, %c0_23, %c0_24] : memref<4x1x32xf32, #tpu.memory_space<vmem>>, vector<1x1x32xf32>
    %47 = vector.shape_cast %46 : vector<1x1x32xf32> to vector<1x32xf32>
    %48 = vector.broadcast %47 : vector<1x32xf32> to vector<8x32xf32>
    %49 = arith.addf %45, %48 : vector<8x32xf32>
    %cst_25 = arith.constant 0.176776692 : f32
    %50 = vector.broadcast %cst_25 : f32 to vector<8x32xf32>
    %51 = arith.mulf %49, %50 : vector<8x32xf32>
    %c0_26 = arith.constant 0 : index
    %c0_27 = arith.constant 0 : index
    %c0_28 = arith.constant 0 : index
    %52 = vector.load %arg21[%c0_26, %c0_27, %c0_28] : memref<4x8x32xbf16, #tpu.memory_space<vmem>>, vector<1x8x32xbf16>
    %53 = vector.shape_cast %52 : vector<1x8x32xbf16> to vector<8x32xbf16>
    %c0_29 = arith.constant 0 : index
    %c0_30 = arith.constant 0 : index
    %c0_31 = arith.constant 0 : index
    %54 = vector.load %arg22[%c0_29, %c0_30, %c0_31] : memref<4x8x32xbf16, #tpu.memory_space<vmem>>, vector<1x8x32xbf16>
    %55 = vector.shape_cast %54 : vector<1x8x32xbf16> to vector<8x32xbf16>
    %56 = arith.truncf %51 : vector<8x32xf32> to vector<8x32xbf16>
    %cst_32 = arith.constant dense<0.000000e+00> : vector<8x8xf32>
    %57 = tpu.matmul %56, %53, %cst_32 {dimension_numbers = #tpu.dot_dimension_numbers<[1], [1], [0], [0], [0, 0, 1, 0], [], []>} : vector<8x32xbf16>, vector<8x32xbf16>, vector<8x8xf32> -> vector<8x8xf32>
    %58 = vector.broadcast %16 : vector<1x8xf32> to vector<8x8xf32>
    %59 = arith.addf %57, %58 : vector<8x8xf32>
    %cst_33 = arith.constant dense<0xFF800000> : vector<8xf32>
    %60 = vector.multi_reduction <maximumf>, %59, %cst_33 [1] : vector<8x8xf32> to vector<8xf32>
    %61 = vector.shape_cast %60 : vector<8xf32> to vector<8x1xf32>
    %62 = vector.broadcast %61 : vector<8x1xf32> to vector<8x8xf32>
    %63 = arith.subf %59, %62 : vector<8x8xf32>
    %64 = math.exp %63 : vector<8x8xf32>
    %cst_34 = arith.constant dense<0.000000e+00> : vector<8xf32>
    %65 = vector.multi_reduction <add>, %64, %cst_34 [1] : vector<8x8xf32> to vector<8xf32>
    %66 = vector.shape_cast %65 : vector<8xf32> to vector<8x1xf32>
    %67 = tpu.reciprocal %66 {approx = true} : vector<8x1xf32> -> vector<8x1xf32>
    %68 = vector.broadcast %67 : vector<8x1xf32> to vector<8x8xf32>
    %69 = arith.mulf %64, %68 : vector<8x8xf32>
    %70 = arith.truncf %69 : vector<8x8xf32> to vector<8x8xbf16>
    %cst_35 = arith.constant dense<0.000000e+00> : vector<8x32xf32>
    %71 = tpu.matmul %70, %55, %cst_35 {dimension_numbers = #tpu.dot_dimension_numbers<[1], [0], [0], [1], [0, 0, 1, 1], [], []>} : vector<8x8xbf16>, vector<8x32xbf16>, vector<8x32xf32> -> vector<8x32xf32>
    %72 = arith.truncf %71 : vector<8x32xf32> to vector<8x32xbf16>
    %c0_36 = arith.constant 0 : index
    %c0_37 = arith.constant 0 : index
    %c0_38 = arith.constant 0 : index
    %73 = vector.load %arg12[%c0_36, %c0_37, %c0_38] : memref<4x32x128xbf16, #tpu.memory_space<vmem>>, vector<1x32x128xbf16>
    %74 = vector.shape_cast %73 : vector<1x32x128xbf16> to vector<32x128xbf16>
    %cst_39 = arith.constant dense<0.000000e+00> : vector<8x128xf32>
    %75 = tpu.matmul %72, %74, %cst_39 {dimension_numbers = #tpu.dot_dimension_numbers<[1], [0], [0], [1], [0, 0, 1, 1], [], []>} : vector<8x32xbf16>, vector<32x128xbf16>, vector<8x128xf32> -> vector<8x128xf32>
    %76 = arith.addf %42, %75 : vector<8x128xf32>
    %c1 = arith.constant 1 : index
    %c0_40 = arith.constant 0 : index
    %c0_41 = arith.constant 0 : index
    %77 = vector.load %arg6[%c1, %c0_40, %c0_41] : memref<4x128x32xbf16, #tpu.memory_space<vmem>>, vector<1x128x32xbf16>
    %78 = vector.shape_cast %77 : vector<1x128x32xbf16> to vector<128x32xbf16>
    %cst_42 = arith.constant dense<0.000000e+00> : vector<8x32xf32>
    %79 = tpu.matmul %41, %78, %cst_42 {dimension_numbers = #tpu.dot_dimension_numbers<[1], [0], [0], [1], [0, 0, 1, 1], [], []>} : vector<8x128xbf16>, vector<128x32xbf16>, vector<8x32xf32> -> vector<8x32xf32>
    %c1_43 = arith.constant 1 : index
    %c0_44 = arith.constant 0 : index
    %c0_45 = arith.constant 0 : index
    %80 = vector.load %arg7[%c1_43, %c0_44, %c0_45] : memref<4x1x32xf32, #tpu.memory_space<vmem>>, vector<1x1x32xf32>
    %81 = vector.shape_cast %80 : vector<1x1x32xf32> to vector<1x32xf32>
    %82 = vector.broadcast %81 : vector<1x32xf32> to vector<8x32xf32>
    %83 = arith.addf %79, %82 : vector<8x32xf32>
    %cst_46 = arith.constant 0.176776692 : f32
    %84 = vector.broadcast %cst_46 : f32 to vector<8x32xf32>
    %85 = arith.mulf %83, %84 : vector<8x32xf32>
    %c1_47 = arith.constant 1 : index
    %c0_48 = arith.constant 0 : index
    %c0_49 = arith.constant 0 : index
    %86 = vector.load %arg21[%c1_47, %c0_48, %c0_49] : memref<4x8x32xbf16, #tpu.memory_space<vmem>>, vector<1x8x32xbf16>
    %87 = vector.shape_cast %86 : vector<1x8x32xbf16> to vector<8x32xbf16>
    %c1_50 = arith.constant 1 : index
    %c0_51 = arith.constant 0 : index
    %c0_52 = arith.constant 0 : index
    %88 = vector.load %arg22[%c1_50, %c0_51, %c0_52] : memref<4x8x32xbf16, #tpu.memory_space<vmem>>, vector<1x8x32xbf16>
    %89 = vector.shape_cast %88 : vector<1x8x32xbf16> to vector<8x32xbf16>
    %90 = arith.truncf %85 : vector<8x32xf32> to vector<8x32xbf16>
    %cst_53 = arith.constant dense<0.000000e+00> : vector<8x8xf32>
    %91 = tpu.matmul %90, %87, %cst_53 {dimension_numbers = #tpu.dot_dimension_numbers<[1], [1], [0], [0], [0, 0, 1, 0], [], []>} : vector<8x32xbf16>, vector<8x32xbf16>, vector<8x8xf32> -> vector<8x8xf32>
    %92 = vector.broadcast %16 : vector<1x8xf32> to vector<8x8xf32>
    %93 = arith.addf %91, %92 : vector<8x8xf32>
    %cst_54 = arith.constant dense<0xFF800000> : vector<8xf32>
    %94 = vector.multi_reduction <maximumf>, %93, %cst_54 [1] : vector<8x8xf32> to vector<8xf32>
    %95 = vector.shape_cast %94 : vector<8xf32> to vector<8x1xf32>
    %96 = vector.broadcast %95 : vector<8x1xf32> to vector<8x8xf32>
    %97 = arith.subf %93, %96 : vector<8x8xf32>
    %98 = math.exp %97 : vector<8x8xf32>
    %cst_55 = arith.constant dense<0.000000e+00> : vector<8xf32>
    %99 = vector.multi_reduction <add>, %98, %cst_55 [1] : vector<8x8xf32> to vector<8xf32>
    %100 = vector.shape_cast %99 : vector<8xf32> to vector<8x1xf32>
    %101 = tpu.reciprocal %100 {approx = true} : vector<8x1xf32> -> vector<8x1xf32>
    %102 = vector.broadcast %101 : vector<8x1xf32> to vector<8x8xf32>
    %103 = arith.mulf %98, %102 : vector<8x8xf32>
    %104 = arith.truncf %103 : vector<8x8xf32> to vector<8x8xbf16>
    %cst_56 = arith.constant dense<0.000000e+00> : vector<8x32xf32>
    %105 = tpu.matmul %104, %89, %cst_56 {dimension_numbers = #tpu.dot_dimension_numbers<[1], [0], [0], [1], [0, 0, 1, 1], [], []>} : vector<8x8xbf16>, vector<8x32xbf16>, vector<8x32xf32> -> vector<8x32xf32>
    %106 = arith.truncf %105 : vector<8x32xf32> to vector<8x32xbf16>
    %c1_57 = arith.constant 1 : index
    %c0_58 = arith.constant 0 : index
    %c0_59 = arith.constant 0 : index
    %107 = vector.load %arg12[%c1_57, %c0_58, %c0_59] : memref<4x32x128xbf16, #tpu.memory_space<vmem>>, vector<1x32x128xbf16>
    %108 = vector.shape_cast %107 : vector<1x32x128xbf16> to vector<32x128xbf16>
    %cst_60 = arith.constant dense<0.000000e+00> : vector<8x128xf32>
    %109 = tpu.matmul %106, %108, %cst_60 {dimension_numbers = #tpu.dot_dimension_numbers<[1], [0], [0], [1], [0, 0, 1, 1], [], []>} : vector<8x32xbf16>, vector<32x128xbf16>, vector<8x128xf32> -> vector<8x128xf32>
    %110 = arith.addf %76, %109 : vector<8x128xf32>
    %c2 = arith.constant 2 : index
    %c0_61 = arith.constant 0 : index
    %c0_62 = arith.constant 0 : index
    %111 = vector.load %arg6[%c2, %c0_61, %c0_62] : memref<4x128x32xbf16, #tpu.memory_space<vmem>>, vector<1x128x32xbf16>
    %112 = vector.shape_cast %111 : vector<1x128x32xbf16> to vector<128x32xbf16>
    %cst_63 = arith.constant dense<0.000000e+00> : vector<8x32xf32>
    %113 = tpu.matmul %41, %112, %cst_63 {dimension_numbers = #tpu.dot_dimension_numbers<[1], [0], [0], [1], [0, 0, 1, 1], [], []>} : vector<8x128xbf16>, vector<128x32xbf16>, vector<8x32xf32> -> vector<8x32xf32>
    %c2_64 = arith.constant 2 : index
    %c0_65 = arith.constant 0 : index
    %c0_66 = arith.constant 0 : index
    %114 = vector.load %arg7[%c2_64, %c0_65, %c0_66] : memref<4x1x32xf32, #tpu.memory_space<vmem>>, vector<1x1x32xf32>
    %115 = vector.shape_cast %114 : vector<1x1x32xf32> to vector<1x32xf32>
    %116 = vector.broadcast %115 : vector<1x32xf32> to vector<8x32xf32>
    %117 = arith.addf %113, %116 : vector<8x32xf32>
    %cst_67 = arith.constant 0.176776692 : f32
    %118 = vector.broadcast %cst_67 : f32 to vector<8x32xf32>
    %119 = arith.mulf %117, %118 : vector<8x32xf32>
    %c2_68 = arith.constant 2 : index
    %c0_69 = arith.constant 0 : index
    %c0_70 = arith.constant 0 : index
    %120 = vector.load %arg21[%c2_68, %c0_69, %c0_70] : memref<4x8x32xbf16, #tpu.memory_space<vmem>>, vector<1x8x32xbf16>
    %121 = vector.shape_cast %120 : vector<1x8x32xbf16> to vector<8x32xbf16>
    %c2_71 = arith.constant 2 : index
    %c0_72 = arith.constant 0 : index
    %c0_73 = arith.constant 0 : index
    %122 = vector.load %arg22[%c2_71, %c0_72, %c0_73] : memref<4x8x32xbf16, #tpu.memory_space<vmem>>, vector<1x8x32xbf16>
    %123 = vector.shape_cast %122 : vector<1x8x32xbf16> to vector<8x32xbf16>
    %124 = arith.truncf %119 : vector<8x32xf32> to vector<8x32xbf16>
    %cst_74 = arith.constant dense<0.000000e+00> : vector<8x8xf32>
    %125 = tpu.matmul %124, %121, %cst_74 {dimension_numbers = #tpu.dot_dimension_numbers<[1], [1], [0], [0], [0, 0, 1, 0], [], []>} : vector<8x32xbf16>, vector<8x32xbf16>, vector<8x8xf32> -> vector<8x8xf32>
    %126 = vector.broadcast %16 : vector<1x8xf32> to vector<8x8xf32>
    %127 = arith.addf %125, %126 : vector<8x8xf32>
    %cst_75 = arith.constant dense<0xFF800000> : vector<8xf32>
    %128 = vector.multi_reduction <maximumf>, %127, %cst_75 [1] : vector<8x8xf32> to vector<8xf32>
    %129 = vector.shape_cast %128 : vector<8xf32> to vector<8x1xf32>
    %130 = vector.broadcast %129 : vector<8x1xf32> to vector<8x8xf32>
    %131 = arith.subf %127, %130 : vector<8x8xf32>
    %132 = math.exp %131 : vector<8x8xf32>
    %cst_76 = arith.constant dense<0.000000e+00> : vector<8xf32>
    %133 = vector.multi_reduction <add>, %132, %cst_76 [1] : vector<8x8xf32> to vector<8xf32>
    %134 = vector.shape_cast %133 : vector<8xf32> to vector<8x1xf32>
    %135 = tpu.reciprocal %134 {approx = true} : vector<8x1xf32> -> vector<8x1xf32>
    %136 = vector.broadcast %135 : vector<8x1xf32> to vector<8x8xf32>
    %137 = arith.mulf %132, %136 : vector<8x8xf32>
    %138 = arith.truncf %137 : vector<8x8xf32> to vector<8x8xbf16>
    %cst_77 = arith.constant dense<0.000000e+00> : vector<8x32xf32>
    %139 = tpu.matmul %138, %123, %cst_77 {dimension_numbers = #tpu.dot_dimension_numbers<[1], [0], [0], [1], [0, 0, 1, 1], [], []>} : vector<8x8xbf16>, vector<8x32xbf16>, vector<8x32xf32> -> vector<8x32xf32>
    %140 = arith.truncf %139 : vector<8x32xf32> to vector<8x32xbf16>
    %c2_78 = arith.constant 2 : index
    %c0_79 = arith.constant 0 : index
    %c0_80 = arith.constant 0 : index
    %141 = vector.load %arg12[%c2_78, %c0_79, %c0_80] : memref<4x32x128xbf16, #tpu.memory_space<vmem>>, vector<1x32x128xbf16>
    %142 = vector.shape_cast %141 : vector<1x32x128xbf16> to vector<32x128xbf16>
    %cst_81 = arith.constant dense<0.000000e+00> : vector<8x128xf32>
    %143 = tpu.matmul %140, %142, %cst_81 {dimension_numbers = #tpu.dot_dimension_numbers<[1], [0], [0], [1], [0, 0, 1, 1], [], []>} : vector<8x32xbf16>, vector<32x128xbf16>, vector<8x128xf32> -> vector<8x128xf32>
    %144 = arith.addf %110, %143 : vector<8x128xf32>
    %c3 = arith.constant 3 : index
    %c0_82 = arith.constant 0 : index
    %c0_83 = arith.constant 0 : index
    %145 = vector.load %arg6[%c3, %c0_82, %c0_83] : memref<4x128x32xbf16, #tpu.memory_space<vmem>>, vector<1x128x32xbf16>
    %146 = vector.shape_cast %145 : vector<1x128x32xbf16> to vector<128x32xbf16>
    %cst_84 = arith.constant dense<0.000000e+00> : vector<8x32xf32>
    %147 = tpu.matmul %41, %146, %cst_84 {dimension_numbers = #tpu.dot_dimension_numbers<[1], [0], [0], [1], [0, 0, 1, 1], [], []>} : vector<8x128xbf16>, vector<128x32xbf16>, vector<8x32xf32> -> vector<8x32xf32>
    %c3_85 = arith.constant 3 : index
    %c0_86 = arith.constant 0 : index
    %c0_87 = arith.constant 0 : index
    %148 = vector.load %arg7[%c3_85, %c0_86, %c0_87] : memref<4x1x32xf32, #tpu.memory_space<vmem>>, vector<1x1x32xf32>
    %149 = vector.shape_cast %148 : vector<1x1x32xf32> to vector<1x32xf32>
    %150 = vector.broadcast %149 : vector<1x32xf32> to vector<8x32xf32>
    %151 = arith.addf %147, %150 : vector<8x32xf32>
    %cst_88 = arith.constant 0.176776692 : f32
    %152 = vector.broadcast %cst_88 : f32 to vector<8x32xf32>
    %153 = arith.mulf %151, %152 : vector<8x32xf32>
    %c3_89 = arith.constant 3 : index
    %c0_90 = arith.constant 0 : index
    %c0_91 = arith.constant 0 : index
    %154 = vector.load %arg21[%c3_89, %c0_90, %c0_91] : memref<4x8x32xbf16, #tpu.memory_space<vmem>>, vector<1x8x32xbf16>
    %155 = vector.shape_cast %154 : vector<1x8x32xbf16> to vector<8x32xbf16>
    %c3_92 = arith.constant 3 : index
    %c0_93 = arith.constant 0 : index
    %c0_94 = arith.constant 0 : index
    %156 = vector.load %arg22[%c3_92, %c0_93, %c0_94] : memref<4x8x32xbf16, #tpu.memory_space<vmem>>, vector<1x8x32xbf16>
    %157 = vector.shape_cast %156 : vector<1x8x32xbf16> to vector<8x32xbf16>
    %158 = arith.truncf %153 : vector<8x32xf32> to vector<8x32xbf16>
    %cst_95 = arith.constant dense<0.000000e+00> : vector<8x8xf32>
    %159 = tpu.matmul %158, %155, %cst_95 {dimension_numbers = #tpu.dot_dimension_numbers<[1], [1], [0], [0], [0, 0, 1, 0], [], []>} : vector<8x32xbf16>, vector<8x32xbf16>, vector<8x8xf32> -> vector<8x8xf32>
    %160 = vector.broadcast %16 : vector<1x8xf32> to vector<8x8xf32>
    %161 = arith.addf %159, %160 : vector<8x8xf32>
    %cst_96 = arith.constant dense<0xFF800000> : vector<8xf32>
    %162 = vector.multi_reduction <maximumf>, %161, %cst_96 [1] : vector<8x8xf32> to vector<8xf32>
    %163 = vector.shape_cast %162 : vector<8xf32> to vector<8x1xf32>
    %164 = vector.broadcast %163 : vector<8x1xf32> to vector<8x8xf32>
    %165 = arith.subf %161, %164 : vector<8x8xf32>
    %166 = math.exp %165 : vector<8x8xf32>
    %cst_97 = arith.constant dense<0.000000e+00> : vector<8xf32>
    %167 = vector.multi_reduction <add>, %166, %cst_97 [1] : vector<8x8xf32> to vector<8xf32>
    %168 = vector.shape_cast %167 : vector<8xf32> to vector<8x1xf32>
    %169 = tpu.reciprocal %168 {approx = true} : vector<8x1xf32> -> vector<8x1xf32>
    %170 = vector.broadcast %169 : vector<8x1xf32> to vector<8x8xf32>
    %171 = arith.mulf %166, %170 : vector<8x8xf32>
    %172 = arith.truncf %171 : vector<8x8xf32> to vector<8x8xbf16>
    %cst_98 = arith.constant dense<0.000000e+00> : vector<8x32xf32>
    %173 = tpu.matmul %172, %157, %cst_98 {dimension_numbers = #tpu.dot_dimension_numbers<[1], [0], [0], [1], [0, 0, 1, 1], [], []>} : vector<8x8xbf16>, vector<8x32xbf16>, vector<8x32xf32> -> vector<8x32xf32>
    %174 = arith.truncf %173 : vector<8x32xf32> to vector<8x32xbf16>
    %c3_99 = arith.constant 3 : index
    %c0_100 = arith.constant 0 : index
    %c0_101 = arith.constant 0 : index
    %175 = vector.load %arg12[%c3_99, %c0_100, %c0_101] : memref<4x32x128xbf16, #tpu.memory_space<vmem>>, vector<1x32x128xbf16>
    %176 = vector.shape_cast %175 : vector<1x32x128xbf16> to vector<32x128xbf16>
    %cst_102 = arith.constant dense<0.000000e+00> : vector<8x128xf32>
    %177 = tpu.matmul %174, %176, %cst_102 {dimension_numbers = #tpu.dot_dimension_numbers<[1], [0], [0], [1], [0, 0, 1, 1], [], []>} : vector<8x32xbf16>, vector<32x128xbf16>, vector<8x128xf32> -> vector<8x128xf32>
    %178 = arith.addf %144, %177 : vector<8x128xf32>
    %179 = vector.broadcast %40 : vector<1x128xf32> to vector<8x128xf32>
    %180 = arith.addf %178, %179 : vector<8x128xf32>
    %181 = arith.addf %10, %180 : vector<8x128xf32>
    %c0_103 = arith.constant 0 : index
    %c0_104 = arith.constant 0 : index
    %182 = vector.load %arg14[%c0_103, %c0_104] : memref<1x128xf32, #tpu.memory_space<vmem>>, vector<1x128xf32>
    %c0_105 = arith.constant 0 : index
    %c0_106 = arith.constant 0 : index
    %183 = vector.load %arg15[%c0_105, %c0_106] : memref<1x128xf32, #tpu.memory_space<vmem>>, vector<1x128xf32>
    %cst_107 = arith.constant dense<0.000000e+00> : vector<8xf32>
    %184 = vector.multi_reduction <add>, %181, %cst_107 [1] : vector<8x128xf32> to vector<8xf32>
    %185 = vector.shape_cast %184 : vector<8xf32> to vector<8x1xf32>
    %cst_108 = arith.constant 1.280000e+02 : f32
    %186 = vector.broadcast %cst_108 : f32 to vector<8x1xf32>
    %187 = arith.divf %185, %186 : vector<8x1xf32>
    %188 = vector.broadcast %187 : vector<8x1xf32> to vector<8x128xf32>
    %189 = arith.subf %181, %188 : vector<8x128xf32>
    %190 = arith.mulf %189, %189 : vector<8x128xf32>
    %cst_109 = arith.constant dense<0.000000e+00> : vector<8xf32>
    %191 = vector.multi_reduction <add>, %190, %cst_109 [1] : vector<8x128xf32> to vector<8xf32>
    %192 = vector.shape_cast %191 : vector<8xf32> to vector<8x1xf32>
    %cst_110 = arith.constant 1.270000e+02 : f32
    %193 = vector.broadcast %cst_110 : f32 to vector<8x1xf32>
    %194 = arith.divf %192, %193 : vector<8x1xf32>
    %195 = math.sqrt %194 : vector<8x1xf32>
    %cst_111 = arith.constant 9.99999997E-7 : f32
    %196 = vector.broadcast %cst_111 : f32 to vector<8x1xf32>
    %197 = arith.addf %195, %196 : vector<8x1xf32>
    %198 = tpu.reciprocal %197 {approx = true} : vector<8x1xf32> -> vector<8x1xf32>
    %199 = vector.broadcast %187 : vector<8x1xf32> to vector<8x128xf32>
    %200 = arith.subf %181, %199 : vector<8x128xf32>
    %201 = vector.broadcast %182 : vector<1x128xf32> to vector<8x128xf32>
    %202 = arith.mulf %201, %200 : vector<8x128xf32>
    %203 = vector.broadcast %198 : vector<8x1xf32> to vector<8x128xf32>
    %204 = arith.mulf %202, %203 : vector<8x128xf32>
    %205 = vector.broadcast %183 : vector<1x128xf32> to vector<8x128xf32>
    %206 = arith.addf %204, %205 : vector<8x128xf32>
    %207 = arith.truncf %206 : vector<8x128xf32> to vector<8x128xbf16>
    %c0_112 = arith.constant 0 : index
    %c0_113 = arith.constant 0 : index
    %208 = vector.load %arg19[%c0_112, %c0_113] : memref<1x128xf32, #tpu.memory_space<vmem>>, vector<1x128xf32>
    %cst_114 = arith.constant 0.000000e+00 : f32
    %209 = vector.broadcast %cst_114 : f32 to vector<8x128xf32>
    %c0_115 = arith.constant 0 : index
    %c0_116 = arith.constant 0 : index
    %210 = vector.load %arg16[%c0_115, %c0_116] : memref<128x2048xbf16, #tpu.memory_space<vmem>>, vector<128x1024xbf16>
    %cst_117 = arith.constant dense<0.000000e+00> : vector<8x1024xf32>
    %211 = tpu.matmul %207, %210, %cst_117 {dimension_numbers = #tpu.dot_dimension_numbers<[1], [0], [0], [1], [0, 0, 1, 1], [], []>} : vector<8x128xbf16>, vector<128x1024xbf16>, vector<8x1024xf32> -> vector<8x1024xf32>
    %c0_118 = arith.constant 0 : index
    %c0_119 = arith.constant 0 : index
    %212 = vector.load %arg17[%c0_118, %c0_119] : memref<1x2048xf32, #tpu.memory_space<vmem>>, vector<1x1024xf32>
    %213 = vector.broadcast %212 : vector<1x1024xf32> to vector<8x1024xf32>
    %214 = arith.addf %211, %213 : vector<8x1024xf32>
    %cst_120 = arith.constant 0.000000e+00 : f32
    %215 = vector.broadcast %cst_120 : f32 to vector<8x1024xf32>
    %216 = arith.maximumf %214, %215 : vector<8x1024xf32>
    %217 = arith.truncf %216 : vector<8x1024xf32> to vector<8x1024xbf16>
    %c0_121 = arith.constant 0 : index
    %c0_122 = arith.constant 0 : index
    %218 = vector.load %arg18[%c0_121, %c0_122] : memref<2048x128xbf16, #tpu.memory_space<vmem>>, vector<1024x128xbf16>
    %cst_123 = arith.constant dense<0.000000e+00> : vector<8x128xf32>
    %219 = tpu.matmul %217, %218, %cst_123 {dimension_numbers = #tpu.dot_dimension_numbers<[1], [0], [0], [1], [0, 0, 1, 1], [], []>} : vector<8x1024xbf16>, vector<1024x128xbf16>, vector<8x128xf32> -> vector<8x128xf32>
    %220 = arith.addf %209, %219 : vector<8x128xf32>
    %c0_124 = arith.constant 0 : index
    %c1024 = arith.constant 1024 : index
    %221 = vector.load %arg16[%c0_124, %c1024] : memref<128x2048xbf16, #tpu.memory_space<vmem>>, vector<128x1024xbf16>
    %cst_125 = arith.constant dense<0.000000e+00> : vector<8x1024xf32>
    %222 = tpu.matmul %207, %221, %cst_125 {dimension_numbers = #tpu.dot_dimension_numbers<[1], [0], [0], [1], [0, 0, 1, 1], [], []>} : vector<8x128xbf16>, vector<128x1024xbf16>, vector<8x1024xf32> -> vector<8x1024xf32>
    %c0_126 = arith.constant 0 : index
    %c1024_127 = arith.constant 1024 : index
    %223 = vector.load %arg17[%c0_126, %c1024_127] : memref<1x2048xf32, #tpu.memory_space<vmem>>, vector<1x1024xf32>
    %224 = vector.broadcast %223 : vector<1x1024xf32> to vector<8x1024xf32>
    %225 = arith.addf %222, %224 : vector<8x1024xf32>
    %cst_128 = arith.constant 0.000000e+00 : f32
    %226 = vector.broadcast %cst_128 : f32 to vector<8x1024xf32>
    %227 = arith.maximumf %225, %226 : vector<8x1024xf32>
    %228 = arith.truncf %227 : vector<8x1024xf32> to vector<8x1024xbf16>
    %c1024_129 = arith.constant 1024 : index
    %c0_130 = arith.constant 0 : index
    %229 = vector.load %arg18[%c1024_129, %c0_130] : memref<2048x128xbf16, #tpu.memory_space<vmem>>, vector<1024x128xbf16>
    %cst_131 = arith.constant dense<0.000000e+00> : vector<8x128xf32>
    %230 = tpu.matmul %228, %229, %cst_131 {dimension_numbers = #tpu.dot_dimension_numbers<[1], [0], [0], [1], [0, 0, 1, 1], [], []>} : vector<8x1024xbf16>, vector<1024x128xbf16>, vector<8x128xf32> -> vector<8x128xf32>
    %231 = arith.addf %220, %230 : vector<8x128xf32>
    %232 = vector.broadcast %208 : vector<1x128xf32> to vector<8x128xf32>
    %233 = arith.addf %231, %232 : vector<8x128xf32>
    %234 = arith.addf %181, %233 : vector<8x128xf32>
    %235 = arith.truncf %234 : vector<8x128xf32> to vector<8x128xbf16>
    %c0_132 = arith.constant 0 : index
    %c0_133 = arith.constant 0 : index
    %c0_134 = arith.constant 0 : index
    %236 = vector.load %arg20[%c0_132, %c0_133, %c0_134] : memref<1x8x128xbf16, #tpu.memory_space<vmem>>, vector<1x8x128xbf16>
    %237 = vector.shape_cast %236 : vector<1x8x128xbf16> to vector<8x128xbf16>
    %238 = vector.shape_cast %235 : vector<8x128xbf16> to vector<1x8x128xbf16>
    tpu.vector_store %arg20[%c0_132, %c0_133, %c0_134], %238 {strides = array<i32>} : memref<1x8x128xbf16, #tpu.memory_space<vmem>>, vector<1x8x128xbf16>,
    return
  }
  func.func @transform_0(%arg0: i32, %arg1: i32) -> (i32, i32, i32) {
    %c0_i32 = arith.constant 0 : i32
    %c0_i32_0 = arith.constant 0 : i32
    %c0_i32_1 = arith.constant 0 : i32
    return %arg0, %c0_i32, %c0_i32_0 : i32, i32, i32
  }
  func.func @transform_1(%arg0: i32, %arg1: i32) -> (i32, i32, i32) {
    %c0_i32 = arith.constant 0 : i32
    %c0_i32_0 = arith.constant 0 : i32
    %c0_i32_1 = arith.constant 0 : i32
    return %arg0, %c0_i32, %c0_i32_0 : i32, i32, i32
  }
  func.func @transform_2(%arg0: i32, %arg1: i32) -> (i32, i32) {
    %c0_i32 = arith.constant 0 : i32
    %c0_i32_0 = arith.constant 0 : i32
    %c0_i32_1 = arith.constant 0 : i32
    return %c0_i32, %c0_i32_0 : i32, i32
  }
  func.func @transform_3(%arg0: i32, %arg1: i32) -> (i32, i32) {
    %c0_i32 = arith.constant 0 : i32
    %c0_i32_0 = arith.constant 0 : i32
    %c0_i32_1 = arith.constant 0 : i32
    return %c0_i32, %c0_i32_0 : i32, i32
  }
  func.func @transform_4(%arg0: i32, %arg1: i32) -> (i32, i32, i32) {
    %c0_i32 = arith.constant 0 : i32
    %c0_i32_0 = arith.constant 0 : i32
    %c0_i32_1 = arith.constant 0 : i32
    %c0_i32_2 = arith.constant 0 : i32
    return %c0_i32, %c0_i32_0, %c0_i32_1 : i32, i32, i32
  }
  func.func @transform_5(%arg0: i32, %arg1: i32) -> (i32, i32, i32) {
    %c0_i32 = arith.constant 0 : i32
    %c0_i32_0 = arith.constant 0 : i32
    %c0_i32_1 = arith.constant 0 : i32
    %c0_i32_2 = arith.constant 0 : i32
    return %c0_i32, %c0_i32_0, %c0_i32_1 : i32, i32, i32
  }
  func.func @transform_6(%arg0: i32, %arg1: i32) -> (i32, i32, i32) {
    %c0_i32 = arith.constant 0 : i32
    %c0_i32_0 = arith.constant 0 : i32
    %c0_i32_1 = arith.constant 0 : i32
    %c0_i32_2 = arith.constant 0 : i32
    return %c0_i32, %c0_i32_0, %c0_i32_1 : i32, i32, i32
  }
  func.func @transform_7(%arg0: i32, %arg1: i32) -> (i32, i32, i32) {
    %c0_i32 = arith.constant 0 : i32
    %c0_i32_0 = arith.constant 0 : i32
    %c0_i32_1 = arith.constant 0 : i32
    %c0_i32_2 = arith.constant 0 : i32
    return %c0_i32, %c0_i32_0, %c0_i32_1 : i32, i32, i32
  }
  func.func @transform_8(%arg0: i32, %arg1: i32) -> (i32, i32, i32) {
    %c0_i32 = arith.constant 0 : i32
    %c0_i32_0 = arith.constant 0 : i32
    %c0_i32_1 = arith.constant 0 : i32
    %c0_i32_2 = arith.constant 0 : i32
    return %c0_i32, %c0_i32_0, %c0_i32_1 : i32, i32, i32
  }
  func.func @transform_9(%arg0: i32, %arg1: i32) -> (i32, i32, i32) {
    %c0_i32 = arith.constant 0 : i32
    %c0_i32_0 = arith.constant 0 : i32
    %c0_i32_1 = arith.constant 0 : i32
    %c0_i32_2 = arith.constant 0 : i32
    return %c0_i32, %c0_i32_0, %c0_i32_1 : i32, i32, i32
  }
  func.func @transform_10(%arg0: i32, %arg1: i32) -> (i32, i32, i32) {
    %c0_i32 = arith.constant 0 : i32
    %c0_i32_0 = arith.constant 0 : i32
    %c0_i32_1 = arith.constant 0 : i32
    %c0_i32_2 = arith.constant 0 : i32
    return %c0_i32, %c0_i32_0, %c0_i32_1 : i32, i32, i32
  }
  func.func @transform_11(%arg0: i32, %arg1: i32) -> (i32, i32) {
    %c0_i32 = arith.constant 0 : i32
    %c0_i32_0 = arith.constant 0 : i32
    %c0_i32_1 = arith.constant 0 : i32
    return %c0_i32, %c0_i32_0 : i32, i32
  }
  func.func @transform_12(%arg0: i32, %arg1: i32) -> (i32, i32) {
    %c0_i32 = arith.constant 0 : i32
    %c0_i32_0 = arith.constant 0 : i32
    %c0_i32_1 = arith.constant 0 : i32
    return %c0_i32, %c0_i32_0 : i32, i32
  }
  func.func @transform_13(%arg0: i32, %arg1: i32) -> (i32, i32) {
    %c0_i32 = arith.constant 0 : i32
    %c0_i32_0 = arith.constant 0 : i32
    %c0_i32_1 = arith.constant 0 : i32
    return %c0_i32, %c0_i32_0 : i32, i32
  }
  func.func @transform_14(%arg0: i32, %arg1: i32) -> (i32, i32) {
    %c0_i32 = arith.constant 0 : i32
    %c0_i32_0 = arith.constant 0 : i32
    %c0_i32_1 = arith.constant 0 : i32
    return %c0_i32, %c0_i32_0 : i32, i32
  }
  func.func @transform_15(%arg0: i32, %arg1: i32) -> (i32, i32) {
    %c0_i32 = arith.constant 0 : i32
    %c0_i32_0 = arith.constant 0 : i32
    %c0_i32_1 = arith.constant 0 : i32
    return %c0_i32, %c0_i32_0 : i32, i32
  }
  func.func @transform_16(%arg0: i32, %arg1: i32) -> (i32, i32) {
    %c0_i32 = arith.constant 0 : i32
    %c0_i32_0 = arith.constant 0 : i32
    %c0_i32_1 = arith.constant 0 : i32
    return %c0_i32, %c0_i32_0 : i32, i32
  }
  func.func @transform_17(%arg0: i32, %arg1: i32) -> (i32, i32) {
    %c0_i32 = arith.constant 0 : i32
    %c0_i32_0 = arith.constant 0 : i32
    %c0_i32_1 = arith.constant 0 : i32
    return %c0_i32, %c0_i32_0 : i32, i32
  }
  func.func @transform_18(%arg0: i32, %arg1: i32) -> (i32, i32, i32) {
    %c0_i32 = arith.constant 0 : i32
    %c0_i32_0 = arith.constant 0 : i32
    return %arg0, %arg1, %c0_i32 : i32, i32, i32
  }
}

</mosaic_0001>

<llo_original>
// kernel: tpu_custom_call.1
$region0: #{tpu_custom_call.1}
  #allocation0 [shape = 'u32[]', space=smem, size = 0x4, offset = 0x4, fixed_abs, tag = 'smem constant byte address 0x4 - core index']
  #allocation1 [shape = 'u32[72,128]{1,0:T(1,128)}', space=vmem, size = 0x9000, scoped, tag = 'internal scratch']
  #allocation2 [shape = 'bf16[4,8,32]{2,1,0:T(8,128)(2,1)}', space=vmem, size = 0x2000, scoped, tag = 'scratch operand']
  #allocation3 [shape = 'bf16[4,8,32]{2,1,0:T(8,128)(2,1)}', space=vmem, size = 0x2000, scoped, tag = 'scratch operand']
  %s0 = inlined_call_operand.vmem [shape: bf16[2,8,128], index: 0, kind: input, shape index: {}]
  %s1 = inlined_call_operand.vmem [shape: f32[2,1,8], index: 1, kind: input, shape index: {}]
  %s2 = inlined_call_operand.vmem [shape: f32[1,128], index: 2, kind: input, shape index: {}]
  %s3 = inlined_call_operand.vmem [shape: f32[1,128], index: 3, kind: input, shape index: {}]
  %s4 = inlined_call_operand.vmem [shape: bf16[4,128,32], index: 4, kind: input, shape index: {}]
  %s5 = inlined_call_operand.vmem [shape: f32[4,1,32], index: 5, kind: input, shape index: {}]
  %s6 = inlined_call_operand.vmem [shape: bf16[4,128,32], index: 6, kind: input, shape index: {}]
  %s7 = inlined_call_operand.vmem [shape: f32[4,1,32], index: 7, kind: input, shape index: {}]
  %s8 = inlined_call_operand.vmem [shape: bf16[4,128,32], index: 8, kind: input, shape index: {}]
  %s9 = inlined_call_operand.vmem [shape: f32[4,1,32], index: 9, kind: input, shape index: {}]
  %s10 = inlined_call_operand.vmem [shape: bf16[4,32,128], index: 10, kind: input, shape index: {}]
  %s11 = inlined_call_operand.vmem [shape: f32[1,128], index: 11, kind: input, shape index: {}]
  %s12 = inlined_call_operand.vmem [shape: f32[1,128], index: 12, kind: input, shape index: {}]
  %s13 = inlined_call_operand.vmem [shape: f32[1,128], index: 13, kind: input, shape index: {}]
  %s14 = inlined_call_operand.hbm [shape: bf16[128,2048], index: 14, kind: input, shape index: {}]
  %s15 = inlined_call_operand.vmem [shape: f32[1,2048], index: 15, kind: input, shape index: {}]
  %s16 = inlined_call_operand.hbm [shape: bf16[2048,128], index: 16, kind: input, shape index: {}]
  %s17 = inlined_call_operand.vmem [shape: f32[1,128], index: 17, kind: input, shape index: {}]
  %s18 = inlined_call_operand.hbm [shape: bf16[2,8,128], index: 18, kind: output, shape index: {}]
  %s19 = sld [smem:[#allocation0]]
  $region117: #{tpu_custom_call.1} parent=0
    _
  %s21 = ssub.s32 1, %s19
  %s22 = scalar_select 0, %s21, %s19
  $region1: #{tpu_custom_call.1} parent=0
    #allocation4 [shape = 'u8[524288]{0}', space=vmem, size = 0x80000, scoped, tag = 'input window, operand 14, single buffered']
    #allocation5 [shape = 's32[2]{0}', space=sflag, size = 0x8, scoped, tag = 'scoped memory for tpu_custom_call.1']
    #allocation6 [shape = 's32[2]{0}', space=sflag, size = 0x8, scoped, tag = 'scoped memory for tpu_custom_call.1']
    #allocation7 [shape = 'u8[524288]{0}', space=vmem, size = 0x80000, scoped, tag = 'input window, operand 16, single buffered']
    #allocation8 [shape = 's32[1]{0}', space=sflag, size = 0x4, scoped, tag = 'scoped memory for tpu_custom_call.1']
    #allocation9 [shape = 'u8[4096]{0}', space=vmem, size = 0x1000, scoped, tag = 'output window, operand 0']
    %23 = vsyncpa [#allocation5], 0
    %24 = vsyncpa [#allocation8], 0
    %25 = vsyncpa [#allocation6], 0
    %s26 = scalar_lea.sflag [#allocation6], 1
    %27 = vsyncpa %s26, 0
    loop: start=0, step=1, limit=4
    $region2: #{tpu_custom_call.1} parent=1 // loop_pre_header
      _
    $region3: #{tpu_custom_call.1} parent=1 // loop_header
      %s29 = sphi 0, %s33
      %p30 = scmp.ge.s32.totalorder %s29, 4
      %s36 = sphi 0, %s48
      %s37 = sphi 0, %s44
      %s38 = sphi 0, %s36
      %s39 = sphi 0, %s37
      %s40 = sphi 0, %s38
      %s41 = sphi 0, %s39
      %s51 = sphi 0, %s53
      %s54 = sphi 0, %s51
      %s55 = sphi 0, %s54
      %s71 = sphi 0, %s55
      %s77 = sphi 0, %s79
      %s80 = sphi 0, %s77
      %s81 = sphi 0, %s80
      %s97 = sphi 0, %s81
      %s101 = sphi 0, %s101
      %s103 = sphi 0, %s101
      %s104 = sphi 0, %s103
      %s118 = sphi 0, %s104
      %s122 = sphi 0, %s122
      %s124 = sphi 0, %s122
      %s125 = sphi 0, %s124
      %s139 = sphi 0, %s125
      %s143 = sphi 0, %s143
      %s145 = sphi 0, %s143
      %s146 = sphi 0, %s145
      %s160 = sphi 0, %s146
      %s164 = sphi 0, %s164
      %s166 = sphi 0, %s164
      %s167 = sphi 0, %s166
      %s181 = sphi 0, %s167
      %s185 = sphi 0, %s185
      %s187 = sphi 0, %s185
      %s188 = sphi 0, %s187
      %s202 = sphi 0, %s188
      %s206 = sphi 0, %s206
      %s208 = sphi 0, %s206
      %s209 = sphi 0, %s208
      %s223 = sphi 0, %s209
      %s227 = sphi 0, %s227
      %s229 = sphi 0, %s227
      %s230 = sphi 0, %s229
      %s244 = sphi 0, %s230
      %s248 = sphi 0, %s248
      %s250 = sphi 0, %s248
      %s251 = sphi 0, %s250
      %s265 = sphi 0, %s251
      %s269 = sphi 0, %s269
      %s271 = sphi 0, %s269
      %s272 = sphi 0, %s271
      %s286 = sphi 0, %s272
      %s290 = sphi 0, %s290
      %s292 = sphi 0, %s290
      %s293 = sphi 0, %s292
      %s307 = sphi 0, %s293
      %s311 = sphi 0, %s311
      %s313 = sphi 0, %s311
      %s314 = sphi 0, %s313
      %s328 = sphi 0, %s314
      %s332 = sphi 0, %s332
      %s334 = sphi 0, %s332
      %s335 = sphi 0, %s334
      %s349 = sphi 0, %s335
      %s353 = sphi 0, %s353
      %s355 = sphi 0, %s353
      %s356 = sphi 0, %s355
      %s370 = sphi 0, %s356
      %s374 = sphi 0, %s374
      %s376 = sphi 0, %s374
      %s377 = sphi 0, %s376
      %s391 = sphi 0, %s377
      %s395 = sphi 0, %s395
      %s397 = sphi 0, %s395
      %s398 = sphi 0, %s397
      %s412 = sphi 0, %s398
      %s416 = sphi 0, %s416
      %s418 = sphi 0, %s416
      %s419 = sphi 0, %s418
      %s433 = sphi 0, %s419
      %s441 = sphi 0, %s443
      %s444 = sphi 0, %s441
      %s445 = sphi 0, %s444
      %s461 = sphi 0, %s445
    $region4: #{tpu_custom_call.1} parent=1 // loop_header_branch
      %32 = sbr.rel (%p30) target = $region8
    $region5: #{tpu_custom_call.1} parent=1 // loop_body
      %s34 = ssub.s32 %s29, 1
      %s35 = ssub.s32 %s29, 2
      %s42 = sadd.s32 1, %s37
      %p43 = scmp.ge.s32.totalorder %s42, 1
      %s44 = scalar_select %p43, 0, %s42
      %s45 = sadd.s32 1, %s36
      %s46 = scalar_select %p43, %s45, %s36
      %p47 = scmp.ge.s32.totalorder %s46, 2
      %s48 = scalar_select %p47, 0, %s46
      %s49 = ssub.s32 %s36, %s48
      %p50 = scmp.eq.s32.totalorder %s49, 0
      %s52 = sadd.s32 %s51, 1
      %s53 = scalar_select %p50, %s51, %s52
      %p56 = pneg %p50
      %p57 = scmp.eq.s32.totalorder %s29, 1
      %p58 = por %p56, %p57
      %p59 = scmp.ne.s32.totalorder %s51, %s54
      %p60 = scmp.eq.s32.totalorder %s29, 0
      %p61 = por %p59, %p60
      %p62 = scmp.ne.s32.totalorder %s51, %s54
      %p63 = scmp.eq.s32.totalorder %s34, 1
      %p64 = por %p62, %p63
      %p65 = scmp.ne.s32.totalorder %s54, %s55
      %p66 = scmp.eq.s32.totalorder %s34, 0
      %p67 = por %p65, %p66
      %p68 = scmp.ne.s32.totalorder %s54, %s55
      %p69 = scmp.eq.s32.totalorder %s35, 1
      %p70 = por %p68, %p69
      %p72 = scmp.ne.s32.totalorder %s55, %s71
      %p73 = scmp.eq.s32.totalorder %s35, 0
      %p74 = por %p72, %p73
      %s75 = ssub.s32 %s36, %s48
      %p76 = scmp.eq.s32.totalorder %s75, 0
      %s78 = sadd.s32 %s77, 1
      %s79 = scalar_select %p76, %s77, %s78
      %p82 = pneg %p76
      %p83 = scmp.eq.s32.totalorder %s29, 1
      %p84 = por %p82, %p83
      %p85 = scmp.ne.s32.totalorder %s77, %s80
      %p86 = scmp.eq.s32.totalorder %s29, 0
      %p87 = por %p85, %p86
      %p88 = scmp.ne.s32.totalorder %s77, %s80
      %p89 = scmp.eq.s32.totalorder %s34, 1
      %p90 = por %p88, %p89
      %p91 = scmp.ne.s32.totalorder %s80, %s81
      %p92 = scmp.eq.s32.totalorder %s34, 0
      %p93 = por %p91, %p92
      %p94 = scmp.ne.s32.totalorder %s80, %s81
      %p95 = scmp.eq.s32.totalorder %s35, 1
      %p96 = por %p94, %p95
      %p98 = scmp.ne.s32.totalorder %s81, %s97
      %p99 = scmp.eq.s32.totalorder %s35, 0
      %p100 = por %p98, %p99
      %s102 = sadd.s32 %s101, 1
      %p105 = scmp.eq.s32.totalorder %s29, 1
      %p106 = scmp.ne.s32.totalorder %s101, %s103
      %p107 = scmp.eq.s32.totalorder %s29, 0
      %p108 = por %p106, %p107
      %p109 = scmp.ne.s32.totalorder %s101, %s103
      %p110 = scmp.eq.s32.totalorder %s34, 1
      %p111 = por %p109, %p110
      %p112 = scmp.ne.s32.totalorder %s103, %s104
      %p113 = scmp.eq.s32.totalorder %s34, 0
      %p114 = por %p112, %p113
      %p115 = scmp.ne.s32.totalorder %s103, %s104
      %p116 = scmp.eq.s32.totalorder %s35, 1
      %p117 = por %p115, %p116
      %p119 = scmp.ne.s32.totalorder %s104, %s118
      %p120 = scmp.eq.s32.totalorder %s35, 0
      %p121 = por %p119, %p120
      %s123 = sadd.s32 %s122, 1
      %p126 = scmp.eq.s32.totalorder %s29, 1
      %p127 = scmp.ne.s32.totalorder %s122, %s124
      %p128 = scmp.eq.s32.totalorder %s29, 0
      %p129 = por %p127, %p128
      %p130 = scmp.ne.s32.totalorder %s122, %s124
      %p131 = scmp.eq.s32.totalorder %s34, 1
      %p132 = por %p130, %p131
      %p133 = scmp.ne.s32.totalorder %s124, %s125
      %p134 = scmp.eq.s32.totalorder %s34, 0
      %p135 = por %p133, %p134
      %p136 = scmp.ne.s32.totalorder %s124, %s125
      %p137 = scmp.eq.s32.totalorder %s35, 1
      %p138 = por %p136, %p137
      %p140 = scmp.ne.s32.totalorder %s125, %s139
      %p141 = scmp.eq.s32.totalorder %s35, 0
      %p142 = por %p140, %p141
      %s144 = sadd.s32 %s143, 1
      %p147 = scmp.eq.s32.totalorder %s29, 1
      %p148 = scmp.ne.s32.totalorder %s143, %s145
      %p149 = scmp.eq.s32.totalorder %s29, 0
      %p150 = por %p148, %p149
      %p151 = scmp.ne.s32.totalorder %s143, %s145
      %p152 = scmp.eq.s32.totalorder %s34, 1
      %p153 = por %p151, %p152
      %p154 = scmp.ne.s32.totalorder %s145, %s146
      %p155 = scmp.eq.s32.totalorder %s34, 0
      %p156 = por %p154, %p155
      %p157 = scmp.ne.s32.totalorder %s145, %s146
      %p158 = scmp.eq.s32.totalorder %s35, 1
      %p159 = por %p157, %p158
      %p161 = scmp.ne.s32.totalorder %s146, %s160
      %p162 = scmp.eq.s32.totalorder %s35, 0
      %p163 = por %p161, %p162
      %s165 = sadd.s32 %s164, 1
      %p168 = scmp.eq.s32.totalorder %s29, 1
      %p169 = scmp.ne.s32.totalorder %s164, %s166
      %p170 = scmp.eq.s32.totalorder %s29, 0
      %p171 = por %p169, %p170
      %p172 = scmp.ne.s32.totalorder %s164, %s166
      %p173 = scmp.eq.s32.totalorder %s34, 1
      %p174 = por %p172, %p173
      %p175 = scmp.ne.s32.totalorder %s166, %s167
      %p176 = scmp.eq.s32.totalorder %s34, 0
      %p177 = por %p175, %p176
      %p178 = scmp.ne.s32.totalorder %s166, %s167
      %p179 = scmp.eq.s32.totalorder %s35, 1
      %p180 = por %p178, %p179
      %p182 = scmp.ne.s32.totalorder %s167, %s181
      %p183 = scmp.eq.s32.totalorder %s35, 0
      %p184 = por %p182, %p183
      %s186 = sadd.s32 %s185, 1
      %p189 = scmp.eq.s32.totalorder %s29, 1
      %p190 = scmp.ne.s32.totalorder %s185, %s187
      %p191 = scmp.eq.s32.totalorder %s29, 0
      %p192 = por %p190, %p191
      %p193 = scmp.ne.s32.totalorder %s185, %s187
      %p194 = scmp.eq.s32.totalorder %s34, 1
      %p195 = por %p193, %p194
      %p196 = scmp.ne.s32.totalorder %s187, %s188
      %p197 = scmp.eq.s32.totalorder %s34, 0
      %p198 = por %p196, %p197
      %p199 = scmp.ne.s32.totalorder %s187, %s188
      %p200 = scmp.eq.s32.totalorder %s35, 1
      %p201 = por %p199, %p200
      %p203 = scmp.ne.s32.totalorder %s188, %s202
      %p204 = scmp.eq.s32.totalorder %s35, 0
      %p205 = por %p203, %p204
      %s207 = sadd.s32 %s206, 1
      %p210 = scmp.eq.s32.totalorder %s29, 1
      %p211 = scmp.ne.s32.totalorder %s206, %s208
      %p212 = scmp.eq.s32.totalorder %s29, 0
      %p213 = por %p211, %p212
      %p214 = scmp.ne.s32.totalorder %s206, %s208
      %p215 = scmp.eq.s32.totalorder %s34, 1
      %p216 = por %p214, %p215
      %p217 = scmp.ne.s32.totalorder %s208, %s209
      %p218 = scmp.eq.s32.totalorder %s34, 0
      %p219 = por %p217, %p218
      %p220 = scmp.ne.s32.totalorder %s208, %s209
      %p221 = scmp.eq.s32.totalorder %s35, 1
      %p222 = por %p220, %p221
      %p224 = scmp.ne.s32.totalorder %s209, %s223
      %p225 = scmp.eq.s32.totalorder %s35, 0
      %p226 = por %p224, %p225
      %s228 = sadd.s32 %s227, 1
      %p231 = scmp.eq.s32.totalorder %s29, 1
      %p232 = scmp.ne.s32.totalorder %s227, %s229
      %p233 = scmp.eq.s32.totalorder %s29, 0
      %p234 = por %p232, %p233
      %p235 = scmp.ne.s32.totalorder %s227, %s229
      %p236 = scmp.eq.s32.totalorder %s34, 1
      %p237 = por %p235, %p236
      %p238 = scmp.ne.s32.totalorder %s229, %s230
      %p239 = scmp.eq.s32.totalorder %s34, 0
      %p240 = por %p238, %p239
      %p241 = scmp.ne.s32.totalorder %s229, %s230
      %p242 = scmp.eq.s32.totalorder %s35, 1
      %p243 = por %p241, %p242
      %p245 = scmp.ne.s32.totalorder %s230, %s244
      %p246 = scmp.eq.s32.totalorder %s35, 0
      %p247 = por %p245, %p246
      %s249 = sadd.s32 %s248, 1
      %p252 = scmp.eq.s32.totalorder %s29, 1
      %p253 = scmp.ne.s32.totalorder %s248, %s250
      %p254 = scmp.eq.s32.totalorder %s29, 0
      %p255 = por %p253, %p254
      %p256 = scmp.ne.s32.totalorder %s248, %s250
      %p257 = scmp.eq.s32.totalorder %s34, 1
      %p258 = por %p256, %p257
      %p259 = scmp.ne.s32.totalorder %s250, %s251
      %p260 = scmp.eq.s32.totalorder %s34, 0
      %p261 = por %p259, %p260
      %p262 = scmp.ne.s32.totalorder %s250, %s251
      %p263 = scmp.eq.s32.totalorder %s35, 1
      %p264 = por %p262, %p263
      %p266 = scmp.ne.s32.totalorder %s251, %s265
      %p267 = scmp.eq.s32.totalorder %s35, 0
      %p268 = por %p266, %p267
      %s270 = sadd.s32 %s269, 1
      %p273 = scmp.eq.s32.totalorder %s29, 1
      %p274 = scmp.ne.s32.totalorder %s269, %s271
      %p275 = scmp.eq.s32.totalorder %s29, 0
      %p276 = por %p274, %p275
      %p277 = scmp.ne.s32.totalorder %s269, %s271
      %p278 = scmp.eq.s32.totalorder %s34, 1
      %p279 = por %p277, %p278
      %p280 = scmp.ne.s32.totalorder %s271, %s272
      %p281 = scmp.eq.s32.totalorder %s34, 0
      %p282 = por %p280, %p281
      %p283 = scmp.ne.s32.totalorder %s271, %s272
      %p284 = scmp.eq.s32.totalorder %s35, 1
      %p285 = por %p283, %p284
      %p287 = scmp.ne.s32.totalorder %s272, %s286
      %p288 = scmp.eq.s32.totalorder %s35, 0
      %p289 = por %p287, %p288
      %s291 = sadd.s32 %s290, 1
      %p294 = scmp.eq.s32.totalorder %s29, 1
      %p295 = scmp.ne.s32.totalorder %s290, %s292
      %p296 = scmp.eq.s32.totalorder %s29, 0
      %p297 = por %p295, %p296
      %p298 = scmp.ne.s32.totalorder %s290, %s292
      %p299 = scmp.eq.s32.totalorder %s34, 1
      %p300 = por %p298, %p299
      %p301 = scmp.ne.s32.totalorder %s292, %s293
      %p302 = scmp.eq.s32.totalorder %s34, 0
      %p303 = por %p301, %p302
      %p304 = scmp.ne.s32.totalorder %s292, %s293
      %p305 = scmp.eq.s32.totalorder %s35, 1
      %p306 = por %p304, %p305
      %p308 = scmp.ne.s32.totalorder %s293, %s307
      %p309 = scmp.eq.s32.totalorder %s35, 0
      %p310 = por %p308, %p309
      %s312 = sadd.s32 %s311, 1
      %p315 = scmp.eq.s32.totalorder %s29, 1
      %p316 = scmp.ne.s32.totalorder %s311, %s313
      %p317 = scmp.eq.s32.totalorder %s29, 0
      %p318 = por %p316, %p317
      %p319 = scmp.ne.s32.totalorder %s311, %s313
      %p320 = scmp.eq.s32.totalorder %s34, 1
      %p321 = por %p319, %p320
      %p322 = scmp.ne.s32.totalorder %s313, %s314
      %p323 = scmp.eq.s32.totalorder %s34, 0
      %p324 = por %p322, %p323
      %p325 = scmp.ne.s32.totalorder %s313, %s314
      %p326 = scmp.eq.s32.totalorder %s35, 1
      %p327 = por %p325, %p326
      %p329 = scmp.ne.s32.totalorder %s314, %s328
      %p330 = scmp.eq.s32.totalorder %s35, 0
      %p331 = por %p329, %p330
      %s333 = sadd.s32 %s332, 1
      %p336 = scmp.eq.s32.totalorder %s29, 1
      %p337 = scmp.ne.s32.totalorder %s332, %s334
      %p338 = scmp.eq.s32.totalorder %s29, 0
      %p339 = por %p337, %p338
      %p340 = scmp.ne.s32.totalorder %s332, %s334
      %p341 = scmp.eq.s32.totalorder %s34, 1
      %p342 = por %p340, %p341
      %p343 = scmp.ne.s32.totalorder %s334, %s335
      %p344 = scmp.eq.s32.totalorder %s34, 0
      %p345 = por %p343, %p344
      %p346 = scmp.ne.s32.totalorder %s334, %s335
      %p347 = scmp.eq.s32.totalorder %s35, 1
      %p348 = por %p346, %p347
      %p350 = scmp.ne.s32.totalorder %s335, %s349
      %p351 = scmp.eq.s32.totalorder %s35, 0
      %p352 = por %p350, %p351
      %s354 = sadd.s32 %s353, 1
      %p357 = scmp.eq.s32.totalorder %s29, 1
      %p358 = scmp.ne.s32.totalorder %s353, %s355
      %p359 = scmp.eq.s32.totalorder %s29, 0
      %p360 = por %p358, %p359
      %p361 = scmp.ne.s32.totalorder %s353, %s355
      %p362 = scmp.eq.s32.totalorder %s34, 1
      %p363 = por %p361, %p362
      %p364 = scmp.ne.s32.totalorder %s355, %s356
      %p365 = scmp.eq.s32.totalorder %s34, 0
      %p366 = por %p364, %p365
      %p367 = scmp.ne.s32.totalorder %s355, %s356
      %p368 = scmp.eq.s32.totalorder %s35, 1
      %p369 = por %p367, %p368
      %p371 = scmp.ne.s32.totalorder %s356, %s370
      %p372 = scmp.eq.s32.totalorder %s35, 0
      %p373 = por %p371, %p372
      %s375 = sadd.s32 %s374, 1
      %p378 = scmp.eq.s32.totalorder %s29, 1
      %p379 = scmp.ne.s32.totalorder %s374, %s376
      %p380 = scmp.eq.s32.totalorder %s29, 0
      %p381 = por %p379, %p380
      %p382 = scmp.ne.s32.totalorder %s374, %s376
      %p383 = scmp.eq.s32.totalorder %s34, 1
      %p384 = por %p382, %p383
      %p385 = scmp.ne.s32.totalorder %s376, %s377
      %p386 = scmp.eq.s32.totalorder %s34, 0
      %p387 = por %p385, %p386
      %p388 = scmp.ne.s32.totalorder %s376, %s377
      %p389 = scmp.eq.s32.totalorder %s35, 1
      %p390 = por %p388, %p389
      %p392 = scmp.ne.s32.totalorder %s377, %s391
      %p393 = scmp.eq.s32.totalorder %s35, 0
      %p394 = por %p392, %p393
      %s396 = sadd.s32 %s395, 1
      %p399 = scmp.eq.s32.totalorder %s29, 1
      %p400 = scmp.ne.s32.totalorder %s395, %s397
      %p401 = scmp.eq.s32.totalorder %s29, 0
      %p402 = por %p400, %p401
      %p403 = scmp.ne.s32.totalorder %s395, %s397
      %p404 = scmp.eq.s32.totalorder %s34, 1
      %p405 = por %p403, %p404
      %p406 = scmp.ne.s32.totalorder %s397, %s398
      %p407 = scmp.eq.s32.totalorder %s34, 0
      %p408 = por %p406, %p407
      %p409 = scmp.ne.s32.totalorder %s397, %s398
      %p410 = scmp.eq.s32.totalorder %s35, 1
      %p411 = por %p409, %p410
      %p413 = scmp.ne.s32.totalorder %s398, %s412
      %p414 = scmp.eq.s32.totalorder %s35, 0
      %p415 = por %p413, %p414
      %s417 = sadd.s32 %s416, 1
      %p420 = scmp.eq.s32.totalorder %s29, 1
      %p421 = scmp.ne.s32.totalorder %s416, %s418
      %p422 = scmp.eq.s32.totalorder %s29, 0
      %p423 = por %p421, %p422
      %p424 = scmp.ne.s32.totalorder %s416, %s418
      %p425 = scmp.eq.s32.totalorder %s34, 1
      %p426 = por %p424, %p425
      %p427 = scmp.ne.s32.totalorder %s418, %s419
      %p428 = scmp.eq.s32.totalorder %s34, 0
      %p429 = por %p427, %p428
      %p430 = scmp.ne.s32.totalorder %s418, %s419
      %p431 = scmp.eq.s32.totalorder %s35, 1
      %p432 = por %p430, %p431
      %p434 = scmp.ne.s32.totalorder %s419, %s433
      %p435 = scmp.eq.s32.totalorder %s35, 0
      %p436 = por %p434, %p435
      %s437 = ssub.s32 %s36, %s48
      %s438 = ssub.s32 %s37, %s44
      %s439 = sor.u32 %s437, %s438
      %p440 = scmp.eq.s32.totalorder %s439, 0
      %s442 = sadd.s32 %s441, 1
      %s443 = scalar_select %p440, %s441, %s442
      %p446 = pneg %p440
      %p447 = scmp.eq.s32.totalorder %s29, 1
      %p448 = por %p446, %p447
      %p449 = scmp.ne.s32.totalorder %s441, %s444
      %p450 = scmp.eq.s32.totalorder %s29, 0
      %p451 = por %p449, %p450
      %p452 = scmp.ne.s32.totalorder %s441, %s444
      %p453 = scmp.eq.s32.totalorder %s34, 1
      %p454 = por %p452, %p453
      %p455 = scmp.ne.s32.totalorder %s444, %s445
      %p456 = scmp.eq.s32.totalorder %s34, 0
      %p457 = por %p455, %p456
      %p458 = scmp.ne.s32.totalorder %s444, %s445
      %p459 = scmp.eq.s32.totalorder %s35, 1
      %p460 = por %p458, %p459
      %p462 = scmp.ne.s32.totalorder %s445, %s461
      %p463 = scmp.eq.s32.totalorder %s35, 0
      %p464 = por %p462, %p463
      %p465 = scmp.le.s32.totalorder 1, %s29
      %p466 = scmp.lt.s32.totalorder %s29, 3
      %p467 = pnand %p465, %p466
      %p468 = pneg %p467
      // Predicated region
      $region9: #{tpu_custom_call.1} parent=5 // pred_check
        _
      $region10: #{tpu_custom_call.1} parent=5 // pred_check_branch
        %470 = sbr.rel (%p467) target = $region12
      $region11: #{tpu_custom_call.1} parent=5 // pred_region
        %s471 = ssub.s32 %s29, 1
        // Predicated region
        $region13: #{tpu_custom_call.1} parent=11 // pred_check
          %p472 = pneg %p114
        $region14: #{tpu_custom_call.1} parent=11 // pred_check_branch
          %474 = sbr.rel (%p472) target = $region16
        $region15: #{tpu_custom_call.1} parent=11 // pred_region
          _
        $region16: #{tpu_custom_call.1} parent=11 // pred_fallthru
          _
        // Predicated region
        $region17: #{tpu_custom_call.1} parent=11 // pred_check
          %p475 = pneg %p135
        $region18: #{tpu_custom_call.1} parent=11 // pred_check_branch
          %477 = sbr.rel (%p475) target = $region20
        $region19: #{tpu_custom_call.1} parent=11 // pred_region
          _
        $region20: #{tpu_custom_call.1} parent=11 // pred_fallthru
          _
        // Predicated region
        $region21: #{tpu_custom_call.1} parent=11 // pred_check
          %p478 = pneg %p156
        $region22: #{tpu_custom_call.1} parent=11 // pred_check_branch
          %480 = sbr.rel (%p478) target = $region24
        $region23: #{tpu_custom_call.1} parent=11 // pred_region
          _
        $region24: #{tpu_custom_call.1} parent=11 // pred_fallthru
          _
        // Predicated region
        $region25: #{tpu_custom_call.1} parent=11 // pred_check
          %p481 = pneg %p177
        $region26: #{tpu_custom_call.1} parent=11 // pred_check_branch
          %483 = sbr.rel (%p481) target = $region28
        $region27: #{tpu_custom_call.1} parent=11 // pred_region
          _
        $region28: #{tpu_custom_call.1} parent=11 // pred_fallthru
          _
        // Predicated region
        $region29: #{tpu_custom_call.1} parent=11 // pred_check
          %p484 = pneg %p198
        $region30: #{tpu_custom_call.1} parent=11 // pred_check_branch
          %486 = sbr.rel (%p484) target = $region32
        $region31: #{tpu_custom_call.1} parent=11 // pred_region
          _
        $region32: #{tpu_custom_call.1} parent=11 // pred_fallthru
          _
        // Predicated region
        $region33: #{tpu_custom_call.1} parent=11 // pred_check
          %p487 = pneg %p219
        $region34: #{tpu_custom_call.1} parent=11 // pred_check_branch
          %489 = sbr.rel (%p487) target = $region36
        $region35: #{tpu_custom_call.1} parent=11 // pred_region
          _
        $region36: #{tpu_custom_call.1} parent=11 // pred_fallthru
          _
        // Predicated region
        $region37: #{tpu_custom_call.1} parent=11 // pred_check
          %p490 = pneg %p240
        $region38: #{tpu_custom_call.1} parent=11 // pred_check_branch
          %492 = sbr.rel (%p490) target = $region40
        $region39: #{tpu_custom_call.1} parent=11 // pred_region
          _
        $region40: #{tpu_custom_call.1} parent=11 // pred_fallthru
          _
        // Predicated region
        $region41: #{tpu_custom_call.1} parent=11 // pred_check
          %p493 = pneg %p261
        $region42: #{tpu_custom_call.1} parent=11 // pred_check_branch
          %495 = sbr.rel (%p493) target = $region44
        $region43: #{tpu_custom_call.1} parent=11 // pred_region
          _
        $region44: #{tpu_custom_call.1} parent=11 // pred_fallthru
          _
        // Predicated region
        $region45: #{tpu_custom_call.1} parent=11 // pred_check
          %p496 = pneg %p282
        $region46: #{tpu_custom_call.1} parent=11 // pred_check_branch
          %498 = sbr.rel (%p496) target = $region48
        $region47: #{tpu_custom_call.1} parent=11 // pred_region
          _
        $region48: #{tpu_custom_call.1} parent=11 // pred_fallthru
          _
        // Predicated region
        $region49: #{tpu_custom_call.1} parent=11 // pred_check
          %p499 = pneg %p303
        $region50: #{tpu_custom_call.1} parent=11 // pred_check_branch
          %501 = sbr.rel (%p499) target = $region52
        $region51: #{tpu_custom_call.1} parent=11 // pred_region
          _
        $region52: #{tpu_custom_call.1} parent=11 // pred_fallthru
          _
        // Predicated region
        $region53: #{tpu_custom_call.1} parent=11 // pred_check
          %p502 = pneg %p324
        $region54: #{tpu_custom_call.1} parent=11 // pred_check_branch
          %504 = sbr.rel (%p502) target = $region56
        $region55: #{tpu_custom_call.1} parent=11 // pred_region
          _
        $region56: #{tpu_custom_call.1} parent=11 // pred_fallthru
          _
        // Predicated region
        $region57: #{tpu_custom_call.1} parent=11 // pred_check
          %p505 = pneg %p345
        $region58: #{tpu_custom_call.1} parent=11 // pred_check_branch
          %507 = sbr.rel (%p505) target = $region60
        $region59: #{tpu_custom_call.1} parent=11 // pred_region
          _
        $region60: #{tpu_custom_call.1} parent=11 // pred_fallthru
          _
        // Predicated region
        $region61: #{tpu_custom_call.1} parent=11 // pred_check
          %p508 = pneg %p366
        $region62: #{tpu_custom_call.1} parent=11 // pred_check_branch
          %510 = sbr.rel (%p508) target = $region64
        $region63: #{tpu_custom_call.1} parent=11 // pred_region
          %512 = vsyncadd [#allocation5], 0
          %s513 = sshll.u32 %s14, 4
          %s514 = int_to_ptr.hbm [resolvable:$true] %s513
          %s515 = sshll.u32 [#allocation4], 4
          %s516 = int_to_ptr.vmem [resolvable:$true] %s515
          %521 = dma.hbm_to_vmem [thread:$0]  %s514, 16384, %s516, [#allocation5], 1024, 1024, 64
        $region64: #{tpu_custom_call.1} parent=11 // pred_fallthru
          _
        // Predicated region
        $region65: #{tpu_custom_call.1} parent=11 // pred_check
          %p522 = pneg %p387
        $region66: #{tpu_custom_call.1} parent=11 // pred_check_branch
          %524 = sbr.rel (%p522) target = $region68
        $region67: #{tpu_custom_call.1} parent=11 // pred_region
          _
        $region68: #{tpu_custom_call.1} parent=11 // pred_fallthru
          _
        // Predicated region
        $region69: #{tpu_custom_call.1} parent=11 // pred_check
          %p525 = pneg %p408
        $region70: #{tpu_custom_call.1} parent=11 // pred_check_branch
          %527 = sbr.rel (%p525) target = $region72
        $region71: #{tpu_custom_call.1} parent=11 // pred_region
          %529 = vsyncadd [#allocation8], 0
          %s530 = sshll.u32 %s16, 4
          %s531 = int_to_ptr.hbm [resolvable:$true] %s530
          %s532 = sshll.u32 [#allocation7], 4
          %s533 = int_to_ptr.vmem [resolvable:$true] %s532
          %538 = dma.hbm_to_vmem [thread:$0]  %s531, 16384, %s533, [#allocation8], 64, 64, 4
        $region72: #{tpu_custom_call.1} parent=11 // pred_fallthru
          _
        // Predicated region
        $region73: #{tpu_custom_call.1} parent=11 // pred_check
          %p539 = pneg %p429
        $region74: #{tpu_custom_call.1} parent=11 // pred_check_branch
          %541 = sbr.rel (%p539) target = $region76
        $region75: #{tpu_custom_call.1} parent=11 // pred_region
          _
        $region76: #{tpu_custom_call.1} parent=11 // pred_fallthru
          _
      $region12: #{tpu_custom_call.1} parent=5 // pred_fallthru
        _
      %p542 = scmp.lt.s32.totalorder %s29, 2
      // Predicated region
      $region77: #{tpu_custom_call.1} parent=5 // pred_check
        %p543 = pneg %p542
      $region78: #{tpu_custom_call.1} parent=5 // pred_check_branch
        %545 = sbr.rel (%p543) target = $region80
      $region79: #{tpu_custom_call.1} parent=5 // pred_region
        // Predicated region
        $region81: #{tpu_custom_call.1} parent=79 // pred_check
          %p546 = pneg %p61
        $region82: #{tpu_custom_call.1} parent=79 // pred_check_branch
          %548 = sbr.rel (%p546) target = $region84
        $region83: #{tpu_custom_call.1} parent=79 // pred_region
          %p549 = scmp.lt.s32.totalorder %s36, 1
          %s550 = scalar_select %p549, %s36, 1
          %s551 = smul.addr %s550, 4
          %s552 = scalar_lea.vmem %s0, %s551
        $region84: #{tpu_custom_call.1} parent=79 // pred_fallthru
          _
        // Predicated region
        $region85: #{tpu_custom_call.1} parent=79 // pred_check
          %p553 = pneg %p87
        $region86: #{tpu_custom_call.1} parent=79 // pred_check_branch
          %555 = sbr.rel (%p553) target = $region88
        $region87: #{tpu_custom_call.1} parent=79 // pred_region
          %p556 = scmp.lt.s32.totalorder %s36, 1
          %s557 = scalar_select %p556, %s36, 1
          %s558 = scalar_lea.vmem %s1, %s557
        $region88: #{tpu_custom_call.1} parent=79 // pred_fallthru
          _
      $region80: #{tpu_custom_call.1} parent=5 // pred_fallthru
        _
      %p559 = scmp.le.s32.totalorder 1, %s29
      %p560 = scmp.lt.s32.totalorder %s29, 3
      %p561 = pnand %p559, %p560
      %p562 = pneg %p561
      // Predicated region
      $region89: #{tpu_custom_call.1} parent=5 // pred_check
        _
      $region90: #{tpu_custom_call.1} parent=5 // pred_check_branch
        %564 = sbr.rel (%p561) target = $region92
      $region91: #{tpu_custom_call.1} parent=5 // pred_region
        %s565 = ssub.s32 %s29, 1
        // Predicated region
        $region93: #{tpu_custom_call.1} parent=91 // pred_check
          %p566 = pneg %p366
        $region94: #{tpu_custom_call.1} parent=91 // pred_check_branch
          %568 = sbr.rel (%p566) target = $region96
        $region95: #{tpu_custom_call.1} parent=91 // pred_region
          %570 = dma.done [#allocation5], 16384
        $region96: #{tpu_custom_call.1} parent=91 // pred_fallthru
          _
        // Predicated region
        $region97: #{tpu_custom_call.1} parent=91 // pred_check
          %p571 = pneg %p408
        $region98: #{tpu_custom_call.1} parent=91 // pred_check_branch
          %573 = sbr.rel (%p571) target = $region100
        $region99: #{tpu_custom_call.1} parent=91 // pred_region
          %575 = dma.done [#allocation8], 16384
        $region100: #{tpu_custom_call.1} parent=91 // pred_fallthru
          _
        %p576 = scmp.lt.s32.totalorder %s38, 1
        %s577 = scalar_select %p576, %s38, 1
        %s578 = smul.addr %s577, 4
        %s579 = scalar_lea.vmem %s0, %s578
        %p580 = pneg %p67
        %p581 = pneg %p64
        %p582 = scmp.lt.s32.totalorder %s38, 1
        %s583 = scalar_select %p582, %s38, 1
        %s584 = scalar_lea.vmem %s1, %s583
        %p585 = pneg %p93
        %p586 = pneg %p90
        %p587 = pneg %p114
        %p588 = pneg %p111
        %p589 = pneg %p135
        %p590 = pneg %p132
        %p591 = pneg %p156
        %p592 = pneg %p153
        %p593 = pneg %p177
        %p594 = pneg %p174
        %p595 = pneg %p198
        %p596 = pneg %p195
        %p597 = pneg %p219
        %p598 = pneg %p216
        %p599 = pneg %p240
        %p600 = pneg %p237
        %p601 = pneg %p261
        %p602 = pneg %p258
        %p603 = pneg %p282
        %p604 = pneg %p279
        %p605 = pneg %p303
        %p606 = pneg %p300
        %p607 = pneg %p324
        %p608 = pneg %p321
        %p609 = pneg %p345
        %p610 = pneg %p342
        %p611 = pneg %p366
        %p612 = pneg %p363
        %p613 = pneg %p387
        %p614 = pneg %p384
        %p615 = pneg %p408
        %p616 = pneg %p405
        %p617 = pneg %p429
        %p618 = pneg %p426
        %p619 = pneg %p457
        %p620 = pneg %p454
        %s621 = sand.u32 %s444, 1
        %s622 = scalar_lea.sflag [#allocation6], %s621
        %s623 = sand.u32 %s444, 1
        %s624 = smul.addr %s623, 4
        %s625 = scalar_lea.vmem [#allocation9], %s624
        %p626 = scmp.lt.s32.totalorder %s38, 1
        %s627 = scalar_select %p626, %s38, 1
        %s628 = smul.addr %s627, 4
        %s629 = scalar_lea.vmem %s0, %s628
        %p630 = scmp.lt.s32.totalorder %s38, 1
        %s631 = scalar_select %p630, %s38, 1
        %s632 = scalar_lea.vmem %s1, %s631
        %v634 = vld [vmem:[%s2] sm:$0x1]
        %v635 = vld [vmem:[%s3] sm:$0x1]
        %p636 = scmp.eq.s32.totalorder %s39, 0
        // Predicated region
        $region101: #{tpu_custom_call.1} parent=91 // pred_check
          %p637 = pneg %p636
        $region102: #{tpu_custom_call.1} parent=91 // pred_check_branch
          %639 = sbr.rel (%p637) target = $region104
        $region103: #{tpu_custom_call.1} parent=91 // pred_region
          %v640 = vld [vmem:[%s629] sm:$0xf]
          %v641 = vunpack.c.l.bf16 %v640
          %642 = vadd.xlane.f32.xlu0 %v641
          %v643 = vpop.xlane.xlu0 %642
          %v644 = vrcp.pop 128.0
          %v645 = vmul.f32 128.0, %v644
          %v646 = vsub.f32 1.0, %v645
          %v647 = vmul.f32 %v644, %v646
          %v648 = vadd.f32 %v644, %v647
          %vm649 = vweird.f32 %v644
          %v650 = vsel %vm649, %v644, %v648
          %v651 = vmul.f32 %v643, %v650
          %v652 = vsub.f32 %v641, %v651
          %v653 = vmul.f32 %v652, %v652
          %654 = vadd.xlane.f32.xlu0 %v653
          %v655 = vpop.xlane.xlu0 %654
          %v656 = vrcp.pop 127.0
          %v657 = vmul.f32 127.0, %v656
          %v658 = vsub.f32 1.0, %v657
          %v659 = vmul.f32 %v656, %v658
          %v660 = vadd.f32 %v656, %v659
          %vm661 = vweird.f32 %v656
          %v662 = vsel %vm661, %v656, %v660
          %v663 = vmul.f32 %v655, %v662
          %v664 = vrsqrt.pop %v663
          %v665 = vmul.f32 %v664, %v663
          %v666 = vmul.f32 %v665, %v664
          %v667 = vmul.f32 0.5, %v666
          %v668 = vsub.f32 1.5, %v667
          %v669 = vmul.f32 %v664, %v668
          %v670 = vmul.f32 %v663, %v669
          %vm671 = vcmp.eq.f32.partialorder %v663, inf
          %v672 = vsel %vm671, %v663, %v670
          %vm673 = vcmp.eq.f32.partialorder %v663, 0.0
          %v674 = vand.u32 %v663, 2147483648
          %v675 = vsel %vm673, %v674, %v672
          %v676 = vadd.f32 %v675, 1e-06
          %v677 = vrcp.pop %v676
          %v679 = vperm.slane %v634, 0
          %v681 = vmul.f32 %v679, %v652
          %v682 = vmul.f32 %v681, %v677
          %v684 = vperm.slane %v635, 0
          %v686 = vadd.f32 %v682, %v684
          %v687 = vpack.c.bf16 %v686, %v686
          %v688 = vld [vmem:[%s6] sm:$0xf]
          %v689 = vld [vmem:[%s6 + $0x4] sm:$0xf]
          %v690 = vld [vmem:[%s6 + $0x8] sm:$0xf]
          %v691 = vld [vmem:[%s6 + $0xc] sm:$0xf]
          %v692 = vld [vmem:[%s6 + $0x10] sm:$0xf]
          %v693 = vld [vmem:[%s6 + $0x14] sm:$0xf]
          %v694 = vld [vmem:[%s6 + $0x18] sm:$0xf]
          %v695 = vld [vmem:[%s6 + $0x1c] sm:$0xf]
          %v696 = vld [vmem:[%s6 + $0x20] sm:$0xf]
          %v697 = vld [vmem:[%s6 + $0x24] sm:$0xf]
          %v698 = vld [vmem:[%s6 + $0x28] sm:$0xf]
          %v699 = vld [vmem:[%s6 + $0x2c] sm:$0xf]
          %v700 = vld [vmem:[%s6 + $0x30] sm:$0xf]
          %v701 = vld [vmem:[%s6 + $0x34] sm:$0xf]
          %v702 = vld [vmem:[%s6 + $0x38] sm:$0xf]
          %v703 = vld [vmem:[%s6 + $0x3c] sm:$0xf]
          %v704 = vld [vmem:[%s7] sm:$0x1]
          %v706 = vperm.slane %v704, 0
          %v724 = vunpack.c.l.b16 %v688
          %v725 = vunpack.c.l.b16 %v689
          %v726 = vunpack.c.l.b16 %v690
          %v727 = vunpack.c.l.b16 %v691
          %v728 = vunpack.c.l.b16 %v692
          %v729 = vunpack.c.l.b16 %v693
          %v730 = vunpack.c.l.b16 %v694
          %v731 = vunpack.c.l.b16 %v695
          %v732 = vunpack.c.l.b16 %v696
          %v733 = vunpack.c.l.b16 %v697
          %v734 = vunpack.c.l.b16 %v698
          %v735 = vunpack.c.l.b16 %v699
          %v736 = vunpack.c.l.b16 %v700
          %v737 = vunpack.c.l.b16 %v701
          %v738 = vunpack.c.l.b16 %v702
          %v739 = vunpack.c.l.b16 %v703
          %v740 = vpack.c.b16 %v725, %v724
          %v741 = vpack.c.b16 %v727, %v726
          %v742 = vpack.c.b16 %v729, %v728
          %v743 = vpack.c.b16 %v731, %v730
          %v744 = vpack.c.b16 %v733, %v732
          %v745 = vpack.c.b16 %v735, %v734
          %v746 = vpack.c.b16 %v737, %v736
          %v747 = vpack.c.b16 %v739, %v738
          %756 = vmatpush.bf16.msra.mxu0 %v747
          %757 = vmatpush.bf16.msra.mxu0 %v746
          %758 = vmatpush.bf16.msra.mxu0 %v745
          %759 = vmatpush.bf16.msra.mxu0 %v744
          %760 = vmatpush.bf16.msra.mxu0 %v743
          %761 = vmatpush.bf16.msra.mxu0 %v742
          %762 = vmatpush.bf16.msra.mxu0 %v741
          %763 = vmatpush.bf16.msra.mxu0 %v740
          %764 = vmatmul.bf16.gmra.mxu0 %v687
          %v765 = vpop.f32.mrf.mxu0
          %v766 = vadd.f32 %v706, %v765
          %v767 = vpop.f32.mrf.mxu0
          %768 = vdwg.mxu0
          %v769 = vpack.c.bf16 %v766, %v766
          %vm770 = vcmask 257024
          %771 = vst.msk [vmem:[#allocation2] sm:$0xf] %vm770, %v769
          %v772 = vld [vmem:[%s8] sm:$0xf]
          %v773 = vld [vmem:[%s8 + $0x4] sm:$0xf]
          %v774 = vld [vmem:[%s8 + $0x8] sm:$0xf]
          %v775 = vld [vmem:[%s8 + $0xc] sm:$0xf]
          %v776 = vld [vmem:[%s8 + $0x10] sm:$0xf]
          %v777 = vld [vmem:[%s8 + $0x14] sm:$0xf]
          %v778 = vld [vmem:[%s8 + $0x18] sm:$0xf]
          %v779 = vld [vmem:[%s8 + $0x1c] sm:$0xf]
          %v780 = vld [vmem:[%s8 + $0x20] sm:$0xf]
          %v781 = vld [vmem:[%s8 + $0x24] sm:$0xf]
          %v782 = vld [vmem:[%s8 + $0x28] sm:$0xf]
          %v783 = vld [vmem:[%s8 + $0x2c] sm:$0xf]
          %v784 = vld [vmem:[%s8 + $0x30] sm:$0xf]
          %v785 = vld [vmem:[%s8 + $0x34] sm:$0xf]
          %v786 = vld [vmem:[%s8 + $0x38] sm:$0xf]
          %v787 = vld [vmem:[%s8 + $0x3c] sm:$0xf]
          %v788 = vld [vmem:[%s9] sm:$0x1]
          %v790 = vperm.slane %v788, 0
          %v808 = vunpack.c.l.b16 %v772
          %v809 = vunpack.c.l.b16 %v773
          %v810 = vunpack.c.l.b16 %v774
          %v811 = vunpack.c.l.b16 %v775
          %v812 = vunpack.c.l.b16 %v776
          %v813 = vunpack.c.l.b16 %v777
          %v814 = vunpack.c.l.b16 %v778
          %v815 = vunpack.c.l.b16 %v779
          %v816 = vunpack.c.l.b16 %v780
          %v817 = vunpack.c.l.b16 %v781
          %v818 = vunpack.c.l.b16 %v782
          %v819 = vunpack.c.l.b16 %v783
          %v820 = vunpack.c.l.b16 %v784
          %v821 = vunpack.c.l.b16 %v785
          %v822 = vunpack.c.l.b16 %v786
          %v823 = vunpack.c.l.b16 %v787
          %v824 = vpack.c.b16 %v809, %v808
          %v825 = vpack.c.b16 %v811, %v810
          %v826 = vpack.c.b16 %v813, %v812
          %v827 = vpack.c.b16 %v815, %v814
          %v828 = vpack.c.b16 %v817, %v816
          %v829 = vpack.c.b16 %v819, %v818
          %v830 = vpack.c.b16 %v821, %v820
          %v831 = vpack.c.b16 %v823, %v822
          %840 = vmatpush.bf16.msra.mxu0 %v831
          %841 = vmatpush.bf16.msra.mxu0 %v830
          %842 = vmatpush.bf16.msra.mxu0 %v829
          %843 = vmatpush.bf16.msra.mxu0 %v828
          %844 = vmatpush.bf16.msra.mxu0 %v827
          %845 = vmatpush.bf16.msra.mxu0 %v826
          %846 = vmatpush.bf16.msra.mxu0 %v825
          %847 = vmatpush.bf16.msra.mxu0 %v824
          %848 = vmatmul.bf16.gmra.mxu0 %v687
          %v849 = vpop.f32.mrf.mxu0
          %v850 = vadd.f32 %v790, %v849
          %v851 = vpop.f32.mrf.mxu0
          %852 = vdwg.mxu0
          %v853 = vpack.c.bf16 %v850, %v850
          %854 = vst.msk [vmem:[#allocation3] sm:$0xf] %vm770, %v853
          %s855 = scalar_lea.vmem %s6, 64
          %v856 = vld [vmem:[%s855] sm:$0xf]
          %v857 = vld [vmem:[%s855 + $0x4] sm:$0xf]
          %v858 = vld [vmem:[%s855 + $0x8] sm:$0xf]
          %v859 = vld [vmem:[%s855 + $0xc] sm:$0xf]
          %v860 = vld [vmem:[%s855 + $0x10] sm:$0xf]
          %v861 = vld [vmem:[%s855 + $0x14] sm:$0xf]
          %v862 = vld [vmem:[%s855 + $0x18] sm:$0xf]
          %v863 = vld [vmem:[%s855 + $0x1c] sm:$0xf]
          %v864 = vld [vmem:[%s855 + $0x20] sm:$0xf]
          %v865 = vld [vmem:[%s855 + $0x24] sm:$0xf]
          %v866 = vld [vmem:[%s855 + $0x28] sm:$0xf]
          %v867 = vld [vmem:[%s855 + $0x2c] sm:$0xf]
          %v868 = vld [vmem:[%s855 + $0x30] sm:$0xf]
          %v869 = vld [vmem:[%s855 + $0x34] sm:$0xf]
          %v870 = vld [vmem:[%s855 + $0x38] sm:$0xf]
          %v871 = vld [vmem:[%s855 + $0x3c] sm:$0xf]
          %s872 = scalar_lea.vmem %s7, 1
          %v873 = vld [vmem:[%s872] sm:$0x1]
          %v875 = vperm.slane %v873, 0
          %v893 = vunpack.c.l.b16 %v856
          %v894 = vunpack.c.l.b16 %v857
          %v895 = vunpack.c.l.b16 %v858
          %v896 = vunpack.c.l.b16 %v859
          %v897 = vunpack.c.l.b16 %v860
          %v898 = vunpack.c.l.b16 %v861
          %v899 = vunpack.c.l.b16 %v862
          %v900 = vunpack.c.l.b16 %v863
          %v901 = vunpack.c.l.b16 %v864
          %v902 = vunpack.c.l.b16 %v865
          %v903 = vunpack.c.l.b16 %v866
          %v904 = vunpack.c.l.b16 %v867
          %v905 = vunpack.c.l.b16 %v868
          %v906 = vunpack.c.l.b16 %v869
          %v907 = vunpack.c.l.b16 %v870
          %v908 = vunpack.c.l.b16 %v871
          %v909 = vpack.c.b16 %v894, %v893
          %v910 = vpack.c.b16 %v896, %v895
          %v911 = vpack.c.b16 %v898, %v897
          %v912 = vpack.c.b16 %v900, %v899
          %v913 = vpack.c.b16 %v902, %v901
          %v914 = vpack.c.b16 %v904, %v903
          %v915 = vpack.c.b16 %v906, %v905
          %v916 = vpack.c.b16 %v908, %v907
          %925 = vmatpush.bf16.msra.mxu0 %v916
          %926 = vmatpush.bf16.msra.mxu0 %v915
          %927 = vmatpush.bf16.msra.mxu0 %v914
          %928 = vmatpush.bf16.msra.mxu0 %v913
          %929 = vmatpush.bf16.msra.mxu0 %v912
          %930 = vmatpush.bf16.msra.mxu0 %v911
          %931 = vmatpush.bf16.msra.mxu0 %v910
          %932 = vmatpush.bf16.msra.mxu0 %v909
          %933 = vmatmul.bf16.gmra.mxu0 %v687
          %v934 = vpop.f32.mrf.mxu0
          %v935 = vadd.f32 %v875, %v934
          %v936 = vpop.f32.mrf.mxu0
          %937 = vdwg.mxu0
          %v938 = vpack.c.bf16 %v935, %v935
          %s939 = scalar_lea.vmem [#allocation2], 4
          %940 = vst.msk [vmem:[%s939] sm:$0xf] %vm770, %v938
          %s941 = scalar_lea.vmem %s8, 64
          %v942 = vld [vmem:[%s941] sm:$0xf]
          %v943 = vld [vmem:[%s941 + $0x4] sm:$0xf]
          %v944 = vld [vmem:[%s941 + $0x8] sm:$0xf]
          %v945 = vld [vmem:[%s941 + $0xc] sm:$0xf]
          %v946 = vld [vmem:[%s941 + $0x10] sm:$0xf]
          %v947 = vld [vmem:[%s941 + $0x14] sm:$0xf]
          %v948 = vld [vmem:[%s941 + $0x18] sm:$0xf]
          %v949 = vld [vmem:[%s941 + $0x1c] sm:$0xf]
          %v950 = vld [vmem:[%s941 + $0x20] sm:$0xf]
          %v951 = vld [vmem:[%s941 + $0x24] sm:$0xf]
          %v952 = vld [vmem:[%s941 + $0x28] sm:$0xf]
          %v953 = vld [vmem:[%s941 + $0x2c] sm:$0xf]
          %v954 = vld [vmem:[%s941 + $0x30] sm:$0xf]
          %v955 = vld [vmem:[%s941 + $0x34] sm:$0xf]
          %v956 = vld [vmem:[%s941 + $0x38] sm:$0xf]
          %v957 = vld [vmem:[%s941 + $0x3c] sm:$0xf]
          %s958 = scalar_lea.vmem %s9, 1
          %v959 = vld [vmem:[%s958] sm:$0x1]
          %v961 = vperm.slane %v959, 0
          %v979 = vunpack.c.l.b16 %v942
          %v980 = vunpack.c.l.b16 %v943
          %v981 = vunpack.c.l.b16 %v944
          %v982 = vunpack.c.l.b16 %v945
          %v983 = vunpack.c.l.b16 %v946
          %v984 = vunpack.c.l.b16 %v947
          %v985 = vunpack.c.l.b16 %v948
          %v986 = vunpack.c.l.b16 %v949
          %v987 = vunpack.c.l.b16 %v950
          %v988 = vunpack.c.l.b16 %v951
          %v989 = vunpack.c.l.b16 %v952
          %v990 = vunpack.c.l.b16 %v953
          %v991 = vunpack.c.l.b16 %v954
          %v992 = vunpack.c.l.b16 %v955
          %v993 = vunpack.c.l.b16 %v956
          %v994 = vunpack.c.l.b16 %v957
          %v995 = vpack.c.b16 %v980, %v979
          %v996 = vpack.c.b16 %v982, %v981
          %v997 = vpack.c.b16 %v984, %v983
          %v998 = vpack.c.b16 %v986, %v985
          %v999 = vpack.c.b16 %v988, %v987
          %v1000 = vpack.c.b16 %v990, %v989
          %v1001 = vpack.c.b16 %v992, %v991
          %v1002 = vpack.c.b16 %v994, %v993
          %1011 = vmatpush.bf16.msra.mxu0 %v1002
          %1012 = vmatpush.bf16.msra.mxu0 %v1001
          %1013 = vmatpush.bf16.msra.mxu0 %v1000
          %1014 = vmatpush.bf16.msra.mxu0 %v999
          %1015 = vmatpush.bf16.msra.mxu0 %v998
          %1016 = vmatpush.bf16.msra.mxu0 %v997
          %1017 = vmatpush.bf16.msra.mxu0 %v996
          %1018 = vmatpush.bf16.msra.mxu0 %v995
          %1019 = vmatmul.bf16.gmra.mxu0 %v687
          %v1020 = vpop.f32.mrf.mxu0
          %v1021 = vadd.f32 %v961, %v1020
          %v1022 = vpop.f32.mrf.mxu0
          %1023 = vdwg.mxu0
          %v1024 = vpack.c.bf16 %v1021, %v1021
          %s1025 = scalar_lea.vmem [#allocation3], 4
          %1026 = vst.msk [vmem:[%s1025] sm:$0xf] %vm770, %v1024
          %s1027 = scalar_lea.vmem %s6, 128
          %v1028 = vld [vmem:[%s1027] sm:$0xf]
          %v1029 = vld [vmem:[%s1027 + $0x4] sm:$0xf]
          %v1030 = vld [vmem:[%s1027 + $0x8] sm:$0xf]
          %v1031 = vld [vmem:[%s1027 + $0xc] sm:$0xf]
          %v1032 = vld [vmem:[%s1027 + $0x10] sm:$0xf]
          %v1033 = vld [vmem:[%s1027 + $0x14] sm:$0xf]
          %v1034 = vld [vmem:[%s1027 + $0x18] sm:$0xf]
          %v1035 = vld [vmem:[%s1027 + $0x1c] sm:$0xf]
          %v1036 = vld [vmem:[%s1027 + $0x20] sm:$0xf]
          %v1037 = vld [vmem:[%s1027 + $0x24] sm:$0xf]
          %v1038 = vld [vmem:[%s1027 + $0x28] sm:$0xf]
          %v1039 = vld [vmem:[%s1027 + $0x2c] sm:$0xf]
          %v1040 = vld [vmem:[%s1027 + $0x30] sm:$0xf]
          %v1041 = vld [vmem:[%s1027 + $0x34] sm:$0xf]
          %v1042 = vld [vmem:[%s1027 + $0x38] sm:$0xf]
          %v1043 = vld [vmem:[%s1027 + $0x3c] sm:$0xf]
          %s1044 = scalar_lea.vmem %s7, 2
          %v1045 = vld [vmem:[%s1044] sm:$0x1]
          %v1047 = vperm.slane %v1045, 0
          %v1065 = vunpack.c.l.b16 %v1028
          %v1066 = vunpack.c.l.b16 %v1029
          %v1067 = vunpack.c.l.b16 %v1030
          %v1068 = vunpack.c.l.b16 %v1031
          %v1069 = vunpack.c.l.b16 %v1032
          %v1070 = vunpack.c.l.b16 %v1033
          %v1071 = vunpack.c.l.b16 %v1034
          %v1072 = vunpack.c.l.b16 %v1035
          %v1073 = vunpack.c.l.b16 %v1036
          %v1074 = vunpack.c.l.b16 %v1037
          %v1075 = vunpack.c.l.b16 %v1038
          %v1076 = vunpack.c.l.b16 %v1039
          %v1077 = vunpack.c.l.b16 %v1040
          %v1078 = vunpack.c.l.b16 %v1041
          %v1079 = vunpack.c.l.b16 %v1042
          %v1080 = vunpack.c.l.b16 %v1043
          %v1081 = vpack.c.b16 %v1066, %v1065
          %v1082 = vpack.c.b16 %v1068, %v1067
          %v1083 = vpack.c.b16 %v1070, %v1069
          %v1084 = vpack.c.b16 %v1072, %v1071
          %v1085 = vpack.c.b16 %v1074, %v1073
          %v1086 = vpack.c.b16 %v1076, %v1075
          %v1087 = vpack.c.b16 %v1078, %v1077
          %v1088 = vpack.c.b16 %v1080, %v1079
          %1097 = vmatpush.bf16.msra.mxu0 %v1088
          %1098 = vmatpush.bf16.msra.mxu0 %v1087
          %1099 = vmatpush.bf16.msra.mxu0 %v1086
          %1100 = vmatpush.bf16.msra.mxu0 %v1085
          %1101 = vmatpush.bf16.msra.mxu0 %v1084
          %1102 = vmatpush.bf16.msra.mxu0 %v1083
          %1103 = vmatpush.bf16.msra.mxu0 %v1082
          %1104 = vmatpush.bf16.msra.mxu0 %v1081
          %1105 = vmatmul.bf16.gmra.mxu0 %v687
          %v1106 = vpop.f32.mrf.mxu0
          %v1107 = vadd.f32 %v1047, %v1106
          %v1108 = vpop.f32.mrf.mxu0
          %1109 = vdwg.mxu0
          %v1110 = vpack.c.bf16 %v1107, %v1107
          %s1111 = scalar_lea.vmem [#allocation2], 8
          %1112 = vst.msk [vmem:[%s1111] sm:$0xf] %vm770, %v1110
          %s1113 = scalar_lea.vmem %s8, 128
          %v1114 = vld [vmem:[%s1113] sm:$0xf]
          %v1115 = vld [vmem:[%s1113 + $0x4] sm:$0xf]
          %v1116 = vld [vmem:[%s1113 + $0x8] sm:$0xf]
          %v1117 = vld [vmem:[%s1113 + $0xc] sm:$0xf]
          %v1118 = vld [vmem:[%s1113 + $0x10] sm:$0xf]
          %v1119 = vld [vmem:[%s1113 + $0x14] sm:$0xf]
          %v1120 = vld [vmem:[%s1113 + $0x18] sm:$0xf]
          %v1121 = vld [vmem:[%s1113 + $0x1c] sm:$0xf]
          %v1122 = vld [vmem:[%s1113 + $0x20] sm:$0xf]
          %v1123 = vld [vmem:[%s1113 + $0x24] sm:$0xf]
          %v1124 = vld [vmem:[%s1113 + $0x28] sm:$0xf]
          %v1125 = vld [vmem:[%s1113 + $0x2c] sm:$0xf]
          %v1126 = vld [vmem:[%s1113 + $0x30] sm:$0xf]
          %v1127 = vld [vmem:[%s1113 + $0x34] sm:$0xf]
          %v1128 = vld [vmem:[%s1113 + $0x38] sm:$0xf]
          %v1129 = vld [vmem:[%s1113 + $0x3c] sm:$0xf]
          %s1130 = scalar_lea.vmem %s9, 2
          %v1131 = vld [vmem:[%s1130] sm:$0x1]
          %v1133 = vperm.slane %v1131, 0
          %v1151 = vunpack.c.l.b16 %v1114
          %v1152 = vunpack.c.l.b16 %v1115
          %v1153 = vunpack.c.l.b16 %v1116
          %v1154 = vunpack.c.l.b16 %v1117
          %v1155 = vunpack.c.l.b16 %v1118
          %v1156 = vunpack.c.l.b16 %v1119
          %v1157 = vunpack.c.l.b16 %v1120
          %v1158 = vunpack.c.l.b16 %v1121
          %v1159 = vunpack.c.l.b16 %v1122
          %v1160 = vunpack.c.l.b16 %v1123
          %v1161 = vunpack.c.l.b16 %v1124
          %v1162 = vunpack.c.l.b16 %v1125
          %v1163 = vunpack.c.l.b16 %v1126
          %v1164 = vunpack.c.l.b16 %v1127
          %v1165 = vunpack.c.l.b16 %v1128
          %v1166 = vunpack.c.l.b16 %v1129
          %v1167 = vpack.c.b16 %v1152, %v1151
          %v1168 = vpack.c.b16 %v1154, %v1153
          %v1169 = vpack.c.b16 %v1156, %v1155
          %v1170 = vpack.c.b16 %v1158, %v1157
          %v1171 = vpack.c.b16 %v1160, %v1159
          %v1172 = vpack.c.b16 %v1162, %v1161
          %v1173 = vpack.c.b16 %v1164, %v1163
          %v1174 = vpack.c.b16 %v1166, %v1165
          %1183 = vmatpush.bf16.msra.mxu0 %v1174
          %1184 = vmatpush.bf16.msra.mxu0 %v1173
          %1185 = vmatpush.bf16.msra.mxu0 %v1172
          %1186 = vmatpush.bf16.msra.mxu0 %v1171
          %1187 = vmatpush.bf16.msra.mxu0 %v1170
          %1188 = vmatpush.bf16.msra.mxu0 %v1169
          %1189 = vmatpush.bf16.msra.mxu0 %v1168
          %1190 = vmatpush.bf16.msra.mxu0 %v1167
          %1191 = vmatmul.bf16.gmra.mxu0 %v687
          %v1192 = vpop.f32.mrf.mxu0
          %v1193 = vadd.f32 %v1133, %v1192
          %v1194 = vpop.f32.mrf.mxu0
          %1195 = vdwg.mxu0
          %v1196 = vpack.c.bf16 %v1193, %v1193
          %s1197 = scalar_lea.vmem [#allocation3], 8
          %1198 = vst.msk [vmem:[%s1197] sm:$0xf] %vm770, %v1196
          %s1199 = scalar_lea.vmem %s6, 192
          %v1200 = vld [vmem:[%s1199] sm:$0xf]
          %v1201 = vld [vmem:[%s1199 + $0x4] sm:$0xf]
          %v1202 = vld [vmem:[%s1199 + $0x8] sm:$0xf]
          %v1203 = vld [vmem:[%s1199 + $0xc] sm:$0xf]
          %v1204 = vld [vmem:[%s1199 + $0x10] sm:$0xf]
          %v1205 = vld [vmem:[%s1199 + $0x14] sm:$0xf]
          %v1206 = vld [vmem:[%s1199 + $0x18] sm:$0xf]
          %v1207 = vld [vmem:[%s1199 + $0x1c] sm:$0xf]
          %v1208 = vld [vmem:[%s1199 + $0x20] sm:$0xf]
          %v1209 = vld [vmem:[%s1199 + $0x24] sm:$0xf]
          %v1210 = vld [vmem:[%s1199 + $0x28] sm:$0xf]
          %v1211 = vld [vmem:[%s1199 + $0x2c] sm:$0xf]
          %v1212 = vld [vmem:[%s1199 + $0x30] sm:$0xf]
          %v1213 = vld [vmem:[%s1199 + $0x34] sm:$0xf]
          %v1214 = vld [vmem:[%s1199 + $0x38] sm:$0xf]
          %v1215 = vld [vmem:[%s1199 + $0x3c] sm:$0xf]
          %s1216 = scalar_lea.vmem %s7, 3
          %v1217 = vld [vmem:[%s1216] sm:$0x1]
          %v1219 = vperm.slane %v1217, 0
          %v1237 = vunpack.c.l.b16 %v1200
          %v1238 = vunpack.c.l.b16 %v1201
          %v1239 = vunpack.c.l.b16 %v1202
          %v1240 = vunpack.c.l.b16 %v1203
          %v1241 = vunpack.c.l.b16 %v1204
          %v1242 = vunpack.c.l.b16 %v1205
          %v1243 = vunpack.c.l.b16 %v1206
          %v1244 = vunpack.c.l.b16 %v1207
          %v1245 = vunpack.c.l.b16 %v1208
          %v1246 = vunpack.c.l.b16 %v1209
          %v1247 = vunpack.c.l.b16 %v1210
          %v1248 = vunpack.c.l.b16 %v1211
          %v1249 = vunpack.c.l.b16 %v1212
          %v1250 = vunpack.c.l.b16 %v1213
          %v1251 = vunpack.c.l.b16 %v1214
          %v1252 = vunpack.c.l.b16 %v1215
          %v1253 = vpack.c.b16 %v1238, %v1237
          %v1254 = vpack.c.b16 %v1240, %v1239
          %v1255 = vpack.c.b16 %v1242, %v1241
          %v1256 = vpack.c.b16 %v1244, %v1243
          %v1257 = vpack.c.b16 %v1246, %v1245
          %v1258 = vpack.c.b16 %v1248, %v1247
          %v1259 = vpack.c.b16 %v1250, %v1249
          %v1260 = vpack.c.b16 %v1252, %v1251
          %1269 = vmatpush.bf16.msra.mxu0 %v1260
          %1270 = vmatpush.bf16.msra.mxu0 %v1259
          %1271 = vmatpush.bf16.msra.mxu0 %v1258
          %1272 = vmatpush.bf16.msra.mxu0 %v1257
          %1273 = vmatpush.bf16.msra.mxu0 %v1256
          %1274 = vmatpush.bf16.msra.mxu0 %v1255
          %1275 = vmatpush.bf16.msra.mxu0 %v1254
          %1276 = vmatpush.bf16.msra.mxu0 %v1253
          %1277 = vmatmul.bf16.gmra.mxu0 %v687
          %v1278 = vpop.f32.mrf.mxu0
          %v1279 = vadd.f32 %v1219, %v1278
          %v1280 = vpop.f32.mrf.mxu0
          %1281 = vdwg.mxu0
          %v1282 = vpack.c.bf16 %v1279, %v1279
          %s1283 = scalar_lea.vmem [#allocation2], 12
          %1284 = vst.msk [vmem:[%s1283] sm:$0xf] %vm770, %v1282
          %s1285 = scalar_lea.vmem %s8, 192
          %v1286 = vld [vmem:[%s1285] sm:$0xf]
          %v1287 = vld [vmem:[%s1285 + $0x4] sm:$0xf]
          %v1288 = vld [vmem:[%s1285 + $0x8] sm:$0xf]
          %v1289 = vld [vmem:[%s1285 + $0xc] sm:$0xf]
          %v1290 = vld [vmem:[%s1285 + $0x10] sm:$0xf]
          %v1291 = vld [vmem:[%s1285 + $0x14] sm:$0xf]
          %v1292 = vld [vmem:[%s1285 + $0x18] sm:$0xf]
          %v1293 = vld [vmem:[%s1285 + $0x1c] sm:$0xf]
          %v1294 = vld [vmem:[%s1285 + $0x20] sm:$0xf]
          %v1295 = vld [vmem:[%s1285 + $0x24] sm:$0xf]
          %v1296 = vld [vmem:[%s1285 + $0x28] sm:$0xf]
          %v1297 = vld [vmem:[%s1285 + $0x2c] sm:$0xf]
          %v1298 = vld [vmem:[%s1285 + $0x30] sm:$0xf]
          %v1299 = vld [vmem:[%s1285 + $0x34] sm:$0xf]
          %v1300 = vld [vmem:[%s1285 + $0x38] sm:$0xf]
          %v1301 = vld [vmem:[%s1285 + $0x3c] sm:$0xf]
          %s1302 = scalar_lea.vmem %s9, 3
          %v1303 = vld [vmem:[%s1302] sm:$0x1]
          %v1305 = vperm.slane %v1303, 0
          %v1323 = vunpack.c.l.b16 %v1286
          %v1324 = vunpack.c.l.b16 %v1287
          %v1325 = vunpack.c.l.b16 %v1288
          %v1326 = vunpack.c.l.b16 %v1289
          %v1327 = vunpack.c.l.b16 %v1290
          %v1328 = vunpack.c.l.b16 %v1291
          %v1329 = vunpack.c.l.b16 %v1292
          %v1330 = vunpack.c.l.b16 %v1293
          %v1331 = vunpack.c.l.b16 %v1294
          %v1332 = vunpack.c.l.b16 %v1295
          %v1333 = vunpack.c.l.b16 %v1296
          %v1334 = vunpack.c.l.b16 %v1297
          %v1335 = vunpack.c.l.b16 %v1298
          %v1336 = vunpack.c.l.b16 %v1299
          %v1337 = vunpack.c.l.b16 %v1300
          %v1338 = vunpack.c.l.b16 %v1301
          %v1339 = vpack.c.b16 %v1324, %v1323
          %v1340 = vpack.c.b16 %v1326, %v1325
          %v1341 = vpack.c.b16 %v1328, %v1327
          %v1342 = vpack.c.b16 %v1330, %v1329
          %v1343 = vpack.c.b16 %v1332, %v1331
          %v1344 = vpack.c.b16 %v1334, %v1333
          %v1345 = vpack.c.b16 %v1336, %v1335
          %v1346 = vpack.c.b16 %v1338, %v1337
          %1355 = vmatpush.bf16.msra.mxu0 %v1346
          %1356 = vmatpush.bf16.msra.mxu0 %v1345
          %1357 = vmatpush.bf16.msra.mxu0 %v1344
          %1358 = vmatpush.bf16.msra.mxu0 %v1343
          %1359 = vmatpush.bf16.msra.mxu0 %v1342
          %1360 = vmatpush.bf16.msra.mxu0 %v1341
          %1361 = vmatpush.bf16.msra.mxu0 %v1340
          %1362 = vmatpush.bf16.msra.mxu0 %v1339
          %1363 = vmatmul.bf16.gmra.mxu0 %v687
          %v1364 = vpop.f32.mrf.mxu0
          %v1365 = vadd.f32 %v1305, %v1364
          %v1366 = vpop.f32.mrf.mxu0
          %1367 = vdwg.mxu0
          %v1368 = vpack.c.bf16 %v1365, %v1365
          %s1369 = scalar_lea.vmem [#allocation3], 12
          %1370 = vst.msk [vmem:[%s1369] sm:$0xf] %vm770, %v1368
        $region104: #{tpu_custom_call.1} parent=91 // pred_fallthru
          _
        %s1371 = smul.u32 %s39, 8
        %s1372 = sshra.s32 %s1371, 3
        %s1373 = sand.u32 %s1371, 7
        %s1374 = smul.addr %s1372, 4
        %s1375 = scalar_lea.vmem %s629, %s1374
        %v1376 = vld [vmem:[%s1375] sm:$0xf]
        %v1377 = vunpack.c.l.bf16 %v1376
        %v1378 = vld [vmem:[%s632] sm:$0x1]
        %v1379 = vsub.f32 %v1378, 1.0
        %v1380 = vmul.f32 %v1379, 1e+09
        %1381 = vadd.xlane.f32.xlu0 %v1377
        %v1382 = vpop.xlane.xlu0 %1381
        %v1383 = vrcp.pop 128.0
        %v1384 = vmul.f32 128.0, %v1383
        %v1385 = vsub.f32 1.0, %v1384
        %v1386 = vmul.f32 %v1383, %v1385
        %v1387 = vadd.f32 %v1383, %v1386
        %vm1388 = vweird.f32 %v1383
        %v1389 = vsel %vm1388, %v1383, %v1387
        %v1390 = vmul.f32 %v1382, %v1389
        %v1391 = vsub.f32 %v1377, %v1390
        %v1392 = vmul.f32 %v1391, %v1391
        %1393 = vadd.xlane.f32.xlu0 %v1392
        %v1394 = vpop.xlane.xlu0 %1393
        %v1395 = vrcp.pop 127.0
        %v1396 = vmul.f32 127.0, %v1395
        %v1397 = vsub.f32 1.0, %v1396
        %v1398 = vmul.f32 %v1395, %v1397
        %v1399 = vadd.f32 %v1395, %v1398
        %vm1400 = vweird.f32 %v1395
        %v1401 = vsel %vm1400, %v1395, %v1399
        %v1402 = vmul.f32 %v1394, %v1401
        %v1403 = vrsqrt.pop %v1402
        %v1404 = vmul.f32 %v1403, %v1402
        %v1405 = vmul.f32 %v1404, %v1403
        %v1406 = vmul.f32 0.5, %v1405
        %v1407 = vsub.f32 1.5, %v1406
        %v1408 = vmul.f32 %v1403, %v1407
        %v1409 = vmul.f32 %v1402, %v1408
        %vm1410 = vcmp.eq.f32.partialorder %v1402, inf
        %v1411 = vsel %vm1410, %v1402, %v1409
        %vm1412 = vcmp.eq.f32.partialorder %v1402, 0.0
        %v1413 = vand.u32 %v1402, 2147483648
        %v1414 = vsel %vm1412, %v1413, %v1411
        %v1415 = vadd.f32 %v1414, 1e-06
        %v1416 = vrcp.pop %v1415
        %v1418 = vperm.slane %v634, 0
        %v1420 = vmul.f32 %v1418, %v1391
        %v1421 = vmul.f32 %v1420, %v1416
        %v1423 = vperm.slane %v635, 0
        %v1425 = vadd.f32 %v1421, %v1423
        %v1426 = vld [vmem:[%s11] sm:$0x1]
        %v1427 = vpack.c.bf16 %v1425, %v1425
        %v1428 = vld [vmem:[%s4] sm:$0xf]
        %v1429 = vld [vmem:[%s4 + $0x4] sm:$0xf]
        %v1430 = vld [vmem:[%s4 + $0x8] sm:$0xf]
        %v1431 = vld [vmem:[%s4 + $0xc] sm:$0xf]
        %v1432 = vld [vmem:[%s4 + $0x10] sm:$0xf]
        %v1433 = vld [vmem:[%s4 + $0x14] sm:$0xf]
        %v1434 = vld [vmem:[%s4 + $0x18] sm:$0xf]
        %v1435 = vld [vmem:[%s4 + $0x1c] sm:$0xf]
        %v1436 = vld [vmem:[%s4 + $0x20] sm:$0xf]
        %v1437 = vld [vmem:[%s4 + $0x24] sm:$0xf]
        %v1438 = vld [vmem:[%s4 + $0x28] sm:$0xf]
        %v1439 = vld [vmem:[%s4 + $0x2c] sm:$0xf]
        %v1440 = vld [vmem:[%s4 + $0x30] sm:$0xf]
        %v1441 = vld [vmem:[%s4 + $0x34] sm:$0xf]
        %v1442 = vld [vmem:[%s4 + $0x38] sm:$0xf]
        %v1443 = vld [vmem:[%s4 + $0x3c] sm:$0xf]
        %v1444 = vld [vmem:[%s5] sm:$0x1]
        %v1446 = vperm.slane %v1444, 0
        %v1464 = vunpack.c.l.b16 %v1428
        %v1465 = vunpack.c.l.b16 %v1429
        %v1466 = vunpack.c.l.b16 %v1430
        %v1467 = vunpack.c.l.b16 %v1431
        %v1468 = vunpack.c.l.b16 %v1432
        %v1469 = vunpack.c.l.b16 %v1433
        %v1470 = vunpack.c.l.b16 %v1434
        %v1471 = vunpack.c.l.b16 %v1435
        %v1472 = vunpack.c.l.b16 %v1436
        %v1473 = vunpack.c.l.b16 %v1437
        %v1474 = vunpack.c.l.b16 %v1438
        %v1475 = vunpack.c.l.b16 %v1439
        %v1476 = vunpack.c.l.b16 %v1440
        %v1477 = vunpack.c.l.b16 %v1441
        %v1478 = vunpack.c.l.b16 %v1442
        %v1479 = vunpack.c.l.b16 %v1443
        %v1480 = vpack.c.b16 %v1465, %v1464
        %v1481 = vpack.c.b16 %v1467, %v1466
        %v1482 = vpack.c.b16 %v1469, %v1468
        %v1483 = vpack.c.b16 %v1471, %v1470
        %v1484 = vpack.c.b16 %v1473, %v1472
        %v1485 = vpack.c.b16 %v1475, %v1474
        %v1486 = vpack.c.b16 %v1477, %v1476
        %v1487 = vpack.c.b16 %v1479, %v1478
        %1496 = vmatpush.bf16.msra.mxu0 %v1487
        %1497 = vmatpush.bf16.msra.mxu0 %v1486
        %1498 = vmatpush.bf16.msra.mxu0 %v1485
        %1499 = vmatpush.bf16.msra.mxu0 %v1484
        %1500 = vmatpush.bf16.msra.mxu0 %v1483
        %1501 = vmatpush.bf16.msra.mxu0 %v1482
        %1502 = vmatpush.bf16.msra.mxu0 %v1481
        %1503 = vmatpush.bf16.msra.mxu0 %v1480
        %1504 = vmatmul.bf16.gmra.mxu0 %v1427
        %v1505 = vpop.f32.mrf.mxu0
        %v1506 = vadd.f32 %v1446, %v1505
        %v1507 = vpop.f32.mrf.mxu0
        %1508 = vdwg.mxu0
        %v1509 = vmul.f32 %v1506, 0.17677669
        %v1510 = vld [vmem:[#allocation2] sm:$0xf]
        %v1511 = vld [vmem:[#allocation3] sm:$0xf]
        %v1512 = vpack.c.bf16 %v1509, %v1509
        %v1514 = vperm.slane %v1380, 0
        %vm1516 = vcmask 261120
        %v1518 = vsel %vm1516, %v1512, 0
        %v1521 = vsel %vm1516, %v1510, 0
        %1523 = vmatpush.bf16.xpose.msra.mxu0 0
        %1524 = vmatpush.bf16.xpose.msra.mxu0 0
        %1525 = vmatpush.bf16.xpose.msra.mxu0 0
        %1526 = vmatpush.bf16.xpose.msra.mxu0 0
        %1527 = vmatpush.bf16.xpose.msra.mxu0 0
        %1528 = vmatpush.bf16.xpose.msra.mxu0 0
        %1529 = vmatpush.bf16.xpose.msra.mxu0 0
        %1530 = vmatpush.bf16.xpose.msra.mxu0 %v1521
        %1531 = vmatmul.bf16.gmra.mxu0 %v1518
        %v1532 = vpop.f32.mrf.mxu0
        %v1533 = vadd.f32 %v1514, %v1532
        %v1534 = vpop.f32.mrf.mxu0
        %1535 = vdwg.mxu0
        %vm1536 = vcmask 64512
        %v1537 = vsel %vm1536, %v1533, -inf
        %1538 = vmax.xlane.f32.xlu0 %v1537
        %v1539 = vpop.xlane.xlu0 %1538
        %v1540 = vsub.f32 %v1533, %v1539
        %v1541 = vmul.f32 %v1540, 1.442695
        %v1542 = vpow.pop %v1541
        %v1543 = vsel %vm1536, %v1542, 0.0
        %1544 = vadd.xlane.f32.xlu0 %v1543
        %v1545 = vpop.xlane.xlu0 %1544
        %v1546 = vrcp.pop %v1545
        %v1547 = vmul.f32 %v1542, %v1546
        %v1548 = vpack.c.bf16 %v1547, %v1547
        %v1550 = vsel %vm1536, %v1548, 0
        %vm1552 = vcmask 1043456
        %v1554 = vsel %vm1552, %v1511, 0
        %1556 = vmatpush.bf16.msra.mxu0 0
        %1557 = vmatpush.bf16.msra.mxu0 0
        %1558 = vmatpush.bf16.msra.mxu0 0
        %1559 = vmatpush.bf16.msra.mxu0 0
        %1560 = vmatpush.bf16.msra.mxu0 0
        %1561 = vmatpush.bf16.msra.mxu0 0
        %1562 = vmatpush.bf16.msra.mxu0 0
        %1563 = vmatpush.bf16.msra.mxu0 %v1554
        %1564 = vmatmul.bf16.gmra.mxu0 %v1550
        %v1565 = vpop.f32.mrf.mxu0
        %v1566 = vadd.f32 0.0, %v1565
        %v1567 = vpop.f32.mrf.mxu0
        %1568 = vdwg.mxu0
        %v1569 = vpack.c.bf16 %v1566, %v1566
        %v1570 = vld [vmem:[%s10] sm:$0xf]
        %v1571 = vld [vmem:[%s10 + $0x4] sm:$0xf]
        %v1572 = vld [vmem:[%s10 + $0x8] sm:$0xf]
        %v1573 = vld [vmem:[%s10 + $0xc] sm:$0xf]
        %s1574 = scalar_lea.vmem %s4, 64
        %v1575 = vld [vmem:[%s1574] sm:$0xf]
        %v1576 = vld [vmem:[%s1574 + $0x4] sm:$0xf]
        %v1577 = vld [vmem:[%s1574 + $0x8] sm:$0xf]
        %v1578 = vld [vmem:[%s1574 + $0xc] sm:$0xf]
        %v1579 = vld [vmem:[%s1574 + $0x10] sm:$0xf]
        %v1580 = vld [vmem:[%s1574 + $0x14] sm:$0xf]
        %v1581 = vld [vmem:[%s1574 + $0x18] sm:$0xf]
        %v1582 = vld [vmem:[%s1574 + $0x1c] sm:$0xf]
        %v1583 = vld [vmem:[%s1574 + $0x20] sm:$0xf]
        %v1584 = vld [vmem:[%s1574 + $0x24] sm:$0xf]
        %v1585 = vld [vmem:[%s1574 + $0x28] sm:$0xf]
        %v1586 = vld [vmem:[%s1574 + $0x2c] sm:$0xf]
        %v1587 = vld [vmem:[%s1574 + $0x30] sm:$0xf]
        %v1588 = vld [vmem:[%s1574 + $0x34] sm:$0xf]
        %v1589 = vld [vmem:[%s1574 + $0x38] sm:$0xf]
        %v1590 = vld [vmem:[%s1574 + $0x3c] sm:$0xf]
        %s1591 = scalar_lea.vmem %s5, 1
        %v1592 = vld [vmem:[%s1591] sm:$0x1]
        %v1594 = vperm.slane %v1592, 0
        %v1612 = vunpack.c.l.b16 %v1575
        %v1613 = vunpack.c.l.b16 %v1576
        %v1614 = vunpack.c.l.b16 %v1577
        %v1615 = vunpack.c.l.b16 %v1578
        %v1616 = vunpack.c.l.b16 %v1579
        %v1617 = vunpack.c.l.b16 %v1580
        %v1618 = vunpack.c.l.b16 %v1581
        %v1619 = vunpack.c.l.b16 %v1582
        %v1620 = vunpack.c.l.b16 %v1583
        %v1621 = vunpack.c.l.b16 %v1584
        %v1622 = vunpack.c.l.b16 %v1585
        %v1623 = vunpack.c.l.b16 %v1586
        %v1624 = vunpack.c.l.b16 %v1587
        %v1625 = vunpack.c.l.b16 %v1588
        %v1626 = vunpack.c.l.b16 %v1589
        %v1627 = vunpack.c.l.b16 %v1590
        %v1628 = vpack.c.b16 %v1613, %v1612
        %v1629 = vpack.c.b16 %v1615, %v1614
        %v1630 = vpack.c.b16 %v1617, %v1616
        %v1631 = vpack.c.b16 %v1619, %v1618
        %v1632 = vpack.c.b16 %v1621, %v1620
        %v1633 = vpack.c.b16 %v1623, %v1622
        %v1634 = vpack.c.b16 %v1625, %v1624
        %v1635 = vpack.c.b16 %v1627, %v1626
        %1644 = vmatpush.bf16.msra.mxu0 %v1635
        %1645 = vmatpush.bf16.msra.mxu0 %v1634
        %1646 = vmatpush.bf16.msra.mxu0 %v1633
        %1647 = vmatpush.bf16.msra.mxu0 %v1632
        %1648 = vmatpush.bf16.msra.mxu0 %v1631
        %1649 = vmatpush.bf16.msra.mxu0 %v1630
        %1650 = vmatpush.bf16.msra.mxu0 %v1629
        %1651 = vmatpush.bf16.msra.mxu0 %v1628
        %1652 = vmatmul.bf16.gmra.mxu0 %v1427
        %v1653 = vpop.f32.mrf.mxu0
        %v1654 = vadd.f32 %v1594, %v1653
        %v1655 = vpop.f32.mrf.mxu0
        %1656 = vdwg.mxu0
        %v1657 = vmul.f32 %v1654, 0.17677669
        %s1658 = scalar_lea.vmem [#allocation2], 4
        %v1659 = vld [vmem:[%s1658] sm:$0xf]
        %s1660 = scalar_lea.vmem [#allocation3], 4
        %v1661 = vld [vmem:[%s1660] sm:$0xf]
        %v1662 = vpack.c.bf16 %v1657, %v1657
        %v1664 = vsel %vm1516, %v1662, 0
        %v1667 = vsel %vm1516, %v1659, 0
        %1669 = vmatpush.bf16.xpose.msra.mxu0 0
        %1670 = vmatpush.bf16.xpose.msra.mxu0 0
        %1671 = vmatpush.bf16.xpose.msra.mxu0 0
        %1672 = vmatpush.bf16.xpose.msra.mxu0 0
        %1673 = vmatpush.bf16.xpose.msra.mxu0 0
        %1674 = vmatpush.bf16.xpose.msra.mxu0 0
        %1675 = vmatpush.bf16.xpose.msra.mxu0 0
        %1676 = vmatpush.bf16.xpose.msra.mxu0 %v1667
        %1677 = vmatmul.bf16.gmra.mxu0 %v1664
        %v1678 = vpop.f32.mrf.mxu0
        %v1679 = vadd.f32 %v1514, %v1678
        %v1680 = vpop.f32.mrf.mxu0
        %1681 = vdwg.mxu0
        %v1682 = vsel %vm1536, %v1679, -inf
        %1683 = vmax.xlane.f32.xlu0 %v1682
        %v1684 = vpop.xlane.xlu0 %1683
        %v1685 = vsub.f32 %v1679, %v1684
        %v1686 = vmul.f32 %v1685, 1.442695
        %v1687 = vpow.pop %v1686
        %v1688 = vsel %vm1536, %v1687, 0.0
        %1689 = vadd.xlane.f32.xlu0 %v1688
        %v1690 = vpop.xlane.xlu0 %1689
        %v1691 = vrcp.pop %v1690
        %v1692 = vmul.f32 %v1687, %v1691
        %v1693 = vpack.c.bf16 %v1692, %v1692
        %v1695 = vsel %vm1536, %v1693, 0
        %v1698 = vsel %vm1552, %v1661, 0
        %1700 = vmatpush.bf16.msra.mxu0 0
        %1701 = vmatpush.bf16.msra.mxu0 0
        %1702 = vmatpush.bf16.msra.mxu0 0
        %1703 = vmatpush.bf16.msra.mxu0 0
        %1704 = vmatpush.bf16.msra.mxu0 0
        %1705 = vmatpush.bf16.msra.mxu0 0
        %1706 = vmatpush.bf16.msra.mxu0 0
        %1707 = vmatpush.bf16.msra.mxu0 %v1698
        %1708 = vmatmul.bf16.gmra.mxu0 %v1695
        %v1709 = vpop.f32.mrf.mxu0
        %v1710 = vadd.f32 0.0, %v1709
        %v1711 = vpop.f32.mrf.mxu0
        %1712 = vdwg.mxu0
        %v1713 = vpack.c.bf16 %v1710, %v1710
        %s1714 = scalar_lea.vmem %s10, 16
        %v1715 = vld [vmem:[%s1714] sm:$0xf]
        %v1716 = vld [vmem:[%s1714 + $0x4] sm:$0xf]
        %v1717 = vld [vmem:[%s1714 + $0x8] sm:$0xf]
        %v1718 = vld [vmem:[%s1714 + $0xc] sm:$0xf]
        %v1723 = vunpack.c.l.b16 %v1715
        %v1724 = vunpack.c.l.b16 %v1716
        %v1725 = vunpack.c.l.b16 %v1717
        %v1726 = vunpack.c.l.b16 %v1718
        %v1727 = vpack.c.b16 %v1724, %v1723
        %v1728 = vpack.c.b16 %v1726, %v1725
        %v1732 = vsel %vm1516, %v1713, 0
        %1734 = vmatpush.bf16.msra.mxu0 0
        %1735 = vmatpush.bf16.msra.mxu0 0
        %1736 = vmatpush.bf16.msra.mxu0 0
        %1737 = vmatpush.bf16.msra.mxu0 0
        %1738 = vmatpush.bf16.msra.mxu0 0
        %1739 = vmatpush.bf16.msra.mxu0 0
        %1740 = vmatpush.bf16.msra.mxu0 %v1728
        %1741 = vmatpush.bf16.msra.mxu0 %v1727
        %1742 = vmatmul.bf16.gmra.mxu0 %v1732
        %v1743 = vpop.f32.mrf.mxu0
        %v1744 = vadd.f32 0.0, %v1743
        %v1745 = vpop.f32.mrf.mxu0
        %1746 = vdwg.mxu0
        %v1751 = vunpack.c.l.b16 %v1570
        %v1752 = vunpack.c.l.b16 %v1571
        %v1753 = vunpack.c.l.b16 %v1572
        %v1754 = vunpack.c.l.b16 %v1573
        %v1755 = vpack.c.b16 %v1752, %v1751
        %v1756 = vpack.c.b16 %v1754, %v1753
        %v1760 = vsel %vm1516, %v1569, 0
        %1762 = vmatpush.bf16.msra.mxu0 0
        %1763 = vmatpush.bf16.msra.mxu0 0
        %1764 = vmatpush.bf16.msra.mxu0 0
        %1765 = vmatpush.bf16.msra.mxu0 0
        %1766 = vmatpush.bf16.msra.mxu0 0
        %1767 = vmatpush.bf16.msra.mxu0 0
        %1768 = vmatpush.bf16.msra.mxu0 %v1756
        %1769 = vmatpush.bf16.msra.mxu0 %v1755
        %1770 = vmatmul.bf16.gmra.mxu0 %v1760
        %v1771 = vpop.f32.mrf.mxu0
        %v1772 = vadd.f32 %v1744, %v1771
        %v1773 = vpop.f32.mrf.mxu0
        %1774 = vdwg.mxu0
        %s1775 = scalar_lea.vmem %s4, 128
        %v1776 = vld [vmem:[%s1775] sm:$0xf]
        %v1777 = vld [vmem:[%s1775 + $0x4] sm:$0xf]
        %v1778 = vld [vmem:[%s1775 + $0x8] sm:$0xf]
        %v1779 = vld [vmem:[%s1775 + $0xc] sm:$0xf]
        %v1780 = vld [vmem:[%s1775 + $0x10] sm:$0xf]
        %v1781 = vld [vmem:[%s1775 + $0x14] sm:$0xf]
        %v1782 = vld [vmem:[%s1775 + $0x18] sm:$0xf]
        %v1783 = vld [vmem:[%s1775 + $0x1c] sm:$0xf]
        %v1784 = vld [vmem:[%s1775 + $0x20] sm:$0xf]
        %v1785 = vld [vmem:[%s1775 + $0x24] sm:$0xf]
        %v1786 = vld [vmem:[%s1775 + $0x28] sm:$0xf]
        %v1787 = vld [vmem:[%s1775 + $0x2c] sm:$0xf]
        %v1788 = vld [vmem:[%s1775 + $0x30] sm:$0xf]
        %v1789 = vld [vmem:[%s1775 + $0x34] sm:$0xf]
        %v1790 = vld [vmem:[%s1775 + $0x38] sm:$0xf]
        %v1791 = vld [vmem:[%s1775 + $0x3c] sm:$0xf]
        %s1792 = scalar_lea.vmem %s5, 2
        %v1793 = vld [vmem:[%s1792] sm:$0x1]
        %v1795 = vperm.slane %v1793, 0
        %v1813 = vunpack.c.l.b16 %v1776
        %v1814 = vunpack.c.l.b16 %v1777
        %v1815 = vunpack.c.l.b16 %v1778
        %v1816 = vunpack.c.l.b16 %v1779
        %v1817 = vunpack.c.l.b16 %v1780
        %v1818 = vunpack.c.l.b16 %v1781
        %v1819 = vunpack.c.l.b16 %v1782
        %v1820 = vunpack.c.l.b16 %v1783
        %v1821 = vunpack.c.l.b16 %v1784
        %v1822 = vunpack.c.l.b16 %v1785
        %v1823 = vunpack.c.l.b16 %v1786
        %v1824 = vunpack.c.l.b16 %v1787
        %v1825 = vunpack.c.l.b16 %v1788
        %v1826 = vunpack.c.l.b16 %v1789
        %v1827 = vunpack.c.l.b16 %v1790
        %v1828 = vunpack.c.l.b16 %v1791
        %v1829 = vpack.c.b16 %v1814, %v1813
        %v1830 = vpack.c.b16 %v1816, %v1815
        %v1831 = vpack.c.b16 %v1818, %v1817
        %v1832 = vpack.c.b16 %v1820, %v1819
        %v1833 = vpack.c.b16 %v1822, %v1821
        %v1834 = vpack.c.b16 %v1824, %v1823
        %v1835 = vpack.c.b16 %v1826, %v1825
        %v1836 = vpack.c.b16 %v1828, %v1827
        %1845 = vmatpush.bf16.msra.mxu0 %v1836
        %1846 = vmatpush.bf16.msra.mxu0 %v1835
        %1847 = vmatpush.bf16.msra.mxu0 %v1834
        %1848 = vmatpush.bf16.msra.mxu0 %v1833
        %1849 = vmatpush.bf16.msra.mxu0 %v1832
        %1850 = vmatpush.bf16.msra.mxu0 %v1831
        %1851 = vmatpush.bf16.msra.mxu0 %v1830
        %1852 = vmatpush.bf16.msra.mxu0 %v1829
        %1853 = vmatmul.bf16.gmra.mxu0 %v1427
        %v1854 = vpop.f32.mrf.mxu0
        %v1855 = vadd.f32 %v1795, %v1854
        %v1856 = vpop.f32.mrf.mxu0
        %1857 = vdwg.mxu0
        %v1858 = vmul.f32 %v1855, 0.17677669
        %s1859 = scalar_lea.vmem [#allocation2], 8
        %v1860 = vld [vmem:[%s1859] sm:$0xf]
        %s1861 = scalar_lea.vmem [#allocation3], 8
        %v1862 = vld [vmem:[%s1861] sm:$0xf]
        %v1863 = vpack.c.bf16 %v1858, %v1858
        %v1865 = vsel %vm1516, %v1863, 0
        %v1868 = vsel %vm1516, %v1860, 0
        %1870 = vmatpush.bf16.xpose.msra.mxu0 0
        %1871 = vmatpush.bf16.xpose.msra.mxu0 0
        %1872 = vmatpush.bf16.xpose.msra.mxu0 0
        %1873 = vmatpush.bf16.xpose.msra.mxu0 0
        %1874 = vmatpush.bf16.xpose.msra.mxu0 0
        %1875 = vmatpush.bf16.xpose.msra.mxu0 0
        %1876 = vmatpush.bf16.xpose.msra.mxu0 0
        %1877 = vmatpush.bf16.xpose.msra.mxu0 %v1868
        %1878 = vmatmul.bf16.gmra.mxu0 %v1865
        %v1879 = vpop.f32.mrf.mxu0
        %v1880 = vadd.f32 %v1514, %v1879
        %v1881 = vpop.f32.mrf.mxu0
        %1882 = vdwg.mxu0
        %v1883 = vsel %vm1536, %v1880, -inf
        %1884 = vmax.xlane.f32.xlu0 %v1883
        %v1885 = vpop.xlane.xlu0 %1884
        %v1886 = vsub.f32 %v1880, %v1885
        %v1887 = vmul.f32 %v1886, 1.442695
        %v1888 = vpow.pop %v1887
        %v1889 = vsel %vm1536, %v1888, 0.0
        %1890 = vadd.xlane.f32.xlu0 %v1889
        %v1891 = vpop.xlane.xlu0 %1890
        %v1892 = vrcp.pop %v1891
        %v1893 = vmul.f32 %v1888, %v1892
        %v1894 = vpack.c.bf16 %v1893, %v1893
        %v1896 = vsel %vm1536, %v1894, 0
        %v1899 = vsel %vm1552, %v1862, 0
        %1901 = vmatpush.bf16.msra.mxu0 0
        %1902 = vmatpush.bf16.msra.mxu0 0
        %1903 = vmatpush.bf16.msra.mxu0 0
        %1904 = vmatpush.bf16.msra.mxu0 0
        %1905 = vmatpush.bf16.msra.mxu0 0
        %1906 = vmatpush.bf16.msra.mxu0 0
        %1907 = vmatpush.bf16.msra.mxu0 0
        %1908 = vmatpush.bf16.msra.mxu0 %v1899
        %1909 = vmatmul.bf16.gmra.mxu0 %v1896
        %v1910 = vpop.f32.mrf.mxu0
        %v1911 = vadd.f32 0.0, %v1910
        %v1912 = vpop.f32.mrf.mxu0
        %1913 = vdwg.mxu0
        %v1914 = vpack.c.bf16 %v1911, %v1911
        %s1915 = scalar_lea.vmem %s10, 32
        %v1916 = vld [vmem:[%s1915] sm:$0xf]
        %v1917 = vld [vmem:[%s1915 + $0x4] sm:$0xf]
        %v1918 = vld [vmem:[%s1915 + $0x8] sm:$0xf]
        %v1919 = vld [vmem:[%s1915 + $0xc] sm:$0xf]
        %v1924 = vunpack.c.l.b16 %v1916
        %v1925 = vunpack.c.l.b16 %v1917
        %v1926 = vunpack.c.l.b16 %v1918
        %v1927 = vunpack.c.l.b16 %v1919
        %v1928 = vpack.c.b16 %v1925, %v1924
        %v1929 = vpack.c.b16 %v1927, %v1926
        %v1933 = vsel %vm1516, %v1914, 0
        %1935 = vmatpush.bf16.msra.mxu0 0
        %1936 = vmatpush.bf16.msra.mxu0 0
        %1937 = vmatpush.bf16.msra.mxu0 0
        %1938 = vmatpush.bf16.msra.mxu0 0
        %1939 = vmatpush.bf16.msra.mxu0 0
        %1940 = vmatpush.bf16.msra.mxu0 0
        %1941 = vmatpush.bf16.msra.mxu0 %v1929
        %1942 = vmatpush.bf16.msra.mxu0 %v1928
        %1943 = vmatmul.bf16.gmra.mxu0 %v1933
        %v1944 = vpop.f32.mrf.mxu0
        %v1945 = vadd.f32 0.0, %v1944
        %v1946 = vpop.f32.mrf.mxu0
        %1947 = vdwg.mxu0
        %v1948 = vadd.f32 %v1772, %v1945
        %s1949 = scalar_lea.vmem %s4, 192
        %v1950 = vld [vmem:[%s1949] sm:$0xf]
        %v1951 = vld [vmem:[%s1949 + $0x4] sm:$0xf]
        %v1952 = vld [vmem:[%s1949 + $0x8] sm:$0xf]
        %v1953 = vld [vmem:[%s1949 + $0xc] sm:$0xf]
        %v1954 = vld [vmem:[%s1949 + $0x10] sm:$0xf]
        %v1955 = vld [vmem:[%s1949 + $0x14] sm:$0xf]
        %v1956 = vld [vmem:[%s1949 + $0x18] sm:$0xf]
        %v1957 = vld [vmem:[%s1949 + $0x1c] sm:$0xf]
        %v1958 = vld [vmem:[%s1949 + $0x20] sm:$0xf]
        %v1959 = vld [vmem:[%s1949 + $0x24] sm:$0xf]
        %v1960 = vld [vmem:[%s1949 + $0x28] sm:$0xf]
        %v1961 = vld [vmem:[%s1949 + $0x2c] sm:$0xf]
        %v1962 = vld [vmem:[%s1949 + $0x30] sm:$0xf]
        %v1963 = vld [vmem:[%s1949 + $0x34] sm:$0xf]
        %v1964 = vld [vmem:[%s1949 + $0x38] sm:$0xf]
        %v1965 = vld [vmem:[%s1949 + $0x3c] sm:$0xf]
        %s1966 = scalar_lea.vmem %s5, 3
        %v1967 = vld [vmem:[%s1966] sm:$0x1]
        %v1969 = vperm.slane %v1967, 0
        %v1987 = vunpack.c.l.b16 %v1950
        %v1988 = vunpack.c.l.b16 %v1951
        %v1989 = vunpack.c.l.b16 %v1952
        %v1990 = vunpack.c.l.b16 %v1953
        %v1991 = vunpack.c.l.b16 %v1954
        %v1992 = vunpack.c.l.b16 %v1955
        %v1993 = vunpack.c.l.b16 %v1956
        %v1994 = vunpack.c.l.b16 %v1957
        %v1995 = vunpack.c.l.b16 %v1958
        %v1996 = vunpack.c.l.b16 %v1959
        %v1997 = vunpack.c.l.b16 %v1960
        %v1998 = vunpack.c.l.b16 %v1961
        %v1999 = vunpack.c.l.b16 %v1962
        %v2000 = vunpack.c.l.b16 %v1963
        %v2001 = vunpack.c.l.b16 %v1964
        %v2002 = vunpack.c.l.b16 %v1965
        %v2003 = vpack.c.b16 %v1988, %v1987
        %v2004 = vpack.c.b16 %v1990, %v1989
        %v2005 = vpack.c.b16 %v1992, %v1991
        %v2006 = vpack.c.b16 %v1994, %v1993
        %v2007 = vpack.c.b16 %v1996, %v1995
        %v2008 = vpack.c.b16 %v1998, %v1997
        %v2009 = vpack.c.b16 %v2000, %v1999
        %v2010 = vpack.c.b16 %v2002, %v2001
        %2019 = vmatpush.bf16.msra.mxu0 %v2010
        %2020 = vmatpush.bf16.msra.mxu0 %v2009
        %2021 = vmatpush.bf16.msra.mxu0 %v2008
        %2022 = vmatpush.bf16.msra.mxu0 %v2007
        %2023 = vmatpush.bf16.msra.mxu0 %v2006
        %2024 = vmatpush.bf16.msra.mxu0 %v2005
        %2025 = vmatpush.bf16.msra.mxu0 %v2004
        %2026 = vmatpush.bf16.msra.mxu0 %v2003
        %2027 = vmatmul.bf16.gmra.mxu0 %v1427
        %v2028 = vpop.f32.mrf.mxu0
        %v2029 = vadd.f32 %v1969, %v2028
        %v2030 = vpop.f32.mrf.mxu0
        %2031 = vdwg.mxu0
        %v2032 = vmul.f32 %v2029, 0.17677669
        %s2033 = scalar_lea.vmem [#allocation2], 12
        %v2034 = vld [vmem:[%s2033] sm:$0xf]
        %s2035 = scalar_lea.vmem [#allocation3], 12
        %v2036 = vld [vmem:[%s2035] sm:$0xf]
        %v2037 = vpack.c.bf16 %v2032, %v2032
        %v2039 = vsel %vm1516, %v2037, 0
        %v2042 = vsel %vm1516, %v2034, 0
        %2044 = vmatpush.bf16.xpose.msra.mxu0 0
        %2045 = vmatpush.bf16.xpose.msra.mxu0 0
        %2046 = vmatpush.bf16.xpose.msra.mxu0 0
        %2047 = vmatpush.bf16.xpose.msra.mxu0 0
        %2048 = vmatpush.bf16.xpose.msra.mxu0 0
        %2049 = vmatpush.bf16.xpose.msra.mxu0 0
        %2050 = vmatpush.bf16.xpose.msra.mxu0 0
        %2051 = vmatpush.bf16.xpose.msra.mxu0 %v2042
        %2052 = vmatmul.bf16.gmra.mxu0 %v2039
        %v2053 = vpop.f32.mrf.mxu0
        %v2054 = vadd.f32 %v1514, %v2053
        %v2055 = vpop.f32.mrf.mxu0
        %2056 = vdwg.mxu0
        %v2057 = vsel %vm1536, %v2054, -inf
        %2058 = vmax.xlane.f32.xlu0 %v2057
        %v2059 = vpop.xlane.xlu0 %2058
        %v2060 = vsub.f32 %v2054, %v2059
        %v2061 = vmul.f32 %v2060, 1.442695
        %v2062 = vpow.pop %v2061
        %v2063 = vsel %vm1536, %v2062, 0.0
        %2064 = vadd.xlane.f32.xlu0 %v2063
        %v2065 = vpop.xlane.xlu0 %2064
        %v2066 = vrcp.pop %v2065
        %v2067 = vmul.f32 %v2062, %v2066
        %v2068 = vpack.c.bf16 %v2067, %v2067
        %v2070 = vsel %vm1536, %v2068, 0
        %v2073 = vsel %vm1552, %v2036, 0
        %2075 = vmatpush.bf16.msra.mxu0 0
        %2076 = vmatpush.bf16.msra.mxu0 0
        %2077 = vmatpush.bf16.msra.mxu0 0
        %2078 = vmatpush.bf16.msra.mxu0 0
        %2079 = vmatpush.bf16.msra.mxu0 0
        %2080 = vmatpush.bf16.msra.mxu0 0
        %2081 = vmatpush.bf16.msra.mxu0 0
        %2082 = vmatpush.bf16.msra.mxu0 %v2073
        %2083 = vmatmul.bf16.gmra.mxu0 %v2070
        %v2084 = vpop.f32.mrf.mxu0
        %v2085 = vadd.f32 0.0, %v2084
        %v2086 = vpop.f32.mrf.mxu0
        %2087 = vdwg.mxu0
        %v2088 = vpack.c.bf16 %v2085, %v2085
        %s2089 = scalar_lea.vmem %s10, 48
        %v2090 = vld [vmem:[%s2089] sm:$0xf]
        %v2091 = vld [vmem:[%s2089 + $0x4] sm:$0xf]
        %v2092 = vld [vmem:[%s2089 + $0x8] sm:$0xf]
        %v2093 = vld [vmem:[%s2089 + $0xc] sm:$0xf]
        %v2098 = vunpack.c.l.b16 %v2090
        %v2099 = vunpack.c.l.b16 %v2091
        %v2100 = vunpack.c.l.b16 %v2092
        %v2101 = vunpack.c.l.b16 %v2093
        %v2102 = vpack.c.b16 %v2099, %v2098
        %v2103 = vpack.c.b16 %v2101, %v2100
        %v2107 = vsel %vm1516, %v2088, 0
        %2109 = vmatpush.bf16.msra.mxu0 0
        %2110 = vmatpush.bf16.msra.mxu0 0
        %2111 = vmatpush.bf16.msra.mxu0 0
        %2112 = vmatpush.bf16.msra.mxu0 0
        %2113 = vmatpush.bf16.msra.mxu0 0
        %2114 = vmatpush.bf16.msra.mxu0 0
        %2115 = vmatpush.bf16.msra.mxu0 %v2103
        %2116 = vmatpush.bf16.msra.mxu0 %v2102
        %2117 = vmatmul.bf16.gmra.mxu0 %v2107
        %v2118 = vpop.f32.mrf.mxu0
        %v2119 = vadd.f32 0.0, %v2118
        %v2120 = vpop.f32.mrf.mxu0
        %2121 = vdwg.mxu0
        %v2122 = vadd.f32 %v1948, %v2119
        %v2124 = vperm.slane %v1426, 0
        %v2126 = vadd.f32 %v2122, %v2124
        %v2127 = vadd.f32 %v1377, %v2126
        %v2128 = vld [vmem:[%s12] sm:$0x1]
        %v2129 = vld [vmem:[%s13] sm:$0x1]
        %2130 = vadd.xlane.f32.xlu0 %v2127
        %v2131 = vpop.xlane.xlu0 %2130
        %v2132 = vmul.f32 %v2131, %v1389
        %v2133 = vsub.f32 %v2127, %v2132
        %v2134 = vmul.f32 %v2133, %v2133
        %2135 = vadd.xlane.f32.xlu0 %v2134
        %v2136 = vpop.xlane.xlu0 %2135
        %v2137 = vmul.f32 %v2136, %v1401
        %v2138 = vrsqrt.pop %v2137
        %v2139 = vmul.f32 %v2138, %v2137
        %v2140 = vmul.f32 %v2139, %v2138
        %v2141 = vmul.f32 0.5, %v2140
        %v2142 = vsub.f32 1.5, %v2141
        %v2143 = vmul.f32 %v2138, %v2142
        %v2144 = vmul.f32 %v2137, %v2143
        %vm2145 = vcmp.eq.f32.partialorder %v2137, inf
        %v2146 = vsel %vm2145, %v2137, %v2144
        %vm2147 = vcmp.eq.f32.partialorder %v2137, 0.0
        %v2148 = vand.u32 %v2137, 2147483648
        %v2149 = vsel %vm2147, %v2148, %v2146
        %v2150 = vadd.f32 %v2149, 1e-06
        %v2151 = vrcp.pop %v2150
        %v2153 = vperm.slane %v2128, 0
        %v2155 = vmul.f32 %v2153, %v2133
        %v2156 = vmul.f32 %v2155, %v2151
        %v2158 = vperm.slane %v2129, 0
        %v2160 = vadd.f32 %v2156, %v2158
        %v2161 = vpack.c.bf16 %v2160, %v2160
        %v2162 = vld [vmem:[%s17] sm:$0x1]
        %v2163 = vld [vmem:[#allocation4] sm:$0xff]
        %v2164 = vld [vmem:[#allocation4 + $0x8] sm:$0xff]
        %v2165 = vld [vmem:[#allocation4 + $0x10] sm:$0xff]
        %v2166 = vld [vmem:[#allocation4 + $0x18] sm:$0xff]
        %v2167 = vld [vmem:[#allocation4 + $0x40] sm:$0xff]
        %v2168 = vld [vmem:[#allocation4 + $0x48] sm:$0xff]
        %v2169 = vld [vmem:[#allocation4 + $0x50] sm:$0xff]
        %v2170 = vld [vmem:[#allocation4 + $0x58] sm:$0xff]
        %v2171 = vld [vmem:[#allocation4 + $0x80] sm:$0xff]
        %v2172 = vld [vmem:[#allocation4 + $0x88] sm:$0xff]
        %v2173 = vld [vmem:[#allocation4 + $0x90] sm:$0xff]
        %v2174 = vld [vmem:[#allocation4 + $0x98] sm:$0xff]
        %v2175 = vld [vmem:[#allocation4 + $0xc0] sm:$0xff]
        %v2176 = vld [vmem:[#allocation4 + $0xc8] sm:$0xff]
        %v2177 = vld [vmem:[#allocation4 + $0xd0] sm:$0xff]
        %v2178 = vld [vmem:[#allocation4 + $0xd8] sm:$0xff]
        %v2179 = vld [vmem:[#allocation4 + $0x100] sm:$0xff]
        %v2180 = vld [vmem:[#allocation4 + $0x108] sm:$0xff]
        %v2181 = vld [vmem:[#allocation4 + $0x110] sm:$0xff]
        %v2182 = vld [vmem:[#allocation4 + $0x118] sm:$0xff]
        %v2183 = vld [vmem:[#allocation4 + $0x140] sm:$0xff]
        %v2184 = vld [vmem:[#allocation4 + $0x148] sm:$0xff]
        %v2185 = vld [vmem:[#allocation4 + $0x150] sm:$0xff]
        %v2186 = vld [vmem:[#allocation4 + $0x158] sm:$0xff]
        %v2187 = vld [vmem:[#allocation4 + $0x180] sm:$0xff]
        %v2188 = vld [vmem:[#allocation4 + $0x188] sm:$0xff]
        %v2189 = vld [vmem:[#allocation4 + $0x190] sm:$0xff]
        %v2190 = vld [vmem:[#allocation4 + $0x198] sm:$0xff]
        %v2191 = vld [vmem:[#allocation4 + $0x1c0] sm:$0xff]
        %v2192 = vld [vmem:[#allocation4 + $0x1c8] sm:$0xff]
        %v2193 = vld [vmem:[#allocation4 + $0x1d0] sm:$0xff]
        %v2194 = vld [vmem:[#allocation4 + $0x1d8] sm:$0xff]
        %v2195 = vld [vmem:[#allocation4 + $0x200] sm:$0xff]
        %v2196 = vld [vmem:[#allocation4 + $0x208] sm:$0xff]
        %v2197 = vld [vmem:[#allocation4 + $0x210] sm:$0xff]
        %v2198 = vld [vmem:[#allocation4 + $0x218] sm:$0xff]
        %v2199 = vld [vmem:[#allocation4 + $0x240] sm:$0xff]
        %v2200 = vld [vmem:[#allocation4 + $0x248] sm:$0xff]
        %v2201 = vld [vmem:[#allocation4 + $0x250] sm:$0xff]
        %v2202 = vld [vmem:[#allocation4 + $0x258] sm:$0xff]
        %v2203 = vld [vmem:[#allocation4 + $0x280] sm:$0xff]
        %v2204 = vld [vmem:[#allocation4 + $0x288] sm:$0xff]
        %v2205 = vld [vmem:[#allocation4 + $0x290] sm:$0xff]
        %v2206 = vld [vmem:[#allocation4 + $0x298] sm:$0xff]
        %v2207 = vld [vmem:[#allocation4 + $0x2c0] sm:$0xff]
        %v2208 = vld [vmem:[#allocation4 + $0x2c8] sm:$0xff]
        %v2209 = vld [vmem:[#allocation4 + $0x2d0] sm:$0xff]
        %v2210 = vld [vmem:[#allocation4 + $0x2d8] sm:$0xff]
        %v2211 = vld [vmem:[#allocation4 + $0x300] sm:$0xff]
        %v2212 = vld [vmem:[#allocation4 + $0x308] sm:$0xff]
        %v2213 = vld [vmem:[#allocation4 + $0x310] sm:$0xff]
        %v2214 = vld [vmem:[#allocation4 + $0x318] sm:$0xff]
        %v2215 = vld [vmem:[#allocation4 + $0x340] sm:$0xff]
        %v2216 = vld [vmem:[#allocation4 + $0x348] sm:$0xff]
        %v2217 = vld [vmem:[#allocation4 + $0x350] sm:$0xff]
        %v2218 = vld [vmem:[#allocation4 + $0x358] sm:$0xff]
        %v2219 = vld [vmem:[#allocation4 + $0x380] sm:$0xff]
        %v2220 = vld [vmem:[#allocation4 + $0x388] sm:$0xff]
        %v2221 = vld [vmem:[#allocation4 + $0x390] sm:$0xff]
        %v2222 = vld [vmem:[#allocation4 + $0x398] sm:$0xff]
        %v2223 = vld [vmem:[#allocation4 + $0x3c0] sm:$0xff]
        %v2224 = vld [vmem:[#allocation4 + $0x3c8] sm:$0xff]
        %v2225 = vld [vmem:[#allocation4 + $0x3d0] sm:$0xff]
        %v2226 = vld [vmem:[#allocation4 + $0x3d8] sm:$0xff]
        %v2227 = vld [vmem:[%s15] sm:$0xff]
        %v2229 = vperm.slane %v2227, 0
        %v2230 = vperm.slane %v2227, 1
        %v2231 = vperm.slane %v2227, 2
        %v2232 = vperm.slane %v2227, 3
        %v2233 = vperm.slane %v2227, 4
        %v2234 = vperm.slane %v2227, 5
        %v2235 = vperm.slane %v2227, 6
        %v2236 = vperm.slane %v2227, 7
        %v2309 = vunpack.c.l.b16 %v2163
        %v2310 = vunpack.c.h.b16 %v2163
        %v2311 = vunpack.c.l.b16 %v2164
        %v2312 = vunpack.c.h.b16 %v2164
        %v2313 = vunpack.c.l.b16 %v2165
        %v2314 = vunpack.c.h.b16 %v2165
        %v2315 = vunpack.c.l.b16 %v2166
        %v2316 = vunpack.c.h.b16 %v2166
        %v2317 = vunpack.c.l.b16 %v2167
        %v2318 = vunpack.c.h.b16 %v2167
        %v2319 = vunpack.c.l.b16 %v2168
        %v2320 = vunpack.c.h.b16 %v2168
        %v2321 = vunpack.c.l.b16 %v2169
        %v2322 = vunpack.c.h.b16 %v2169
        %v2323 = vunpack.c.l.b16 %v2170
        %v2324 = vunpack.c.h.b16 %v2170
        %v2325 = vunpack.c.l.b16 %v2171
        %v2326 = vunpack.c.h.b16 %v2171
        %v2327 = vunpack.c.l.b16 %v2172
        %v2328 = vunpack.c.h.b16 %v2172
        %v2329 = vunpack.c.l.b16 %v2173
        %v2330 = vunpack.c.h.b16 %v2173
        %v2331 = vunpack.c.l.b16 %v2174
        %v2332 = vunpack.c.h.b16 %v2174
        %v2333 = vunpack.c.l.b16 %v2175
        %v2334 = vunpack.c.h.b16 %v2175
        %v2335 = vunpack.c.l.b16 %v2176
        %v2336 = vunpack.c.h.b16 %v2176
        %v2337 = vunpack.c.l.b16 %v2177
        %v2338 = vunpack.c.h.b16 %v2177
        %v2339 = vunpack.c.l.b16 %v2178
        %v2340 = vunpack.c.h.b16 %v2178
        %v2341 = vunpack.c.l.b16 %v2179
        %v2342 = vunpack.c.h.b16 %v2179
        %v2343 = vunpack.c.l.b16 %v2180
        %v2344 = vunpack.c.h.b16 %v2180
        %v2345 = vunpack.c.l.b16 %v2181
        %v2346 = vunpack.c.h.b16 %v2181
        %v2347 = vunpack.c.l.b16 %v2182
        %v2348 = vunpack.c.h.b16 %v2182
        %v2349 = vunpack.c.l.b16 %v2183
        %v2350 = vunpack.c.h.b16 %v2183
        %v2351 = vunpack.c.l.b16 %v2184
        %v2352 = vunpack.c.h.b16 %v2184
        %v2353 = vunpack.c.l.b16 %v2185
        %v2354 = vunpack.c.h.b16 %v2185
        %v2355 = vunpack.c.l.b16 %v2186
        %v2356 = vunpack.c.h.b16 %v2186
        %v2357 = vunpack.c.l.b16 %v2187
        %v2358 = vunpack.c.h.b16 %v2187
        %v2359 = vunpack.c.l.b16 %v2188
        %v2360 = vunpack.c.h.b16 %v2188
        %v2361 = vunpack.c.l.b16 %v2189
        %v2362 = vunpack.c.h.b16 %v2189
        %v2363 = vunpack.c.l.b16 %v2190
        %v2364 = vunpack.c.h.b16 %v2190
        %v2365 = vunpack.c.l.b16 %v2191
        %v2366 = vunpack.c.h.b16 %v2191
        %v2367 = vunpack.c.l.b16 %v2192
        %v2368 = vunpack.c.h.b16 %v2192
        %v2369 = vunpack.c.l.b16 %v2193
        %v2370 = vunpack.c.h.b16 %v2193
        %v2371 = vunpack.c.l.b16 %v2194
        %v2372 = vunpack.c.h.b16 %v2194
        %v2373 = vunpack.c.l.b16 %v2195
        %v2374 = vunpack.c.h.b16 %v2195
        %v2375 = vunpack.c.l.b16 %v2196
        %v2376 = vunpack.c.h.b16 %v2196
        %v2377 = vunpack.c.l.b16 %v2197
        %v2378 = vunpack.c.h.b16 %v2197
        %v2379 = vunpack.c.l.b16 %v2198
        %v2380 = vunpack.c.h.b16 %v2198
        %v2381 = vunpack.c.l.b16 %v2199
        %v2382 = vunpack.c.h.b16 %v2199
        %v2383 = vunpack.c.l.b16 %v2200
        %v2384 = vunpack.c.h.b16 %v2200
        %v2385 = vunpack.c.l.b16 %v2201
        %v2386 = vunpack.c.h.b16 %v2201
        %v2387 = vunpack.c.l.b16 %v2202
        %v2388 = vunpack.c.h.b16 %v2202
        %v2389 = vunpack.c.l.b16 %v2203
        %v2390 = vunpack.c.h.b16 %v2203
        %v2391 = vunpack.c.l.b16 %v2204
        %v2392 = vunpack.c.h.b16 %v2204
        %v2393 = vunpack.c.l.b16 %v2205
        %v2394 = vunpack.c.h.b16 %v2205
        %v2395 = vunpack.c.l.b16 %v2206
        %v2396 = vunpack.c.h.b16 %v2206
        %v2397 = vunpack.c.l.b16 %v2207
        %v2398 = vunpack.c.h.b16 %v2207
        %v2399 = vunpack.c.l.b16 %v2208
        %v2400 = vunpack.c.h.b16 %v2208
        %v2401 = vunpack.c.l.b16 %v2209
        %v2402 = vunpack.c.h.b16 %v2209
        %v2403 = vunpack.c.l.b16 %v2210
        %v2404 = vunpack.c.h.b16 %v2210
        %v2405 = vunpack.c.l.b16 %v2211
        %v2406 = vunpack.c.h.b16 %v2211
        %v2407 = vunpack.c.l.b16 %v2212
        %v2408 = vunpack.c.h.b16 %v2212
        %v2409 = vunpack.c.l.b16 %v2213
        %v2410 = vunpack.c.h.b16 %v2213
        %v2411 = vunpack.c.l.b16 %v2214
        %v2412 = vunpack.c.h.b16 %v2214
        %v2413 = vunpack.c.l.b16 %v2215
        %v2414 = vunpack.c.h.b16 %v2215
        %v2415 = vunpack.c.l.b16 %v2216
        %v2416 = vunpack.c.h.b16 %v2216
        %v2417 = vunpack.c.l.b16 %v2217
        %v2418 = vunpack.c.h.b16 %v2217
        %v2419 = vunpack.c.l.b16 %v2218
        %v2420 = vunpack.c.h.b16 %v2218
        %v2421 = vunpack.c.l.b16 %v2219
        %v2422 = vunpack.c.h.b16 %v2219
        %v2423 = vunpack.c.l.b16 %v2220
        %v2424 = vunpack.c.h.b16 %v2220
        %v2425 = vunpack.c.l.b16 %v2221
        %v2426 = vunpack.c.h.b16 %v2221
        %v2427 = vunpack.c.l.b16 %v2222
        %v2428 = vunpack.c.h.b16 %v2222
        %v2429 = vunpack.c.l.b16 %v2223
        %v2430 = vunpack.c.h.b16 %v2223
        %v2431 = vunpack.c.l.b16 %v2224
        %v2432 = vunpack.c.h.b16 %v2224
        %v2433 = vunpack.c.l.b16 %v2225
        %v2434 = vunpack.c.h.b16 %v2225
        %v2435 = vunpack.c.l.b16 %v2226
        %v2436 = vunpack.c.h.b16 %v2226
        %v2437 = vpack.c.b16 %v2317, %v2309
        %v2438 = vpack.c.b16 %v2318, %v2310
        %v2439 = vpack.c.b16 %v2319, %v2311
        %v2440 = vpack.c.b16 %v2320, %v2312
        %v2441 = vpack.c.b16 %v2321, %v2313
        %v2442 = vpack.c.b16 %v2322, %v2314
        %v2443 = vpack.c.b16 %v2323, %v2315
        %v2444 = vpack.c.b16 %v2324, %v2316
        %v2445 = vpack.c.b16 %v2333, %v2325
        %v2446 = vpack.c.b16 %v2334, %v2326
        %v2447 = vpack.c.b16 %v2335, %v2327
        %v2448 = vpack.c.b16 %v2336, %v2328
        %v2449 = vpack.c.b16 %v2337, %v2329
        %v2450 = vpack.c.b16 %v2338, %v2330
        %v2451 = vpack.c.b16 %v2339, %v2331
        %v2452 = vpack.c.b16 %v2340, %v2332
        %v2453 = vpack.c.b16 %v2349, %v2341
        %v2454 = vpack.c.b16 %v2350, %v2342
        %v2455 = vpack.c.b16 %v2351, %v2343
        %v2456 = vpack.c.b16 %v2352, %v2344
        %v2457 = vpack.c.b16 %v2353, %v2345
        %v2458 = vpack.c.b16 %v2354, %v2346
        %v2459 = vpack.c.b16 %v2355, %v2347
        %v2460 = vpack.c.b16 %v2356, %v2348
        %v2461 = vpack.c.b16 %v2365, %v2357
        %v2462 = vpack.c.b16 %v2366, %v2358
        %v2463 = vpack.c.b16 %v2367, %v2359
        %v2464 = vpack.c.b16 %v2368, %v2360
        %v2465 = vpack.c.b16 %v2369, %v2361
        %v2466 = vpack.c.b16 %v2370, %v2362
        %v2467 = vpack.c.b16 %v2371, %v2363
        %v2468 = vpack.c.b16 %v2372, %v2364
        %v2469 = vpack.c.b16 %v2381, %v2373
        %v2470 = vpack.c.b16 %v2382, %v2374
        %v2471 = vpack.c.b16 %v2383, %v2375
        %v2472 = vpack.c.b16 %v2384, %v2376
        %v2473 = vpack.c.b16 %v2385, %v2377
        %v2474 = vpack.c.b16 %v2386, %v2378
        %v2475 = vpack.c.b16 %v2387, %v2379
        %v2476 = vpack.c.b16 %v2388, %v2380
        %v2477 = vpack.c.b16 %v2397, %v2389
        %v2478 = vpack.c.b16 %v2398, %v2390
        %v2479 = vpack.c.b16 %v2399, %v2391
        %v2480 = vpack.c.b16 %v2400, %v2392
        %v2481 = vpack.c.b16 %v2401, %v2393
        %v2482 = vpack.c.b16 %v2402, %v2394
        %v2483 = vpack.c.b16 %v2403, %v2395
        %v2484 = vpack.c.b16 %v2404, %v2396
        %v2485 = vpack.c.b16 %v2413, %v2405
        %v2486 = vpack.c.b16 %v2414, %v2406
        %v2487 = vpack.c.b16 %v2415, %v2407
        %v2488 = vpack.c.b16 %v2416, %v2408
        %v2489 = vpack.c.b16 %v2417, %v2409
        %v2490 = vpack.c.b16 %v2418, %v2410
        %v2491 = vpack.c.b16 %v2419, %v2411
        %v2492 = vpack.c.b16 %v2420, %v2412
        %v2493 = vpack.c.b16 %v2429, %v2421
        %v2494 = vpack.c.b16 %v2430, %v2422
        %v2495 = vpack.c.b16 %v2431, %v2423
        %v2496 = vpack.c.b16 %v2432, %v2424
        %v2497 = vpack.c.b16 %v2433, %v2425
        %v2498 = vpack.c.b16 %v2434, %v2426
        %v2499 = vpack.c.b16 %v2435, %v2427
        %v2500 = vpack.c.b16 %v2436, %v2428
        %2565 = vmatpush.bf16.msra.mxu0 %v2493
        %2566 = vmatpush.bf16.msra.mxu0 %v2485
        %2567 = vmatpush.bf16.msra.mxu0 %v2477
        %2568 = vmatpush.bf16.msra.mxu0 %v2469
        %2569 = vmatpush.bf16.msra.mxu0 %v2461
        %2570 = vmatpush.bf16.msra.mxu0 %v2453
        %2571 = vmatpush.bf16.msra.mxu0 %v2445
        %2572 = vmatpush.bf16.msra.mxu0 %v2437
        %2573 = vmatmul.bf16.gmra.mxu0 %v2161
        %v2574 = vpop.f32.mrf.mxu0
        %v2575 = vadd.f32 %v2229, %v2574
        %v2576 = vpop.f32.mrf.mxu0
        %2577 = vdwg.mxu0
        %2578 = vmatpush.bf16.msra.mxu0 %v2494
        %2579 = vmatpush.bf16.msra.mxu0 %v2486
        %2580 = vmatpush.bf16.msra.mxu0 %v2478
        %2581 = vmatpush.bf16.msra.mxu0 %v2470
        %2582 = vmatpush.bf16.msra.mxu0 %v2462
        %2583 = vmatpush.bf16.msra.mxu0 %v2454
        %2584 = vmatpush.bf16.msra.mxu0 %v2446
        %2585 = vmatpush.bf16.msra.mxu0 %v2438
        %2586 = vmatmul.bf16.gmra.mxu0 %v2161
        %v2587 = vpop.f32.mrf.mxu0
        %v2588 = vadd.f32 %v2230, %v2587
        %v2589 = vpop.f32.mrf.mxu0
        %2590 = vdwg.mxu0
        %2591 = vmatpush.bf16.msra.mxu0 %v2495
        %2592 = vmatpush.bf16.msra.mxu0 %v2487
        %2593 = vmatpush.bf16.msra.mxu0 %v2479
        %2594 = vmatpush.bf16.msra.mxu0 %v2471
        %2595 = vmatpush.bf16.msra.mxu0 %v2463
        %2596 = vmatpush.bf16.msra.mxu0 %v2455
        %2597 = vmatpush.bf16.msra.mxu0 %v2447
        %2598 = vmatpush.bf16.msra.mxu0 %v2439
        %2599 = vmatmul.bf16.gmra.mxu0 %v2161
        %v2600 = vpop.f32.mrf.mxu0
        %v2601 = vadd.f32 %v2231, %v2600
        %v2602 = vpop.f32.mrf.mxu0
        %2603 = vdwg.mxu0
        %2604 = vmatpush.bf16.msra.mxu0 %v2496
        %2605 = vmatpush.bf16.msra.mxu0 %v2488
        %2606 = vmatpush.bf16.msra.mxu0 %v2480
        %2607 = vmatpush.bf16.msra.mxu0 %v2472
        %2608 = vmatpush.bf16.msra.mxu0 %v2464
        %2609 = vmatpush.bf16.msra.mxu0 %v2456
        %2610 = vmatpush.bf16.msra.mxu0 %v2448
        %2611 = vmatpush.bf16.msra.mxu0 %v2440
        %2612 = vmatmul.bf16.gmra.mxu0 %v2161
        %v2613 = vpop.f32.mrf.mxu0
        %v2614 = vadd.f32 %v2232, %v2613
        %v2615 = vpop.f32.mrf.mxu0
        %2616 = vdwg.mxu0
        %2617 = vmatpush.bf16.msra.mxu0 %v2497
        %2618 = vmatpush.bf16.msra.mxu0 %v2489
        %2619 = vmatpush.bf16.msra.mxu0 %v2481
        %2620 = vmatpush.bf16.msra.mxu0 %v2473
        %2621 = vmatpush.bf16.msra.mxu0 %v2465
        %2622 = vmatpush.bf16.msra.mxu0 %v2457
        %2623 = vmatpush.bf16.msra.mxu0 %v2449
        %2624 = vmatpush.bf16.msra.mxu0 %v2441
        %2625 = vmatmul.bf16.gmra.mxu0 %v2161
        %v2626 = vpop.f32.mrf.mxu0
        %v2627 = vadd.f32 %v2233, %v2626
        %v2628 = vpop.f32.mrf.mxu0
        %2629 = vdwg.mxu0
        %2630 = vmatpush.bf16.msra.mxu0 %v2498
        %2631 = vmatpush.bf16.msra.mxu0 %v2490
        %2632 = vmatpush.bf16.msra.mxu0 %v2482
        %2633 = vmatpush.bf16.msra.mxu0 %v2474
        %2634 = vmatpush.bf16.msra.mxu0 %v2466
        %2635 = vmatpush.bf16.msra.mxu0 %v2458
        %2636 = vmatpush.bf16.msra.mxu0 %v2450
        %2637 = vmatpush.bf16.msra.mxu0 %v2442
        %2638 = vmatmul.bf16.gmra.mxu0 %v2161
        %v2639 = vpop.f32.mrf.mxu0
        %v2640 = vadd.f32 %v2234, %v2639
        %v2641 = vpop.f32.mrf.mxu0
        %2642 = vdwg.mxu0
        %2643 = vmatpush.bf16.msra.mxu0 %v2499
        %2644 = vmatpush.bf16.msra.mxu0 %v2491
        %2645 = vmatpush.bf16.msra.mxu0 %v2483
        %2646 = vmatpush.bf16.msra.mxu0 %v2475
        %2647 = vmatpush.bf16.msra.mxu0 %v2467
        %2648 = vmatpush.bf16.msra.mxu0 %v2459
        %2649 = vmatpush.bf16.msra.mxu0 %v2451
        %2650 = vmatpush.bf16.msra.mxu0 %v2443
        %2651 = vmatmul.bf16.gmra.mxu0 %v2161
        %v2652 = vpop.f32.mrf.mxu0
        %v2653 = vadd.f32 %v2235, %v2652
        %v2654 = vpop.f32.mrf.mxu0
        %2655 = vdwg.mxu0
        %2656 = vmatpush.bf16.msra.mxu0 %v2500
        %2657 = vmatpush.bf16.msra.mxu0 %v2492
        %2658 = vmatpush.bf16.msra.mxu0 %v2484
        %2659 = vmatpush.bf16.msra.mxu0 %v2476
        %2660 = vmatpush.bf16.msra.mxu0 %v2468
        %2661 = vmatpush.bf16.msra.mxu0 %v2460
        %2662 = vmatpush.bf16.msra.mxu0 %v2452
        %2663 = vmatpush.bf16.msra.mxu0 %v2444
        %2664 = vmatmul.bf16.gmra.mxu0 %v2161
        %v2665 = vpop.f32.mrf.mxu0
        %v2666 = vadd.f32 %v2236, %v2665
        %v2667 = vpop.f32.mrf.mxu0
        %2668 = vdwg.mxu0
        %v2669 = vmax.f32 %v2575, 0.0
        %v2670 = vmax.f32 %v2588, 0.0
        %v2671 = vmax.f32 %v2601, 0.0
        %v2672 = vmax.f32 %v2614, 0.0
        %v2673 = vmax.f32 %v2627, 0.0
        %v2674 = vmax.f32 %v2640, 0.0
        %v2675 = vmax.f32 %v2653, 0.0
        %v2676 = vmax.f32 %v2666, 0.0
        %v2677 = vpack.c.bf16 %v2669, %v2669
        %v2678 = vpack.c.bf16 %v2670, %v2670
        %v2679 = vpack.c.bf16 %v2671, %v2671
        %v2680 = vpack.c.bf16 %v2672, %v2672
        %v2681 = vpack.c.bf16 %v2673, %v2673
        %v2682 = vpack.c.bf16 %v2674, %v2674
        %v2683 = vpack.c.bf16 %v2675, %v2675
        %v2684 = vpack.c.bf16 %v2676, %v2676
        %v2685 = vld [vmem:[#allocation7] sm:$0xf]
        %v2686 = vld [vmem:[#allocation7 + $0x4] sm:$0xf]
        %v2687 = vld [vmem:[#allocation7 + $0x8] sm:$0xf]
        %v2688 = vld [vmem:[#allocation7 + $0xc] sm:$0xf]
        %v2689 = vld [vmem:[#allocation7 + $0x10] sm:$0xf]
        %v2690 = vld [vmem:[#allocation7 + $0x14] sm:$0xf]
        %v2691 = vld [vmem:[#allocation7 + $0x18] sm:$0xf]
        %v2692 = vld [vmem:[#allocation7 + $0x1c] sm:$0xf]
        %v2693 = vld [vmem:[#allocation7 + $0x20] sm:$0xf]
        %v2694 = vld [vmem:[#allocation7 + $0x24] sm:$0xf]
        %v2695 = vld [vmem:[#allocation7 + $0x28] sm:$0xf]
        %v2696 = vld [vmem:[#allocation7 + $0x2c] sm:$0xf]
        %v2697 = vld [vmem:[#allocation7 + $0x30] sm:$0xf]
        %v2698 = vld [vmem:[#allocation7 + $0x34] sm:$0xf]
        %v2699 = vld [vmem:[#allocation7 + $0x38] sm:$0xf]
        %v2700 = vld [vmem:[#allocation7 + $0x3c] sm:$0xf]
        %v2701 = vld [vmem:[#allocation7 + $0x40] sm:$0xf]
        %v2702 = vld [vmem:[#allocation7 + $0x44] sm:$0xf]
        %v2703 = vld [vmem:[#allocation7 + $0x48] sm:$0xf]
        %v2704 = vld [vmem:[#allocation7 + $0x4c] sm:$0xf]
        %v2705 = vld [vmem:[#allocation7 + $0x50] sm:$0xf]
        %v2706 = vld [vmem:[#allocation7 + $0x54] sm:$0xf]
        %v2707 = vld [vmem:[#allocation7 + $0x58] sm:$0xf]
        %v2708 = vld [vmem:[#allocation7 + $0x5c] sm:$0xf]
        %v2709 = vld [vmem:[#allocation7 + $0x60] sm:$0xf]
        %v2710 = vld [vmem:[#allocation7 + $0x64] sm:$0xf]
        %v2711 = vld [vmem:[#allocation7 + $0x68] sm:$0xf]
        %v2712 = vld [vmem:[#allocation7 + $0x6c] sm:$0xf]
        %v2713 = vld [vmem:[#allocation7 + $0x70] sm:$0xf]
        %v2714 = vld [vmem:[#allocation7 + $0x74] sm:$0xf]
        %v2715 = vld [vmem:[#allocation7 + $0x78] sm:$0xf]
        %v2716 = vld [vmem:[#allocation7 + $0x7c] sm:$0xf]
        %v2717 = vld [vmem:[#allocation7 + $0x80] sm:$0xf]
        %v2718 = vld [vmem:[#allocation7 + $0x84] sm:$0xf]
        %v2719 = vld [vmem:[#allocation7 + $0x88] sm:$0xf]
        %v2720 = vld [vmem:[#allocation7 + $0x8c] sm:$0xf]
        %v2721 = vld [vmem:[#allocation7 + $0x90] sm:$0xf]
        %v2722 = vld [vmem:[#allocation7 + $0x94] sm:$0xf]
        %v2723 = vld [vmem:[#allocation7 + $0x98] sm:$0xf]
        %v2724 = vld [vmem:[#allocation7 + $0x9c] sm:$0xf]
        %v2725 = vld [vmem:[#allocation7 + $0xa0] sm:$0xf]
        %v2726 = vld [vmem:[#allocation7 + $0xa4] sm:$0xf]
        %v2727 = vld [vmem:[#allocation7 + $0xa8] sm:$0xf]
        %v2728 = vld [vmem:[#allocation7 + $0xac] sm:$0xf]
        %v2729 = vld [vmem:[#allocation7 + $0xb0] sm:$0xf]
        %v2730 = vld [vmem:[#allocation7 + $0xb4] sm:$0xf]
        %v2731 = vld [vmem:[#allocation7 + $0xb8] sm:$0xf]
        %v2732 = vld [vmem:[#allocation7 + $0xbc] sm:$0xf]
        %v2733 = vld [vmem:[#allocation7 + $0xc0] sm:$0xf]
        %v2734 = vld [vmem:[#allocation7 + $0xc4] sm:$0xf]
        %v2735 = vld [vmem:[#allocation7 + $0xc8] sm:$0xf]
        %v2736 = vld [vmem:[#allocation7 + $0xcc] sm:$0xf]
        %v2737 = vld [vmem:[#allocation7 + $0xd0] sm:$0xf]
        %v2738 = vld [vmem:[#allocation7 + $0xd4] sm:$0xf]
        %v2739 = vld [vmem:[#allocation7 + $0xd8] sm:$0xf]
        %v2740 = vld [vmem:[#allocation7 + $0xdc] sm:$0xf]
        %v2741 = vld [vmem:[#allocation7 + $0xe0] sm:$0xf]
        %v2742 = vld [vmem:[#allocation7 + $0xe4] sm:$0xf]
        %v2743 = vld [vmem:[#allocation7 + $0xe8] sm:$0xf]
        %v2744 = vld [vmem:[#allocation7 + $0xec] sm:$0xf]
        %v2745 = vld [vmem:[#allocation7 + $0xf0] sm:$0xf]
        %v2746 = vld [vmem:[#allocation7 + $0xf4] sm:$0xf]
        %v2747 = vld [vmem:[#allocation7 + $0xf8] sm:$0xf]
        %v2748 = vld [vmem:[#allocation7 + $0xfc] sm:$0xf]
        %v2749 = vld [vmem:[#allocation7 + $0x100] sm:$0xf]
        %v2750 = vld [vmem:[#allocation7 + $0x104] sm:$0xf]
        %v2751 = vld [vmem:[#allocation7 + $0x108] sm:$0xf]
        %v2752 = vld [vmem:[#allocation7 + $0x10c] sm:$0xf]
        %v2753 = vld [vmem:[#allocation7 + $0x110] sm:$0xf]
        %v2754 = vld [vmem:[#allocation7 + $0x114] sm:$0xf]
        %v2755 = vld [vmem:[#allocation7 + $0x118] sm:$0xf]
        %v2756 = vld [vmem:[#allocation7 + $0x11c] sm:$0xf]
        %v2757 = vld [vmem:[#allocation7 + $0x120] sm:$0xf]
        %v2758 = vld [vmem:[#allocation7 + $0x124] sm:$0xf]
        %v2759 = vld [vmem:[#allocation7 + $0x128] sm:$0xf]
        %v2760 = vld [vmem:[#allocation7 + $0x12c] sm:$0xf]
        %v2761 = vld [vmem:[#allocation7 + $0x130] sm:$0xf]
        %v2762 = vld [vmem:[#allocation7 + $0x134] sm:$0xf]
        %v2763 = vld [vmem:[#allocation7 + $0x138] sm:$0xf]
        %v2764 = vld [vmem:[#allocation7 + $0x13c] sm:$0xf]
        %v2765 = vld [vmem:[#allocation7 + $0x140] sm:$0xf]
        %v2766 = vld [vmem:[#allocation7 + $0x144] sm:$0xf]
        %v2767 = vld [vmem:[#allocation7 + $0x148] sm:$0xf]
        %v2768 = vld [vmem:[#allocation7 + $0x14c] sm:$0xf]
        %v2769 = vld [vmem:[#allocation7 + $0x150] sm:$0xf]
        %v2770 = vld [vmem:[#allocation7 + $0x154] sm:$0xf]
        %v2771 = vld [vmem:[#allocation7 + $0x158] sm:$0xf]
        %v2772 = vld [vmem:[#allocation7 + $0x15c] sm:$0xf]
        %v2773 = vld [vmem:[#allocation7 + $0x160] sm:$0xf]
        %v2774 = vld [vmem:[#allocation7 + $0x164] sm:$0xf]
        %v2775 = vld [vmem:[#allocation7 + $0x168] sm:$0xf]
        %v2776 = vld [vmem:[#allocation7 + $0x16c] sm:$0xf]
        %v2777 = vld [vmem:[#allocation7 + $0x170] sm:$0xf]
        %v2778 = vld [vmem:[#allocation7 + $0x174] sm:$0xf]
        %v2779 = vld [vmem:[#allocation7 + $0x178] sm:$0xf]
        %v2780 = vld [vmem:[#allocation7 + $0x17c] sm:$0xf]
        %v2781 = vld [vmem:[#allocation7 + $0x180] sm:$0xf]
        %v2782 = vld [vmem:[#allocation7 + $0x184] sm:$0xf]
        %v2783 = vld [vmem:[#allocation7 + $0x188] sm:$0xf]
        %v2784 = vld [vmem:[#allocation7 + $0x18c] sm:$0xf]
        %v2785 = vld [vmem:[#allocation7 + $0x190] sm:$0xf]
        %v2786 = vld [vmem:[#allocation7 + $0x194] sm:$0xf]
        %v2787 = vld [vmem:[#allocation7 + $0x198] sm:$0xf]
        %v2788 = vld [vmem:[#allocation7 + $0x19c] sm:$0xf]
        %v2789 = vld [vmem:[#allocation7 + $0x1a0] sm:$0xf]
        %v2790 = vld [vmem:[#allocation7 + $0x1a4] sm:$0xf]
        %v2791 = vld [vmem:[#allocation7 + $0x1a8] sm:$0xf]
        %v2792 = vld [vmem:[#allocation7 + $0x1ac] sm:$0xf]
        %v2793 = vld [vmem:[#allocation7 + $0x1b0] sm:$0xf]
        %v2794 = vld [vmem:[#allocation7 + $0x1b4] sm:$0xf]
        %v2795 = vld [vmem:[#allocation7 + $0x1b8] sm:$0xf]
        %v2796 = vld [vmem:[#allocation7 + $0x1bc] sm:$0xf]
        %v2797 = vld [vmem:[#allocation7 + $0x1c0] sm:$0xf]
        %v2798 = vld [vmem:[#allocation7 + $0x1c4] sm:$0xf]
        %v2799 = vld [vmem:[#allocation7 + $0x1c8] sm:$0xf]
        %v2800 = vld [vmem:[#allocation7 + $0x1cc] sm:$0xf]
        %v2801 = vld [vmem:[#allocation7 + $0x1d0] sm:$0xf]
        %v2802 = vld [vmem:[#allocation7 + $0x1d4] sm:$0xf]
        %v2803 = vld [vmem:[#allocation7 + $0x1d8] sm:$0xf]
        %v2804 = vld [vmem:[#allocation7 + $0x1dc] sm:$0xf]
        %v2805 = vld [vmem:[#allocation7 + $0x1e0] sm:$0xf]
        %v2806 = vld [vmem:[#allocation7 + $0x1e4] sm:$0xf]
        %v2807 = vld [vmem:[#allocation7 + $0x1e8] sm:$0xf]
        %v2808 = vld [vmem:[#allocation7 + $0x1ec] sm:$0xf]
        %v2809 = vld [vmem:[#allocation7 + $0x1f0] sm:$0xf]
        %v2810 = vld [vmem:[#allocation7 + $0x1f4] sm:$0xf]
        %v2811 = vld [vmem:[#allocation7 + $0x1f8] sm:$0xf]
        %v2812 = vld [vmem:[#allocation7 + $0x1fc] sm:$0xf]
        %v2813 = vld [vmem:[#allocation4 + $0x20] sm:$0xff]
        %v2814 = vld [vmem:[#allocation4 + $0x28] sm:$0xff]
        %v2815 = vld [vmem:[#allocation4 + $0x30] sm:$0xff]
        %v2816 = vld [vmem:[#allocation4 + $0x38] sm:$0xff]
        %v2817 = vld [vmem:[#allocation4 + $0x60] sm:$0xff]
        %v2818 = vld [vmem:[#allocation4 + $0x68] sm:$0xff]
        %v2819 = vld [vmem:[#allocation4 + $0x70] sm:$0xff]
        %v2820 = vld [vmem:[#allocation4 + $0x78] sm:$0xff]
        %v2821 = vld [vmem:[#allocation4 + $0xa0] sm:$0xff]
        %v2822 = vld [vmem:[#allocation4 + $0xa8] sm:$0xff]
        %v2823 = vld [vmem:[#allocation4 + $0xb0] sm:$0xff]
        %v2824 = vld [vmem:[#allocation4 + $0xb8] sm:$0xff]
        %v2825 = vld [vmem:[#allocation4 + $0xe0] sm:$0xff]
        %v2826 = vld [vmem:[#allocation4 + $0xe8] sm:$0xff]
        %v2827 = vld [vmem:[#allocation4 + $0xf0] sm:$0xff]
        %v2828 = vld [vmem:[#allocation4 + $0xf8] sm:$0xff]
        %v2829 = vld [vmem:[#allocation4 + $0x120] sm:$0xff]
        %v2830 = vld [vmem:[#allocation4 + $0x128] sm:$0xff]
        %v2831 = vld [vmem:[#allocation4 + $0x130] sm:$0xff]
        %v2832 = vld [vmem:[#allocation4 + $0x138] sm:$0xff]
        %v2833 = vld [vmem:[#allocation4 + $0x160] sm:$0xff]
        %v2834 = vld [vmem:[#allocation4 + $0x168] sm:$0xff]
        %v2835 = vld [vmem:[#allocation4 + $0x170] sm:$0xff]
        %v2836 = vld [vmem:[#allocation4 + $0x178] sm:$0xff]
        %v2837 = vld [vmem:[#allocation4 + $0x1a0] sm:$0xff]
        %v2838 = vld [vmem:[#allocation4 + $0x1a8] sm:$0xff]
        %v2839 = vld [vmem:[#allocation4 + $0x1b0] sm:$0xff]
        %v2840 = vld [vmem:[#allocation4 + $0x1b8] sm:$0xff]
        %v2841 = vld [vmem:[#allocation4 + $0x1e0] sm:$0xff]
        %v2842 = vld [vmem:[#allocation4 + $0x1e8] sm:$0xff]
        %v2843 = vld [vmem:[#allocation4 + $0x1f0] sm:$0xff]
        %v2844 = vld [vmem:[#allocation4 + $0x1f8] sm:$0xff]
        %v2845 = vld [vmem:[#allocation4 + $0x220] sm:$0xff]
        %v2846 = vld [vmem:[#allocation4 + $0x228] sm:$0xff]
        %v2847 = vld [vmem:[#allocation4 + $0x230] sm:$0xff]
        %v2848 = vld [vmem:[#allocation4 + $0x238] sm:$0xff]
        %v2849 = vld [vmem:[#allocation4 + $0x260] sm:$0xff]
        %v2850 = vld [vmem:[#allocation4 + $0x268] sm:$0xff]
        %v2851 = vld [vmem:[#allocation4 + $0x270] sm:$0xff]
        %v2852 = vld [vmem:[#allocation4 + $0x278] sm:$0xff]
        %v2853 = vld [vmem:[#allocation4 + $0x2a0] sm:$0xff]
        %v2854 = vld [vmem:[#allocation4 + $0x2a8] sm:$0xff]
        %v2855 = vld [vmem:[#allocation4 + $0x2b0] sm:$0xff]
        %v2856 = vld [vmem:[#allocation4 + $0x2b8] sm:$0xff]
        %v2857 = vld [vmem:[#allocation4 + $0x2e0] sm:$0xff]
        %v2858 = vld [vmem:[#allocation4 + $0x2e8] sm:$0xff]
        %v2859 = vld [vmem:[#allocation4 + $0x2f0] sm:$0xff]
        %v2860 = vld [vmem:[#allocation4 + $0x2f8] sm:$0xff]
        %v2861 = vld [vmem:[#allocation4 + $0x320] sm:$0xff]
        %v2862 = vld [vmem:[#allocation4 + $0x328] sm:$0xff]
        %v2863 = vld [vmem:[#allocation4 + $0x330] sm:$0xff]
        %v2864 = vld [vmem:[#allocation4 + $0x338] sm:$0xff]
        %v2865 = vld [vmem:[#allocation4 + $0x360] sm:$0xff]
        %v2866 = vld [vmem:[#allocation4 + $0x368] sm:$0xff]
        %v2867 = vld [vmem:[#allocation4 + $0x370] sm:$0xff]
        %v2868 = vld [vmem:[#allocation4 + $0x378] sm:$0xff]
        %v2869 = vld [vmem:[#allocation4 + $0x3a0] sm:$0xff]
        %v2870 = vld [vmem:[#allocation4 + $0x3a8] sm:$0xff]
        %v2871 = vld [vmem:[#allocation4 + $0x3b0] sm:$0xff]
        %v2872 = vld [vmem:[#allocation4 + $0x3b8] sm:$0xff]
        %v2873 = vld [vmem:[#allocation4 + $0x3e0] sm:$0xff]
        %v2874 = vld [vmem:[#allocation4 + $0x3e8] sm:$0xff]
        %v2875 = vld [vmem:[#allocation4 + $0x3f0] sm:$0xff]
        %v2876 = vld [vmem:[#allocation4 + $0x3f8] sm:$0xff]
        %v2877 = vld [vmem:[%s15 + $0x8] sm:$0xff]
        %v2879 = vperm.slane %v2877, 0
        %v2880 = vperm.slane %v2877, 1
        %v2881 = vperm.slane %v2877, 2
        %v2882 = vperm.slane %v2877, 3
        %v2883 = vperm.slane %v2877, 4
        %v2884 = vperm.slane %v2877, 5
        %v2885 = vperm.slane %v2877, 6
        %v2886 = vperm.slane %v2877, 7
        %v2959 = vunpack.c.l.b16 %v2813
        %v2960 = vunpack.c.h.b16 %v2813
        %v2961 = vunpack.c.l.b16 %v2814
        %v2962 = vunpack.c.h.b16 %v2814
        %v2963 = vunpack.c.l.b16 %v2815
        %v2964 = vunpack.c.h.b16 %v2815
        %v2965 = vunpack.c.l.b16 %v2816
        %v2966 = vunpack.c.h.b16 %v2816
        %v2967 = vunpack.c.l.b16 %v2817
        %v2968 = vunpack.c.h.b16 %v2817
        %v2969 = vunpack.c.l.b16 %v2818
        %v2970 = vunpack.c.h.b16 %v2818
        %v2971 = vunpack.c.l.b16 %v2819
        %v2972 = vunpack.c.h.b16 %v2819
        %v2973 = vunpack.c.l.b16 %v2820
        %v2974 = vunpack.c.h.b16 %v2820
        %v2975 = vunpack.c.l.b16 %v2821
        %v2976 = vunpack.c.h.b16 %v2821
        %v2977 = vunpack.c.l.b16 %v2822
        %v2978 = vunpack.c.h.b16 %v2822
        %v2979 = vunpack.c.l.b16 %v2823
        %v2980 = vunpack.c.h.b16 %v2823
        %v2981 = vunpack.c.l.b16 %v2824
        %v2982 = vunpack.c.h.b16 %v2824
        %v2983 = vunpack.c.l.b16 %v2825
        %v2984 = vunpack.c.h.b16 %v2825
        %v2985 = vunpack.c.l.b16 %v2826
        %v2986 = vunpack.c.h.b16 %v2826
        %v2987 = vunpack.c.l.b16 %v2827
        %v2988 = vunpack.c.h.b16 %v2827
        %v2989 = vunpack.c.l.b16 %v2828
        %v2990 = vunpack.c.h.b16 %v2828
        %v2991 = vunpack.c.l.b16 %v2829
        %v2992 = vunpack.c.h.b16 %v2829
        %v2993 = vunpack.c.l.b16 %v2830
        %v2994 = vunpack.c.h.b16 %v2830
        %v2995 = vunpack.c.l.b16 %v2831
        %v2996 = vunpack.c.h.b16 %v2831
        %v2997 = vunpack.c.l.b16 %v2832
        %v2998 = vunpack.c.h.b16 %v2832
        %v2999 = vunpack.c.l.b16 %v2833
        %v3000 = vunpack.c.h.b16 %v2833
        %v3001 = vunpack.c.l.b16 %v2834
        %v3002 = vunpack.c.h.b16 %v2834
        %v3003 = vunpack.c.l.b16 %v2835
        %v3004 = vunpack.c.h.b16 %v2835
        %v3005 = vunpack.c.l.b16 %v2836
        %v3006 = vunpack.c.h.b16 %v2836
        %v3007 = vunpack.c.l.b16 %v2837
        %v3008 = vunpack.c.h.b16 %v2837
        %v3009 = vunpack.c.l.b16 %v2838
        %v3010 = vunpack.c.h.b16 %v2838
        %v3011 = vunpack.c.l.b16 %v2839
        %v3012 = vunpack.c.h.b16 %v2839
        %v3013 = vunpack.c.l.b16 %v2840
        %v3014 = vunpack.c.h.b16 %v2840
        %v3015 = vunpack.c.l.b16 %v2841
        %v3016 = vunpack.c.h.b16 %v2841
        %v3017 = vunpack.c.l.b16 %v2842
        %v3018 = vunpack.c.h.b16 %v2842
        %v3019 = vunpack.c.l.b16 %v2843
        %v3020 = vunpack.c.h.b16 %v2843
        %v3021 = vunpack.c.l.b16 %v2844
        %v3022 = vunpack.c.h.b16 %v2844
        %v3023 = vunpack.c.l.b16 %v2845
        %v3024 = vunpack.c.h.b16 %v2845
        %v3025 = vunpack.c.l.b16 %v2846
        %v3026 = vunpack.c.h.b16 %v2846
        %v3027 = vunpack.c.l.b16 %v2847
        %v3028 = vunpack.c.h.b16 %v2847
        %v3029 = vunpack.c.l.b16 %v2848
        %v3030 = vunpack.c.h.b16 %v2848
        %v3031 = vunpack.c.l.b16 %v2849
        %v3032 = vunpack.c.h.b16 %v2849
        %v3033 = vunpack.c.l.b16 %v2850
        %v3034 = vunpack.c.h.b16 %v2850
        %v3035 = vunpack.c.l.b16 %v2851
        %v3036 = vunpack.c.h.b16 %v2851
        %v3037 = vunpack.c.l.b16 %v2852
        %v3038 = vunpack.c.h.b16 %v2852
        %v3039 = vunpack.c.l.b16 %v2853
        %v3040 = vunpack.c.h.b16 %v2853
        %v3041 = vunpack.c.l.b16 %v2854
        %v3042 = vunpack.c.h.b16 %v2854
        %v3043 = vunpack.c.l.b16 %v2855
        %v3044 = vunpack.c.h.b16 %v2855
        %v3045 = vunpack.c.l.b16 %v2856
        %v3046 = vunpack.c.h.b16 %v2856
        %v3047 = vunpack.c.l.b16 %v2857
        %v3048 = vunpack.c.h.b16 %v2857
        %v3049 = vunpack.c.l.b16 %v2858
        %v3050 = vunpack.c.h.b16 %v2858
        %v3051 = vunpack.c.l.b16 %v2859
        %v3052 = vunpack.c.h.b16 %v2859
        %v3053 = vunpack.c.l.b16 %v2860
        %v3054 = vunpack.c.h.b16 %v2860
        %v3055 = vunpack.c.l.b16 %v2861
        %v3056 = vunpack.c.h.b16 %v2861
        %v3057 = vunpack.c.l.b16 %v2862
        %v3058 = vunpack.c.h.b16 %v2862
        %v3059 = vunpack.c.l.b16 %v2863
        %v3060 = vunpack.c.h.b16 %v2863
        %v3061 = vunpack.c.l.b16 %v2864
        %v3062 = vunpack.c.h.b16 %v2864
        %v3063 = vunpack.c.l.b16 %v2865
        %v3064 = vunpack.c.h.b16 %v2865
        %v3065 = vunpack.c.l.b16 %v2866
        %v3066 = vunpack.c.h.b16 %v2866
        %v3067 = vunpack.c.l.b16 %v2867
        %v3068 = vunpack.c.h.b16 %v2867
        %v3069 = vunpack.c.l.b16 %v2868
        %v3070 = vunpack.c.h.b16 %v2868
        %v3071 = vunpack.c.l.b16 %v2869
        %v3072 = vunpack.c.h.b16 %v2869
        %v3073 = vunpack.c.l.b16 %v2870
        %v3074 = vunpack.c.h.b16 %v2870
        %v3075 = vunpack.c.l.b16 %v2871
        %v3076 = vunpack.c.h.b16 %v2871
        %v3077 = vunpack.c.l.b16 %v2872
        %v3078 = vunpack.c.h.b16 %v2872
        %v3079 = vunpack.c.l.b16 %v2873
        %v3080 = vunpack.c.h.b16 %v2873
        %v3081 = vunpack.c.l.b16 %v2874
        %v3082 = vunpack.c.h.b16 %v2874
        %v3083 = vunpack.c.l.b16 %v2875
        %v3084 = vunpack.c.h.b16 %v2875
        %v3085 = vunpack.c.l.b16 %v2876
        %v3086 = vunpack.c.h.b16 %v2876
        %v3087 = vpack.c.b16 %v2967, %v2959
        %v3088 = vpack.c.b16 %v2968, %v2960
        %v3089 = vpack.c.b16 %v2969, %v2961
        %v3090 = vpack.c.b16 %v2970, %v2962
        %v3091 = vpack.c.b16 %v2971, %v2963
        %v3092 = vpack.c.b16 %v2972, %v2964
        %v3093 = vpack.c.b16 %v2973, %v2965
        %v3094 = vpack.c.b16 %v2974, %v2966
        %v3095 = vpack.c.b16 %v2983, %v2975
        %v3096 = vpack.c.b16 %v2984, %v2976
        %v3097 = vpack.c.b16 %v2985, %v2977
        %v3098 = vpack.c.b16 %v2986, %v2978
        %v3099 = vpack.c.b16 %v2987, %v2979
        %v3100 = vpack.c.b16 %v2988, %v2980
        %v3101 = vpack.c.b16 %v2989, %v2981
        %v3102 = vpack.c.b16 %v2990, %v2982
        %v3103 = vpack.c.b16 %v2999, %v2991
        %v3104 = vpack.c.b16 %v3000, %v2992
        %v3105 = vpack.c.b16 %v3001, %v2993
        %v3106 = vpack.c.b16 %v3002, %v2994
        %v3107 = vpack.c.b16 %v3003, %v2995
        %v3108 = vpack.c.b16 %v3004, %v2996
        %v3109 = vpack.c.b16 %v3005, %v2997
        %v3110 = vpack.c.b16 %v3006, %v2998
        %v3111 = vpack.c.b16 %v3015, %v3007
        %v3112 = vpack.c.b16 %v3016, %v3008
        %v3113 = vpack.c.b16 %v3017, %v3009
        %v3114 = vpack.c.b16 %v3018, %v3010
        %v3115 = vpack.c.b16 %v3019, %v3011
        %v3116 = vpack.c.b16 %v3020, %v3012
        %v3117 = vpack.c.b16 %v3021, %v3013
        %v3118 = vpack.c.b16 %v3022, %v3014
        %v3119 = vpack.c.b16 %v3031, %v3023
        %v3120 = vpack.c.b16 %v3032, %v3024
        %v3121 = vpack.c.b16 %v3033, %v3025
        %v3122 = vpack.c.b16 %v3034, %v3026
        %v3123 = vpack.c.b16 %v3035, %v3027
        %v3124 = vpack.c.b16 %v3036, %v3028
        %v3125 = vpack.c.b16 %v3037, %v3029
        %v3126 = vpack.c.b16 %v3038, %v3030
        %v3127 = vpack.c.b16 %v3047, %v3039
        %v3128 = vpack.c.b16 %v3048, %v3040
        %v3129 = vpack.c.b16 %v3049, %v3041
        %v3130 = vpack.c.b16 %v3050, %v3042
        %v3131 = vpack.c.b16 %v3051, %v3043
        %v3132 = vpack.c.b16 %v3052, %v3044
        %v3133 = vpack.c.b16 %v3053, %v3045
        %v3134 = vpack.c.b16 %v3054, %v3046
        %v3135 = vpack.c.b16 %v3063, %v3055
        %v3136 = vpack.c.b16 %v3064, %v3056
        %v3137 = vpack.c.b16 %v3065, %v3057
        %v3138 = vpack.c.b16 %v3066, %v3058
        %v3139 = vpack.c.b16 %v3067, %v3059
        %v3140 = vpack.c.b16 %v3068, %v3060
        %v3141 = vpack.c.b16 %v3069, %v3061
        %v3142 = vpack.c.b16 %v3070, %v3062
        %v3143 = vpack.c.b16 %v3079, %v3071
        %v3144 = vpack.c.b16 %v3080, %v3072
        %v3145 = vpack.c.b16 %v3081, %v3073
        %v3146 = vpack.c.b16 %v3082, %v3074
        %v3147 = vpack.c.b16 %v3083, %v3075
        %v3148 = vpack.c.b16 %v3084, %v3076
        %v3149 = vpack.c.b16 %v3085, %v3077
        %v3150 = vpack.c.b16 %v3086, %v3078
        %3215 = vmatpush.bf16.msra.mxu0 %v3143
        %3216 = vmatpush.bf16.msra.mxu0 %v3135
        %3217 = vmatpush.bf16.msra.mxu0 %v3127
        %3218 = vmatpush.bf16.msra.mxu0 %v3119
        %3219 = vmatpush.bf16.msra.mxu0 %v3111
        %3220 = vmatpush.bf16.msra.mxu0 %v3103
        %3221 = vmatpush.bf16.msra.mxu0 %v3095
        %3222 = vmatpush.bf16.msra.mxu0 %v3087
        %3223 = vmatmul.bf16.gmra.mxu0 %v2161
        %v3224 = vpop.f32.mrf.mxu0
        %v3225 = vadd.f32 %v2879, %v3224
        %v3226 = vpop.f32.mrf.mxu0
        %3227 = vdwg.mxu0
        %3228 = vmatpush.bf16.msra.mxu0 %v3144
        %3229 = vmatpush.bf16.msra.mxu0 %v3136
        %3230 = vmatpush.bf16.msra.mxu0 %v3128
        %3231 = vmatpush.bf16.msra.mxu0 %v3120
        %3232 = vmatpush.bf16.msra.mxu0 %v3112
        %3233 = vmatpush.bf16.msra.mxu0 %v3104
        %3234 = vmatpush.bf16.msra.mxu0 %v3096
        %3235 = vmatpush.bf16.msra.mxu0 %v3088
        %3236 = vmatmul.bf16.gmra.mxu0 %v2161
        %v3237 = vpop.f32.mrf.mxu0
        %v3238 = vadd.f32 %v2880, %v3237
        %v3239 = vpop.f32.mrf.mxu0
        %3240 = vdwg.mxu0
        %3241 = vmatpush.bf16.msra.mxu0 %v3145
        %3242 = vmatpush.bf16.msra.mxu0 %v3137
        %3243 = vmatpush.bf16.msra.mxu0 %v3129
        %3244 = vmatpush.bf16.msra.mxu0 %v3121
        %3245 = vmatpush.bf16.msra.mxu0 %v3113
        %3246 = vmatpush.bf16.msra.mxu0 %v3105
        %3247 = vmatpush.bf16.msra.mxu0 %v3097
        %3248 = vmatpush.bf16.msra.mxu0 %v3089
        %3249 = vmatmul.bf16.gmra.mxu0 %v2161
        %v3250 = vpop.f32.mrf.mxu0
        %v3251 = vadd.f32 %v2881, %v3250
        %v3252 = vpop.f32.mrf.mxu0
        %3253 = vdwg.mxu0
        %3254 = vmatpush.bf16.msra.mxu0 %v3146
        %3255 = vmatpush.bf16.msra.mxu0 %v3138
        %3256 = vmatpush.bf16.msra.mxu0 %v3130
        %3257 = vmatpush.bf16.msra.mxu0 %v3122
        %3258 = vmatpush.bf16.msra.mxu0 %v3114
        %3259 = vmatpush.bf16.msra.mxu0 %v3106
        %3260 = vmatpush.bf16.msra.mxu0 %v3098
        %3261 = vmatpush.bf16.msra.mxu0 %v3090
        %3262 = vmatmul.bf16.gmra.mxu0 %v2161
        %v3263 = vpop.f32.mrf.mxu0
        %v3264 = vadd.f32 %v2882, %v3263
        %v3265 = vpop.f32.mrf.mxu0
        %3266 = vdwg.mxu0
        %3267 = vmatpush.bf16.msra.mxu0 %v3147
        %3268 = vmatpush.bf16.msra.mxu0 %v3139
        %3269 = vmatpush.bf16.msra.mxu0 %v3131
        %3270 = vmatpush.bf16.msra.mxu0 %v3123
        %3271 = vmatpush.bf16.msra.mxu0 %v3115
        %3272 = vmatpush.bf16.msra.mxu0 %v3107
        %3273 = vmatpush.bf16.msra.mxu0 %v3099
        %3274 = vmatpush.bf16.msra.mxu0 %v3091
        %3275 = vmatmul.bf16.gmra.mxu0 %v2161
        %v3276 = vpop.f32.mrf.mxu0
        %v3277 = vadd.f32 %v2883, %v3276
        %v3278 = vpop.f32.mrf.mxu0
        %3279 = vdwg.mxu0
        %3280 = vmatpush.bf16.msra.mxu0 %v3148
        %3281 = vmatpush.bf16.msra.mxu0 %v3140
        %3282 = vmatpush.bf16.msra.mxu0 %v3132
        %3283 = vmatpush.bf16.msra.mxu0 %v3124
        %3284 = vmatpush.bf16.msra.mxu0 %v3116
        %3285 = vmatpush.bf16.msra.mxu0 %v3108
        %3286 = vmatpush.bf16.msra.mxu0 %v3100
        %3287 = vmatpush.bf16.msra.mxu0 %v3092
        %3288 = vmatmul.bf16.gmra.mxu0 %v2161
        %v3289 = vpop.f32.mrf.mxu0
        %v3290 = vadd.f32 %v2884, %v3289
        %v3291 = vpop.f32.mrf.mxu0
        %3292 = vdwg.mxu0
        %3293 = vmatpush.bf16.msra.mxu0 %v3149
        %3294 = vmatpush.bf16.msra.mxu0 %v3141
        %3295 = vmatpush.bf16.msra.mxu0 %v3133
        %3296 = vmatpush.bf16.msra.mxu0 %v3125
        %3297 = vmatpush.bf16.msra.mxu0 %v3117
        %3298 = vmatpush.bf16.msra.mxu0 %v3109
        %3299 = vmatpush.bf16.msra.mxu0 %v3101
        %3300 = vmatpush.bf16.msra.mxu0 %v3093
        %3301 = vmatmul.bf16.gmra.mxu0 %v2161
        %v3302 = vpop.f32.mrf.mxu0
        %v3303 = vadd.f32 %v2885, %v3302
        %v3304 = vpop.f32.mrf.mxu0
        %3305 = vdwg.mxu0
        %3306 = vmatpush.bf16.msra.mxu0 %v3150
        %3307 = vmatpush.bf16.msra.mxu0 %v3142
        %3308 = vmatpush.bf16.msra.mxu0 %v3134
        %3309 = vmatpush.bf16.msra.mxu0 %v3126
        %3310 = vmatpush.bf16.msra.mxu0 %v3118
        %3311 = vmatpush.bf16.msra.mxu0 %v3110
        %3312 = vmatpush.bf16.msra.mxu0 %v3102
        %3313 = vmatpush.bf16.msra.mxu0 %v3094
        %3314 = vmatmul.bf16.gmra.mxu0 %v2161
        %v3315 = vpop.f32.mrf.mxu0
        %v3316 = vadd.f32 %v2886, %v3315
        %v3317 = vpop.f32.mrf.mxu0
        %3318 = vdwg.mxu0
        %v3319 = vmax.f32 %v3225, 0.0
        %v3320 = vmax.f32 %v3238, 0.0
        %v3321 = vmax.f32 %v3251, 0.0
        %v3322 = vmax.f32 %v3264, 0.0
        %v3323 = vmax.f32 %v3277, 0.0
        %v3324 = vmax.f32 %v3290, 0.0
        %v3325 = vmax.f32 %v3303, 0.0
        %v3326 = vmax.f32 %v3316, 0.0
        %v3327 = vpack.c.bf16 %v3319, %v3319
        %v3328 = vpack.c.bf16 %v3320, %v3320
        %v3329 = vpack.c.bf16 %v3321, %v3321
        %v3330 = vpack.c.bf16 %v3322, %v3322
        %v3331 = vpack.c.bf16 %v3323, %v3323
        %v3332 = vpack.c.bf16 %v3324, %v3324
        %v3333 = vpack.c.bf16 %v3325, %v3325
        %v3334 = vpack.c.bf16 %v3326, %v3326
        %v3335 = vld [vmem:[#allocation7 + $0x200] sm:$0xf]
        %v3336 = vld [vmem:[#allocation7 + $0x204] sm:$0xf]
        %v3337 = vld [vmem:[#allocation7 + $0x208] sm:$0xf]
        %v3338 = vld [vmem:[#allocation7 + $0x20c] sm:$0xf]
        %v3339 = vld [vmem:[#allocation7 + $0x210] sm:$0xf]
        %v3340 = vld [vmem:[#allocation7 + $0x214] sm:$0xf]
        %v3341 = vld [vmem:[#allocation7 + $0x218] sm:$0xf]
        %v3342 = vld [vmem:[#allocation7 + $0x21c] sm:$0xf]
        %v3343 = vld [vmem:[#allocation7 + $0x220] sm:$0xf]
        %v3344 = vld [vmem:[#allocation7 + $0x224] sm:$0xf]
        %v3345 = vld [vmem:[#allocation7 + $0x228] sm:$0xf]
        %v3346 = vld [vmem:[#allocation7 + $0x22c] sm:$0xf]
        %v3347 = vld [vmem:[#allocation7 + $0x230] sm:$0xf]
        %v3348 = vld [vmem:[#allocation7 + $0x234] sm:$0xf]
        %v3349 = vld [vmem:[#allocation7 + $0x238] sm:$0xf]
        %v3350 = vld [vmem:[#allocation7 + $0x23c] sm:$0xf]
        %v3351 = vld [vmem:[#allocation7 + $0x240] sm:$0xf]
        %v3352 = vld [vmem:[#allocation7 + $0x244] sm:$0xf]
        %v3353 = vld [vmem:[#allocation7 + $0x248] sm:$0xf]
        %v3354 = vld [vmem:[#allocation7 + $0x24c] sm:$0xf]
        %v3355 = vld [vmem:[#allocation7 + $0x250] sm:$0xf]
        %v3356 = vld [vmem:[#allocation7 + $0x254] sm:$0xf]
        %v3357 = vld [vmem:[#allocation7 + $0x258] sm:$0xf]
        %v3358 = vld [vmem:[#allocation7 + $0x25c] sm:$0xf]
        %v3359 = vld [vmem:[#allocation7 + $0x260] sm:$0xf]
        %v3360 = vld [vmem:[#allocation7 + $0x264] sm:$0xf]
        %v3361 = vld [vmem:[#allocation7 + $0x268] sm:$0xf]
        %v3362 = vld [vmem:[#allocation7 + $0x26c] sm:$0xf]
        %v3363 = vld [vmem:[#allocation7 + $0x270] sm:$0xf]
        %v3364 = vld [vmem:[#allocation7 + $0x274] sm:$0xf]
        %v3365 = vld [vmem:[#allocation7 + $0x278] sm:$0xf]
        %v3366 = vld [vmem:[#allocation7 + $0x27c] sm:$0xf]
        %v3367 = vld [vmem:[#allocation7 + $0x280] sm:$0xf]
        %v3368 = vld [vmem:[#allocation7 + $0x284] sm:$0xf]
        %v3369 = vld [vmem:[#allocation7 + $0x288] sm:$0xf]
        %v3370 = vld [vmem:[#allocation7 + $0x28c] sm:$0xf]
        %v3371 = vld [vmem:[#allocation7 + $0x290] sm:$0xf]
        %v3372 = vld [vmem:[#allocation7 + $0x294] sm:$0xf]
        %v3373 = vld [vmem:[#allocation7 + $0x298] sm:$0xf]
        %v3374 = vld [vmem:[#allocation7 + $0x29c] sm:$0xf]
        %v3375 = vld [vmem:[#allocation7 + $0x2a0] sm:$0xf]
        %v3376 = vld [vmem:[#allocation7 + $0x2a4] sm:$0xf]
        %v3377 = vld [vmem:[#allocation7 + $0x2a8] sm:$0xf]
        %v3378 = vld [vmem:[#allocation7 + $0x2ac] sm:$0xf]
        %v3379 = vld [vmem:[#allocation7 + $0x2b0] sm:$0xf]
        %v3380 = vld [vmem:[#allocation7 + $0x2b4] sm:$0xf]
        %v3381 = vld [vmem:[#allocation7 + $0x2b8] sm:$0xf]
        %v3382 = vld [vmem:[#allocation7 + $0x2bc] sm:$0xf]
        %v3383 = vld [vmem:[#allocation7 + $0x2c0] sm:$0xf]
        %v3384 = vld [vmem:[#allocation7 + $0x2c4] sm:$0xf]
        %v3385 = vld [vmem:[#allocation7 + $0x2c8] sm:$0xf]
        %v3386 = vld [vmem:[#allocation7 + $0x2cc] sm:$0xf]
        %v3387 = vld [vmem:[#allocation7 + $0x2d0] sm:$0xf]
        %v3388 = vld [vmem:[#allocation7 + $0x2d4] sm:$0xf]
        %v3389 = vld [vmem:[#allocation7 + $0x2d8] sm:$0xf]
        %v3390 = vld [vmem:[#allocation7 + $0x2dc] sm:$0xf]
        %v3391 = vld [vmem:[#allocation7 + $0x2e0] sm:$0xf]
        %v3392 = vld [vmem:[#allocation7 + $0x2e4] sm:$0xf]
        %v3393 = vld [vmem:[#allocation7 + $0x2e8] sm:$0xf]
        %v3394 = vld [vmem:[#allocation7 + $0x2ec] sm:$0xf]
        %v3395 = vld [vmem:[#allocation7 + $0x2f0] sm:$0xf]
        %v3396 = vld [vmem:[#allocation7 + $0x2f4] sm:$0xf]
        %v3397 = vld [vmem:[#allocation7 + $0x2f8] sm:$0xf]
        %v3398 = vld [vmem:[#allocation7 + $0x2fc] sm:$0xf]
        %v3399 = vld [vmem:[#allocation7 + $0x300] sm:$0xf]
        %v3400 = vld [vmem:[#allocation7 + $0x304] sm:$0xf]
        %v3401 = vld [vmem:[#allocation7 + $0x308] sm:$0xf]
        %v3402 = vld [vmem:[#allocation7 + $0x30c] sm:$0xf]
        %v3403 = vld [vmem:[#allocation7 + $0x310] sm:$0xf]
        %v3404 = vld [vmem:[#allocation7 + $0x314] sm:$0xf]
        %v3405 = vld [vmem:[#allocation7 + $0x318] sm:$0xf]
        %v3406 = vld [vmem:[#allocation7 + $0x31c] sm:$0xf]
        %v3407 = vld [vmem:[#allocation7 + $0x320] sm:$0xf]
        %v3408 = vld [vmem:[#allocation7 + $0x324] sm:$0xf]
        %v3409 = vld [vmem:[#allocation7 + $0x328] sm:$0xf]
        %v3410 = vld [vmem:[#allocation7 + $0x32c] sm:$0xf]
        %v3411 = vld [vmem:[#allocation7 + $0x330] sm:$0xf]
        %v3412 = vld [vmem:[#allocation7 + $0x334] sm:$0xf]
        %v3413 = vld [vmem:[#allocation7 + $0x338] sm:$0xf]
        %v3414 = vld [vmem:[#allocation7 + $0x33c] sm:$0xf]
        %v3415 = vld [vmem:[#allocation7 + $0x340] sm:$0xf]
        %v3416 = vld [vmem:[#allocation7 + $0x344] sm:$0xf]
        %v3417 = vld [vmem:[#allocation7 + $0x348] sm:$0xf]
        %v3418 = vld [vmem:[#allocation7 + $0x34c] sm:$0xf]
        %v3419 = vld [vmem:[#allocation7 + $0x350] sm:$0xf]
        %v3420 = vld [vmem:[#allocation7 + $0x354] sm:$0xf]
        %v3421 = vld [vmem:[#allocation7 + $0x358] sm:$0xf]
        %v3422 = vld [vmem:[#allocation7 + $0x35c] sm:$0xf]
        %v3423 = vld [vmem:[#allocation7 + $0x360] sm:$0xf]
        %v3424 = vld [vmem:[#allocation7 + $0x364] sm:$0xf]
        %v3425 = vld [vmem:[#allocation7 + $0x368] sm:$0xf]
        %v3426 = vld [vmem:[#allocation7 + $0x36c] sm:$0xf]
        %v3427 = vld [vmem:[#allocation7 + $0x370] sm:$0xf]
        %v3428 = vld [vmem:[#allocation7 + $0x374] sm:$0xf]
        %v3429 = vld [vmem:[#allocation7 + $0x378] sm:$0xf]
        %v3430 = vld [vmem:[#allocation7 + $0x37c] sm:$0xf]
        %v3431 = vld [vmem:[#allocation7 + $0x380] sm:$0xf]
        %v3432 = vld [vmem:[#allocation7 + $0x384] sm:$0xf]
        %v3433 = vld [vmem:[#allocation7 + $0x388] sm:$0xf]
        %v3434 = vld [vmem:[#allocation7 + $0x38c] sm:$0xf]
        %v3435 = vld [vmem:[#allocation7 + $0x390] sm:$0xf]
        %v3436 = vld [vmem:[#allocation7 + $0x394] sm:$0xf]
        %v3437 = vld [vmem:[#allocation7 + $0x398] sm:$0xf]
        %v3438 = vld [vmem:[#allocation7 + $0x39c] sm:$0xf]
        %v3439 = vld [vmem:[#allocation7 + $0x3a0] sm:$0xf]
        %v3440 = vld [vmem:[#allocation7 + $0x3a4] sm:$0xf]
        %v3441 = vld [vmem:[#allocation7 + $0x3a8] sm:$0xf]
        %v3442 = vld [vmem:[#allocation7 + $0x3ac] sm:$0xf]
        %v3443 = vld [vmem:[#allocation7 + $0x3b0] sm:$0xf]
        %v3444 = vld [vmem:[#allocation7 + $0x3b4] sm:$0xf]
        %v3445 = vld [vmem:[#allocation7 + $0x3b8] sm:$0xf]
        %v3446 = vld [vmem:[#allocation7 + $0x3bc] sm:$0xf]
        %v3447 = vld [vmem:[#allocation7 + $0x3c0] sm:$0xf]
        %v3448 = vld [vmem:[#allocation7 + $0x3c4] sm:$0xf]
        %v3449 = vld [vmem:[#allocation7 + $0x3c8] sm:$0xf]
        %v3450 = vld [vmem:[#allocation7 + $0x3cc] sm:$0xf]
        %v3451 = vld [vmem:[#allocation7 + $0x3d0] sm:$0xf]
        %v3452 = vld [vmem:[#allocation7 + $0x3d4] sm:$0xf]
        %v3453 = vld [vmem:[#allocation7 + $0x3d8] sm:$0xf]
        %v3454 = vld [vmem:[#allocation7 + $0x3dc] sm:$0xf]
        %v3455 = vld [vmem:[#allocation7 + $0x3e0] sm:$0xf]
        %v3456 = vld [vmem:[#allocation7 + $0x3e4] sm:$0xf]
        %v3457 = vld [vmem:[#allocation7 + $0x3e8] sm:$0xf]
        %v3458 = vld [vmem:[#allocation7 + $0x3ec] sm:$0xf]
        %v3459 = vld [vmem:[#allocation7 + $0x3f0] sm:$0xf]
        %v3460 = vld [vmem:[#allocation7 + $0x3f4] sm:$0xf]
        %v3461 = vld [vmem:[#allocation7 + $0x3f8] sm:$0xf]
        %v3462 = vld [vmem:[#allocation7 + $0x3fc] sm:$0xf]
        %v3591 = vunpack.c.l.b16 %v3335
        %v3592 = vunpack.c.l.b16 %v3336
        %v3593 = vunpack.c.l.b16 %v3337
        %v3594 = vunpack.c.l.b16 %v3338
        %v3595 = vunpack.c.l.b16 %v3339
        %v3596 = vunpack.c.l.b16 %v3340
        %v3597 = vunpack.c.l.b16 %v3341
        %v3598 = vunpack.c.l.b16 %v3342
        %v3599 = vunpack.c.l.b16 %v3343
        %v3600 = vunpack.c.l.b16 %v3344
        %v3601 = vunpack.c.l.b16 %v3345
        %v3602 = vunpack.c.l.b16 %v3346
        %v3603 = vunpack.c.l.b16 %v3347
        %v3604 = vunpack.c.l.b16 %v3348
        %v3605 = vunpack.c.l.b16 %v3349
        %v3606 = vunpack.c.l.b16 %v3350
        %v3607 = vunpack.c.l.b16 %v3351
        %v3608 = vunpack.c.l.b16 %v3352
        %v3609 = vunpack.c.l.b16 %v3353
        %v3610 = vunpack.c.l.b16 %v3354
        %v3611 = vunpack.c.l.b16 %v3355
        %v3612 = vunpack.c.l.b16 %v3356
        %v3613 = vunpack.c.l.b16 %v3357
        %v3614 = vunpack.c.l.b16 %v3358
        %v3615 = vunpack.c.l.b16 %v3359
        %v3616 = vunpack.c.l.b16 %v3360
        %v3617 = vunpack.c.l.b16 %v3361
        %v3618 = vunpack.c.l.b16 %v3362
        %v3619 = vunpack.c.l.b16 %v3363
        %v3620 = vunpack.c.l.b16 %v3364
        %v3621 = vunpack.c.l.b16 %v3365
        %v3622 = vunpack.c.l.b16 %v3366
        %v3623 = vunpack.c.l.b16 %v3367
        %v3624 = vunpack.c.l.b16 %v3368
        %v3625 = vunpack.c.l.b16 %v3369
        %v3626 = vunpack.c.l.b16 %v3370
        %v3627 = vunpack.c.l.b16 %v3371
        %v3628 = vunpack.c.l.b16 %v3372
        %v3629 = vunpack.c.l.b16 %v3373
        %v3630 = vunpack.c.l.b16 %v3374
        %v3631 = vunpack.c.l.b16 %v3375
        %v3632 = vunpack.c.l.b16 %v3376
        %v3633 = vunpack.c.l.b16 %v3377
        %v3634 = vunpack.c.l.b16 %v3378
        %v3635 = vunpack.c.l.b16 %v3379
        %v3636 = vunpack.c.l.b16 %v3380
        %v3637 = vunpack.c.l.b16 %v3381
        %v3638 = vunpack.c.l.b16 %v3382
        %v3639 = vunpack.c.l.b16 %v3383
        %v3640 = vunpack.c.l.b16 %v3384
        %v3641 = vunpack.c.l.b16 %v3385
        %v3642 = vunpack.c.l.b16 %v3386
        %v3643 = vunpack.c.l.b16 %v3387
        %v3644 = vunpack.c.l.b16 %v3388
        %v3645 = vunpack.c.l.b16 %v3389
        %v3646 = vunpack.c.l.b16 %v3390
        %v3647 = vunpack.c.l.b16 %v3391
        %v3648 = vunpack.c.l.b16 %v3392
        %v3649 = vunpack.c.l.b16 %v3393
        %v3650 = vunpack.c.l.b16 %v3394
        %v3651 = vunpack.c.l.b16 %v3395
        %v3652 = vunpack.c.l.b16 %v3396
        %v3653 = vunpack.c.l.b16 %v3397
        %v3654 = vunpack.c.l.b16 %v3398
        %v3655 = vunpack.c.l.b16 %v3399
        %v3656 = vunpack.c.l.b16 %v3400
        %v3657 = vunpack.c.l.b16 %v3401
        %v3658 = vunpack.c.l.b16 %v3402
        %v3659 = vunpack.c.l.b16 %v3403
        %v3660 = vunpack.c.l.b16 %v3404
        %v3661 = vunpack.c.l.b16 %v3405
        %v3662 = vunpack.c.l.b16 %v3406
        %v3663 = vunpack.c.l.b16 %v3407
        %v3664 = vunpack.c.l.b16 %v3408
        %v3665 = vunpack.c.l.b16 %v3409
        %v3666 = vunpack.c.l.b16 %v3410
        %v3667 = vunpack.c.l.b16 %v3411
        %v3668 = vunpack.c.l.b16 %v3412
        %v3669 = vunpack.c.l.b16 %v3413
        %v3670 = vunpack.c.l.b16 %v3414
        %v3671 = vunpack.c.l.b16 %v3415
        %v3672 = vunpack.c.l.b16 %v3416
        %v3673 = vunpack.c.l.b16 %v3417
        %v3674 = vunpack.c.l.b16 %v3418
        %v3675 = vunpack.c.l.b16 %v3419
        %v3676 = vunpack.c.l.b16 %v3420
        %v3677 = vunpack.c.l.b16 %v3421
        %v3678 = vunpack.c.l.b16 %v3422
        %v3679 = vunpack.c.l.b16 %v3423
        %v3680 = vunpack.c.l.b16 %v3424
        %v3681 = vunpack.c.l.b16 %v3425
        %v3682 = vunpack.c.l.b16 %v3426
        %v3683 = vunpack.c.l.b16 %v3427
        %v3684 = vunpack.c.l.b16 %v3428
        %v3685 = vunpack.c.l.b16 %v3429
        %v3686 = vunpack.c.l.b16 %v3430
        %v3687 = vunpack.c.l.b16 %v3431
        %v3688 = vunpack.c.l.b16 %v3432
        %v3689 = vunpack.c.l.b16 %v3433
        %v3690 = vunpack.c.l.b16 %v3434
        %v3691 = vunpack.c.l.b16 %v3435
        %v3692 = vunpack.c.l.b16 %v3436
        %v3693 = vunpack.c.l.b16 %v3437
        %v3694 = vunpack.c.l.b16 %v3438
        %v3695 = vunpack.c.l.b16 %v3439
        %v3696 = vunpack.c.l.b16 %v3440
        %v3697 = vunpack.c.l.b16 %v3441
        %v3698 = vunpack.c.l.b16 %v3442
        %v3699 = vunpack.c.l.b16 %v3443
        %v3700 = vunpack.c.l.b16 %v3444
        %v3701 = vunpack.c.l.b16 %v3445
        %v3702 = vunpack.c.l.b16 %v3446
        %v3703 = vunpack.c.l.b16 %v3447
        %v3704 = vunpack.c.l.b16 %v3448
        %v3705 = vunpack.c.l.b16 %v3449
        %v3706 = vunpack.c.l.b16 %v3450
        %v3707 = vunpack.c.l.b16 %v3451
        %v3708 = vunpack.c.l.b16 %v3452
        %v3709 = vunpack.c.l.b16 %v3453
        %v3710 = vunpack.c.l.b16 %v3454
        %v3711 = vunpack.c.l.b16 %v3455
        %v3712 = vunpack.c.l.b16 %v3456
        %v3713 = vunpack.c.l.b16 %v3457
        %v3714 = vunpack.c.l.b16 %v3458
        %v3715 = vunpack.c.l.b16 %v3459
        %v3716 = vunpack.c.l.b16 %v3460
        %v3717 = vunpack.c.l.b16 %v3461
        %v3718 = vunpack.c.l.b16 %v3462
        %v3719 = vpack.c.b16 %v3592, %v3591
        %v3720 = vpack.c.b16 %v3594, %v3593
        %v3721 = vpack.c.b16 %v3596, %v3595
        %v3722 = vpack.c.b16 %v3598, %v3597
        %v3723 = vpack.c.b16 %v3600, %v3599
        %v3724 = vpack.c.b16 %v3602, %v3601
        %v3725 = vpack.c.b16 %v3604, %v3603
        %v3726 = vpack.c.b16 %v3606, %v3605
        %v3727 = vpack.c.b16 %v3608, %v3607
        %v3728 = vpack.c.b16 %v3610, %v3609
        %v3729 = vpack.c.b16 %v3612, %v3611
        %v3730 = vpack.c.b16 %v3614, %v3613
        %v3731 = vpack.c.b16 %v3616, %v3615
        %v3732 = vpack.c.b16 %v3618, %v3617
        %v3733 = vpack.c.b16 %v3620, %v3619
        %v3734 = vpack.c.b16 %v3622, %v3621
        %v3735 = vpack.c.b16 %v3624, %v3623
        %v3736 = vpack.c.b16 %v3626, %v3625
        %v3737 = vpack.c.b16 %v3628, %v3627
        %v3738 = vpack.c.b16 %v3630, %v3629
        %v3739 = vpack.c.b16 %v3632, %v3631
        %v3740 = vpack.c.b16 %v3634, %v3633
        %v3741 = vpack.c.b16 %v3636, %v3635
        %v3742 = vpack.c.b16 %v3638, %v3637
        %v3743 = vpack.c.b16 %v3640, %v3639
        %v3744 = vpack.c.b16 %v3642, %v3641
        %v3745 = vpack.c.b16 %v3644, %v3643
        %v3746 = vpack.c.b16 %v3646, %v3645
        %v3747 = vpack.c.b16 %v3648, %v3647
        %v3748 = vpack.c.b16 %v3650, %v3649
        %v3749 = vpack.c.b16 %v3652, %v3651
        %v3750 = vpack.c.b16 %v3654, %v3653
        %v3751 = vpack.c.b16 %v3656, %v3655
        %v3752 = vpack.c.b16 %v3658, %v3657
        %v3753 = vpack.c.b16 %v3660, %v3659
        %v3754 = vpack.c.b16 %v3662, %v3661
        %v3755 = vpack.c.b16 %v3664, %v3663
        %v3756 = vpack.c.b16 %v3666, %v3665
        %v3757 = vpack.c.b16 %v3668, %v3667
        %v3758 = vpack.c.b16 %v3670, %v3669
        %v3759 = vpack.c.b16 %v3672, %v3671
        %v3760 = vpack.c.b16 %v3674, %v3673
        %v3761 = vpack.c.b16 %v3676, %v3675
        %v3762 = vpack.c.b16 %v3678, %v3677
        %v3763 = vpack.c.b16 %v3680, %v3679
        %v3764 = vpack.c.b16 %v3682, %v3681
        %v3765 = vpack.c.b16 %v3684, %v3683
        %v3766 = vpack.c.b16 %v3686, %v3685
        %v3767 = vpack.c.b16 %v3688, %v3687
        %v3768 = vpack.c.b16 %v3690, %v3689
        %v3769 = vpack.c.b16 %v3692, %v3691
        %v3770 = vpack.c.b16 %v3694, %v3693
        %v3771 = vpack.c.b16 %v3696, %v3695
        %v3772 = vpack.c.b16 %v3698, %v3697
        %v3773 = vpack.c.b16 %v3700, %v3699
        %v3774 = vpack.c.b16 %v3702, %v3701
        %v3775 = vpack.c.b16 %v3704, %v3703
        %v3776 = vpack.c.b16 %v3706, %v3705
        %v3777 = vpack.c.b16 %v3708, %v3707
        %v3778 = vpack.c.b16 %v3710, %v3709
        %v3779 = vpack.c.b16 %v3712, %v3711
        %v3780 = vpack.c.b16 %v3714, %v3713
        %v3781 = vpack.c.b16 %v3716, %v3715
        %v3782 = vpack.c.b16 %v3718, %v3717
        %3847 = vmatpush.bf16.msra.mxu0 %v3726
        %3848 = vmatpush.bf16.msra.mxu0 %v3725
        %3849 = vmatpush.bf16.msra.mxu0 %v3724
        %3850 = vmatpush.bf16.msra.mxu0 %v3723
        %3851 = vmatpush.bf16.msra.mxu0 %v3722
        %3852 = vmatpush.bf16.msra.mxu0 %v3721
        %3853 = vmatpush.bf16.msra.mxu0 %v3720
        %3854 = vmatpush.bf16.msra.mxu0 %v3719
        %3855 = vmatmul.bf16.gmra.mxu0 %v3327
        %v3856 = vpop.f32.mrf.mxu0
        %v3857 = vadd.f32 0.0, %v3856
        %v3858 = vpop.f32.mrf.mxu0
        %3859 = vdwg.mxu0
        %3860 = vmatpush.bf16.msra.mxu0 %v3734
        %3861 = vmatpush.bf16.msra.mxu0 %v3733
        %3862 = vmatpush.bf16.msra.mxu0 %v3732
        %3863 = vmatpush.bf16.msra.mxu0 %v3731
        %3864 = vmatpush.bf16.msra.mxu0 %v3730
        %3865 = vmatpush.bf16.msra.mxu0 %v3729
        %3866 = vmatpush.bf16.msra.mxu0 %v3728
        %3867 = vmatpush.bf16.msra.mxu0 %v3727
        %3868 = vmatmul.bf16.gmra.mxu0 %v3328
        %v3869 = vpop.f32.mrf.mxu0
        %v3870 = vadd.f32 %v3857, %v3869
        %v3871 = vpop.f32.mrf.mxu0
        %3872 = vdwg.mxu0
        %3873 = vmatpush.bf16.msra.mxu0 %v3742
        %3874 = vmatpush.bf16.msra.mxu0 %v3741
        %3875 = vmatpush.bf16.msra.mxu0 %v3740
        %3876 = vmatpush.bf16.msra.mxu0 %v3739
        %3877 = vmatpush.bf16.msra.mxu0 %v3738
        %3878 = vmatpush.bf16.msra.mxu0 %v3737
        %3879 = vmatpush.bf16.msra.mxu0 %v3736
        %3880 = vmatpush.bf16.msra.mxu0 %v3735
        %3881 = vmatmul.bf16.gmra.mxu0 %v3329
        %v3882 = vpop.f32.mrf.mxu0
        %v3883 = vadd.f32 %v3870, %v3882
        %v3884 = vpop.f32.mrf.mxu0
        %3885 = vdwg.mxu0
        %3886 = vmatpush.bf16.msra.mxu0 %v3750
        %3887 = vmatpush.bf16.msra.mxu0 %v3749
        %3888 = vmatpush.bf16.msra.mxu0 %v3748
        %3889 = vmatpush.bf16.msra.mxu0 %v3747
        %3890 = vmatpush.bf16.msra.mxu0 %v3746
        %3891 = vmatpush.bf16.msra.mxu0 %v3745
        %3892 = vmatpush.bf16.msra.mxu0 %v3744
        %3893 = vmatpush.bf16.msra.mxu0 %v3743
        %3894 = vmatmul.bf16.gmra.mxu0 %v3330
        %v3895 = vpop.f32.mrf.mxu0
        %v3896 = vadd.f32 %v3883, %v3895
        %v3897 = vpop.f32.mrf.mxu0
        %3898 = vdwg.mxu0
        %3899 = vmatpush.bf16.msra.mxu0 %v3758
        %3900 = vmatpush.bf16.msra.mxu0 %v3757
        %3901 = vmatpush.bf16.msra.mxu0 %v3756
        %3902 = vmatpush.bf16.msra.mxu0 %v3755
        %3903 = vmatpush.bf16.msra.mxu0 %v3754
        %3904 = vmatpush.bf16.msra.mxu0 %v3753
        %3905 = vmatpush.bf16.msra.mxu0 %v3752
        %3906 = vmatpush.bf16.msra.mxu0 %v3751
        %3907 = vmatmul.bf16.gmra.mxu0 %v3331
        %v3908 = vpop.f32.mrf.mxu0
        %v3909 = vadd.f32 %v3896, %v3908
        %v3910 = vpop.f32.mrf.mxu0
        %3911 = vdwg.mxu0
        %3912 = vmatpush.bf16.msra.mxu0 %v3766
        %3913 = vmatpush.bf16.msra.mxu0 %v3765
        %3914 = vmatpush.bf16.msra.mxu0 %v3764
        %3915 = vmatpush.bf16.msra.mxu0 %v3763
        %3916 = vmatpush.bf16.msra.mxu0 %v3762
        %3917 = vmatpush.bf16.msra.mxu0 %v3761
        %3918 = vmatpush.bf16.msra.mxu0 %v3760
        %3919 = vmatpush.bf16.msra.mxu0 %v3759
        %3920 = vmatmul.bf16.gmra.mxu0 %v3332
        %v3921 = vpop.f32.mrf.mxu0
        %v3922 = vadd.f32 %v3909, %v3921
        %v3923 = vpop.f32.mrf.mxu0
        %3924 = vdwg.mxu0
        %3925 = vmatpush.bf16.msra.mxu0 %v3774
        %3926 = vmatpush.bf16.msra.mxu0 %v3773
        %3927 = vmatpush.bf16.msra.mxu0 %v3772
        %3928 = vmatpush.bf16.msra.mxu0 %v3771
        %3929 = vmatpush.bf16.msra.mxu0 %v3770
        %3930 = vmatpush.bf16.msra.mxu0 %v3769
        %3931 = vmatpush.bf16.msra.mxu0 %v3768
        %3932 = vmatpush.bf16.msra.mxu0 %v3767
        %3933 = vmatmul.bf16.gmra.mxu0 %v3333
        %v3934 = vpop.f32.mrf.mxu0
        %v3935 = vadd.f32 %v3922, %v3934
        %v3936 = vpop.f32.mrf.mxu0
        %3937 = vdwg.mxu0
        %3938 = vmatpush.bf16.msra.mxu0 %v3782
        %3939 = vmatpush.bf16.msra.mxu0 %v3781
        %3940 = vmatpush.bf16.msra.mxu0 %v3780
        %3941 = vmatpush.bf16.msra.mxu0 %v3779
        %3942 = vmatpush.bf16.msra.mxu0 %v3778
        %3943 = vmatpush.bf16.msra.mxu0 %v3777
        %3944 = vmatpush.bf16.msra.mxu0 %v3776
        %3945 = vmatpush.bf16.msra.mxu0 %v3775
        %3946 = vmatmul.bf16.gmra.mxu0 %v3334
        %v3947 = vpop.f32.mrf.mxu0
        %v3948 = vadd.f32 %v3935, %v3947
        %v3949 = vpop.f32.mrf.mxu0
        %3950 = vdwg.mxu0
        %v4079 = vunpack.c.l.b16 %v2685
        %v4080 = vunpack.c.l.b16 %v2686
        %v4081 = vunpack.c.l.b16 %v2687
        %v4082 = vunpack.c.l.b16 %v2688
        %v4083 = vunpack.c.l.b16 %v2689
        %v4084 = vunpack.c.l.b16 %v2690
        %v4085 = vunpack.c.l.b16 %v2691
        %v4086 = vunpack.c.l.b16 %v2692
        %v4087 = vunpack.c.l.b16 %v2693
        %v4088 = vunpack.c.l.b16 %v2694
        %v4089 = vunpack.c.l.b16 %v2695
        %v4090 = vunpack.c.l.b16 %v2696
        %v4091 = vunpack.c.l.b16 %v2697
        %v4092 = vunpack.c.l.b16 %v2698
        %v4093 = vunpack.c.l.b16 %v2699
        %v4094 = vunpack.c.l.b16 %v2700
        %v4095 = vunpack.c.l.b16 %v2701
        %v4096 = vunpack.c.l.b16 %v2702
        %v4097 = vunpack.c.l.b16 %v2703
        %v4098 = vunpack.c.l.b16 %v2704
        %v4099 = vunpack.c.l.b16 %v2705
        %v4100 = vunpack.c.l.b16 %v2706
        %v4101 = vunpack.c.l.b16 %v2707
        %v4102 = vunpack.c.l.b16 %v2708
        %v4103 = vunpack.c.l.b16 %v2709
        %v4104 = vunpack.c.l.b16 %v2710
        %v4105 = vunpack.c.l.b16 %v2711
        %v4106 = vunpack.c.l.b16 %v2712
        %v4107 = vunpack.c.l.b16 %v2713
        %v4108 = vunpack.c.l.b16 %v2714
        %v4109 = vunpack.c.l.b16 %v2715
        %v4110 = vunpack.c.l.b16 %v2716
        %v4111 = vunpack.c.l.b16 %v2717
        %v4112 = vunpack.c.l.b16 %v2718
        %v4113 = vunpack.c.l.b16 %v2719
        %v4114 = vunpack.c.l.b16 %v2720
        %v4115 = vunpack.c.l.b16 %v2721
        %v4116 = vunpack.c.l.b16 %v2722
        %v4117 = vunpack.c.l.b16 %v2723
        %v4118 = vunpack.c.l.b16 %v2724
        %v4119 = vunpack.c.l.b16 %v2725
        %v4120 = vunpack.c.l.b16 %v2726
        %v4121 = vunpack.c.l.b16 %v2727
        %v4122 = vunpack.c.l.b16 %v2728
        %v4123 = vunpack.c.l.b16 %v2729
        %v4124 = vunpack.c.l.b16 %v2730
        %v4125 = vunpack.c.l.b16 %v2731
        %v4126 = vunpack.c.l.b16 %v2732
        %v4127 = vunpack.c.l.b16 %v2733
        %v4128 = vunpack.c.l.b16 %v2734
        %v4129 = vunpack.c.l.b16 %v2735
        %v4130 = vunpack.c.l.b16 %v2736
        %v4131 = vunpack.c.l.b16 %v2737
        %v4132 = vunpack.c.l.b16 %v2738
        %v4133 = vunpack.c.l.b16 %v2739
        %v4134 = vunpack.c.l.b16 %v2740
        %v4135 = vunpack.c.l.b16 %v2741
        %v4136 = vunpack.c.l.b16 %v2742
        %v4137 = vunpack.c.l.b16 %v2743
        %v4138 = vunpack.c.l.b16 %v2744
        %v4139 = vunpack.c.l.b16 %v2745
        %v4140 = vunpack.c.l.b16 %v2746
        %v4141 = vunpack.c.l.b16 %v2747
        %v4142 = vunpack.c.l.b16 %v2748
        %v4143 = vunpack.c.l.b16 %v2749
        %v4144 = vunpack.c.l.b16 %v2750
        %v4145 = vunpack.c.l.b16 %v2751
        %v4146 = vunpack.c.l.b16 %v2752
        %v4147 = vunpack.c.l.b16 %v2753
        %v4148 = vunpack.c.l.b16 %v2754
        %v4149 = vunpack.c.l.b16 %v2755
        %v4150 = vunpack.c.l.b16 %v2756
        %v4151 = vunpack.c.l.b16 %v2757
        %v4152 = vunpack.c.l.b16 %v2758
        %v4153 = vunpack.c.l.b16 %v2759
        %v4154 = vunpack.c.l.b16 %v2760
        %v4155 = vunpack.c.l.b16 %v2761
        %v4156 = vunpack.c.l.b16 %v2762
        %v4157 = vunpack.c.l.b16 %v2763
        %v4158 = vunpack.c.l.b16 %v2764
        %v4159 = vunpack.c.l.b16 %v2765
        %v4160 = vunpack.c.l.b16 %v2766
        %v4161 = vunpack.c.l.b16 %v2767
        %v4162 = vunpack.c.l.b16 %v2768
        %v4163 = vunpack.c.l.b16 %v2769
        %v4164 = vunpack.c.l.b16 %v2770
        %v4165 = vunpack.c.l.b16 %v2771
        %v4166 = vunpack.c.l.b16 %v2772
        %v4167 = vunpack.c.l.b16 %v2773
        %v4168 = vunpack.c.l.b16 %v2774
        %v4169 = vunpack.c.l.b16 %v2775
        %v4170 = vunpack.c.l.b16 %v2776
        %v4171 = vunpack.c.l.b16 %v2777
        %v4172 = vunpack.c.l.b16 %v2778
        %v4173 = vunpack.c.l.b16 %v2779
        %v4174 = vunpack.c.l.b16 %v2780
        %v4175 = vunpack.c.l.b16 %v2781
        %v4176 = vunpack.c.l.b16 %v2782
        %v4177 = vunpack.c.l.b16 %v2783
        %v4178 = vunpack.c.l.b16 %v2784
        %v4179 = vunpack.c.l.b16 %v2785
        %v4180 = vunpack.c.l.b16 %v2786
        %v4181 = vunpack.c.l.b16 %v2787
        %v4182 = vunpack.c.l.b16 %v2788
        %v4183 = vunpack.c.l.b16 %v2789
        %v4184 = vunpack.c.l.b16 %v2790
        %v4185 = vunpack.c.l.b16 %v2791
        %v4186 = vunpack.c.l.b16 %v2792
        %v4187 = vunpack.c.l.b16 %v2793
        %v4188 = vunpack.c.l.b16 %v2794
        %v4189 = vunpack.c.l.b16 %v2795
        %v4190 = vunpack.c.l.b16 %v2796
        %v4191 = vunpack.c.l.b16 %v2797
        %v4192 = vunpack.c.l.b16 %v2798
        %v4193 = vunpack.c.l.b16 %v2799
        %v4194 = vunpack.c.l.b16 %v2800
        %v4195 = vunpack.c.l.b16 %v2801
        %v4196 = vunpack.c.l.b16 %v2802
        %v4197 = vunpack.c.l.b16 %v2803
        %v4198 = vunpack.c.l.b16 %v2804
        %v4199 = vunpack.c.l.b16 %v2805
        %v4200 = vunpack.c.l.b16 %v2806
        %v4201 = vunpack.c.l.b16 %v2807
        %v4202 = vunpack.c.l.b16 %v2808
        %v4203 = vunpack.c.l.b16 %v2809
        %v4204 = vunpack.c.l.b16 %v2810
        %v4205 = vunpack.c.l.b16 %v2811
        %v4206 = vunpack.c.l.b16 %v2812
        %v4207 = vpack.c.b16 %v4080, %v4079
        %v4208 = vpack.c.b16 %v4082, %v4081
        %v4209 = vpack.c.b16 %v4084, %v4083
        %v4210 = vpack.c.b16 %v4086, %v4085
        %v4211 = vpack.c.b16 %v4088, %v4087
        %v4212 = vpack.c.b16 %v4090, %v4089
        %v4213 = vpack.c.b16 %v4092, %v4091
        %v4214 = vpack.c.b16 %v4094, %v4093
        %v4215 = vpack.c.b16 %v4096, %v4095
        %v4216 = vpack.c.b16 %v4098, %v4097
        %v4217 = vpack.c.b16 %v4100, %v4099
        %v4218 = vpack.c.b16 %v4102, %v4101
        %v4219 = vpack.c.b16 %v4104, %v4103
        %v4220 = vpack.c.b16 %v4106, %v4105
        %v4221 = vpack.c.b16 %v4108, %v4107
        %v4222 = vpack.c.b16 %v4110, %v4109
        %v4223 = vpack.c.b16 %v4112, %v4111
        %v4224 = vpack.c.b16 %v4114, %v4113
        %v4225 = vpack.c.b16 %v4116, %v4115
        %v4226 = vpack.c.b16 %v4118, %v4117
        %v4227 = vpack.c.b16 %v4120, %v4119
        %v4228 = vpack.c.b16 %v4122, %v4121
        %v4229 = vpack.c.b16 %v4124, %v4123
        %v4230 = vpack.c.b16 %v4126, %v4125
        %v4231 = vpack.c.b16 %v4128, %v4127
        %v4232 = vpack.c.b16 %v4130, %v4129
        %v4233 = vpack.c.b16 %v4132, %v4131
        %v4234 = vpack.c.b16 %v4134, %v4133
        %v4235 = vpack.c.b16 %v4136, %v4135
        %v4236 = vpack.c.b16 %v4138, %v4137
        %v4237 = vpack.c.b16 %v4140, %v4139
        %v4238 = vpack.c.b16 %v4142, %v4141
        %v4239 = vpack.c.b16 %v4144, %v4143
        %v4240 = vpack.c.b16 %v4146, %v4145
        %v4241 = vpack.c.b16 %v4148, %v4147
        %v4242 = vpack.c.b16 %v4150, %v4149
        %v4243 = vpack.c.b16 %v4152, %v4151
        %v4244 = vpack.c.b16 %v4154, %v4153
        %v4245 = vpack.c.b16 %v4156, %v4155
        %v4246 = vpack.c.b16 %v4158, %v4157
        %v4247 = vpack.c.b16 %v4160, %v4159
        %v4248 = vpack.c.b16 %v4162, %v4161
        %v4249 = vpack.c.b16 %v4164, %v4163
        %v4250 = vpack.c.b16 %v4166, %v4165
        %v4251 = vpack.c.b16 %v4168, %v4167
        %v4252 = vpack.c.b16 %v4170, %v4169
        %v4253 = vpack.c.b16 %v4172, %v4171
        %v4254 = vpack.c.b16 %v4174, %v4173
        %v4255 = vpack.c.b16 %v4176, %v4175
        %v4256 = vpack.c.b16 %v4178, %v4177
        %v4257 = vpack.c.b16 %v4180, %v4179
        %v4258 = vpack.c.b16 %v4182, %v4181
        %v4259 = vpack.c.b16 %v4184, %v4183
        %v4260 = vpack.c.b16 %v4186, %v4185
        %v4261 = vpack.c.b16 %v4188, %v4187
        %v4262 = vpack.c.b16 %v4190, %v4189
        %v4263 = vpack.c.b16 %v4192, %v4191
        %v4264 = vpack.c.b16 %v4194, %v4193
        %v4265 = vpack.c.b16 %v4196, %v4195
        %v4266 = vpack.c.b16 %v4198, %v4197
        %v4267 = vpack.c.b16 %v4200, %v4199
        %v4268 = vpack.c.b16 %v4202, %v4201
        %v4269 = vpack.c.b16 %v4204, %v4203
        %v4270 = vpack.c.b16 %v4206, %v4205
        %4335 = vmatpush.bf16.msra.mxu0 %v4214
        %4336 = vmatpush.bf16.msra.mxu0 %v4213
        %4337 = vmatpush.bf16.msra.mxu0 %v4212
        %4338 = vmatpush.bf16.msra.mxu0 %v4211
        %4339 = vmatpush.bf16.msra.mxu0 %v4210
        %4340 = vmatpush.bf16.msra.mxu0 %v4209
        %4341 = vmatpush.bf16.msra.mxu0 %v4208
        %4342 = vmatpush.bf16.msra.mxu0 %v4207
        %4343 = vmatmul.bf16.gmra.mxu0 %v2677
        %v4344 = vpop.f32.mrf.mxu0
        %v4345 = vadd.f32 %v3948, %v4344
        %v4346 = vpop.f32.mrf.mxu0
        %4347 = vdwg.mxu0
        %4348 = vmatpush.bf16.msra.mxu0 %v4222
        %4349 = vmatpush.bf16.msra.mxu0 %v4221
        %4350 = vmatpush.bf16.msra.mxu0 %v4220
        %4351 = vmatpush.bf16.msra.mxu0 %v4219
        %4352 = vmatpush.bf16.msra.mxu0 %v4218
        %4353 = vmatpush.bf16.msra.mxu0 %v4217
        %4354 = vmatpush.bf16.msra.mxu0 %v4216
        %4355 = vmatpush.bf16.msra.mxu0 %v4215
        %4356 = vmatmul.bf16.gmra.mxu0 %v2678
        %v4357 = vpop.f32.mrf.mxu0
        %v4358 = vadd.f32 %v4345, %v4357
        %v4359 = vpop.f32.mrf.mxu0
        %4360 = vdwg.mxu0
        %4361 = vmatpush.bf16.msra.mxu0 %v4230
        %4362 = vmatpush.bf16.msra.mxu0 %v4229
        %4363 = vmatpush.bf16.msra.mxu0 %v4228
        %4364 = vmatpush.bf16.msra.mxu0 %v4227
        %4365 = vmatpush.bf16.msra.mxu0 %v4226
        %4366 = vmatpush.bf16.msra.mxu0 %v4225
        %4367 = vmatpush.bf16.msra.mxu0 %v4224
        %4368 = vmatpush.bf16.msra.mxu0 %v4223
        %4369 = vmatmul.bf16.gmra.mxu0 %v2679
        %v4370 = vpop.f32.mrf.mxu0
        %v4371 = vadd.f32 %v4358, %v4370
        %v4372 = vpop.f32.mrf.mxu0
        %4373 = vdwg.mxu0
        %4374 = vmatpush.bf16.msra.mxu0 %v4238
        %4375 = vmatpush.bf16.msra.mxu0 %v4237
        %4376 = vmatpush.bf16.msra.mxu0 %v4236
        %4377 = vmatpush.bf16.msra.mxu0 %v4235
        %4378 = vmatpush.bf16.msra.mxu0 %v4234
        %4379 = vmatpush.bf16.msra.mxu0 %v4233
        %4380 = vmatpush.bf16.msra.mxu0 %v4232
        %4381 = vmatpush.bf16.msra.mxu0 %v4231
        %4382 = vmatmul.bf16.gmra.mxu0 %v2680
        %v4383 = vpop.f32.mrf.mxu0
        %v4384 = vadd.f32 %v4371, %v4383
        %v4385 = vpop.f32.mrf.mxu0
        %4386 = vdwg.mxu0
        %4387 = vmatpush.bf16.msra.mxu0 %v4246
        %4388 = vmatpush.bf16.msra.mxu0 %v4245
        %4389 = vmatpush.bf16.msra.mxu0 %v4244
        %4390 = vmatpush.bf16.msra.mxu0 %v4243
        %4391 = vmatpush.bf16.msra.mxu0 %v4242
        %4392 = vmatpush.bf16.msra.mxu0 %v4241
        %4393 = vmatpush.bf16.msra.mxu0 %v4240
        %4394 = vmatpush.bf16.msra.mxu0 %v4239
        %4395 = vmatmul.bf16.gmra.mxu0 %v2681
        %v4396 = vpop.f32.mrf.mxu0
        %v4397 = vadd.f32 %v4384, %v4396
        %v4398 = vpop.f32.mrf.mxu0
        %4399 = vdwg.mxu0
        %4400 = vmatpush.bf16.msra.mxu0 %v4254
        %4401 = vmatpush.bf16.msra.mxu0 %v4253
        %4402 = vmatpush.bf16.msra.mxu0 %v4252
        %4403 = vmatpush.bf16.msra.mxu0 %v4251
        %4404 = vmatpush.bf16.msra.mxu0 %v4250
        %4405 = vmatpush.bf16.msra.mxu0 %v4249
        %4406 = vmatpush.bf16.msra.mxu0 %v4248
        %4407 = vmatpush.bf16.msra.mxu0 %v4247
        %4408 = vmatmul.bf16.gmra.mxu0 %v2682
        %v4409 = vpop.f32.mrf.mxu0
        %v4410 = vadd.f32 %v4397, %v4409
        %v4411 = vpop.f32.mrf.mxu0
        %4412 = vdwg.mxu0
        %4413 = vmatpush.bf16.msra.mxu0 %v4262
        %4414 = vmatpush.bf16.msra.mxu0 %v4261
        %4415 = vmatpush.bf16.msra.mxu0 %v4260
        %4416 = vmatpush.bf16.msra.mxu0 %v4259
        %4417 = vmatpush.bf16.msra.mxu0 %v4258
        %4418 = vmatpush.bf16.msra.mxu0 %v4257
        %4419 = vmatpush.bf16.msra.mxu0 %v4256
        %4420 = vmatpush.bf16.msra.mxu0 %v4255
        %4421 = vmatmul.bf16.gmra.mxu0 %v2683
        %v4422 = vpop.f32.mrf.mxu0
        %v4423 = vadd.f32 %v4410, %v4422
        %v4424 = vpop.f32.mrf.mxu0
        %4425 = vdwg.mxu0
        %4426 = vmatpush.bf16.msra.mxu0 %v4270
        %4427 = vmatpush.bf16.msra.mxu0 %v4269
        %4428 = vmatpush.bf16.msra.mxu0 %v4268
        %4429 = vmatpush.bf16.msra.mxu0 %v4267
        %4430 = vmatpush.bf16.msra.mxu0 %v4266
        %4431 = vmatpush.bf16.msra.mxu0 %v4265
        %4432 = vmatpush.bf16.msra.mxu0 %v4264
        %4433 = vmatpush.bf16.msra.mxu0 %v4263
        %4434 = vmatmul.bf16.gmra.mxu0 %v2684
        %v4435 = vpop.f32.mrf.mxu0
        %v4436 = vadd.f32 %v4423, %v4435
        %v4437 = vpop.f32.mrf.mxu0
        %4438 = vdwg.mxu0
        %v4440 = vperm.slane %v2162, 0
        %v4442 = vadd.f32 %v4436, %v4440
        %v4443 = vadd.f32 %v2127, %v4442
        %v4444 = vpack.c.bf16 %v4443, %v4443
        %4445 = vst [vmem:[%s625] sm:$0xf] %v4444
        %s4446 = sand.u32 %s444, 1
        %s4447 = scalar_lea.sflag [#allocation6], %s4446
        %s4448 = sand.u32 %s444, 1
        %s4449 = smul.addr %s4448, 4
        %s4450 = scalar_lea.vmem [#allocation9], %s4449
        // Predicated region
        $region105: #{tpu_custom_call.1} parent=91 // pred_check
          %p4451 = pneg %p454
        $region106: #{tpu_custom_call.1} parent=91 // pred_check_branch
          %4453 = sbr.rel (%p4451) target = $region108
        $region107: #{tpu_custom_call.1} parent=91 // pred_region
          %4455 = vsyncadd %s4447, 0
          %s4456 = sadd.s32 %s39, %s38
          %s4457 = smul.addr %s4456, 4
          %s4458 = scalar_lea.hbm %s18, %s4457
          %s4460 = sshll.u32 %s4450, 4
          %s4461 = int_to_ptr.vmem [resolvable:$true] %s4460
          %s4462 = sshll.u32 %s4458, 4
          %s4463 = int_to_ptr.hbm [resolvable:$true] %s4462
          %4465 = dma.vmem_to_hbm [thread:$0]  %s4461, 64, %s4463, %s4447
        $region108: #{tpu_custom_call.1} parent=91 // pred_fallthru
          _
      $region92: #{tpu_custom_call.1} parent=5 // pred_fallthru
        _
      %p4466 = scmp.le.s32.totalorder 2, %s29
      // Predicated region
      $region109: #{tpu_custom_call.1} parent=5 // pred_check
        %p4467 = pneg %p4466
      $region110: #{tpu_custom_call.1} parent=5 // pred_check_branch
        %4469 = sbr.rel (%p4467) target = $region112
      $region111: #{tpu_custom_call.1} parent=5 // pred_region
        %s4470 = ssub.s32 %s29, 2
        // Predicated region
        $region113: #{tpu_custom_call.1} parent=111 // pred_check
          %p4471 = pneg %p460
        $region114: #{tpu_custom_call.1} parent=111 // pred_check_branch
          %4473 = sbr.rel (%p4471) target = $region116
        $region115: #{tpu_custom_call.1} parent=111 // pred_region
          %s4474 = sand.u32 %s445, 1
          %s4475 = scalar_lea.sflag [#allocation6], %s4474
          %s4476 = sand.u32 %s445, 1
          %s4477 = smul.addr %s4476, 4
          %s4478 = scalar_lea.vmem [#allocation9], %s4477
          %4480 = dma.done %s4475, 64
        $region116: #{tpu_custom_call.1} parent=111 // pred_fallthru
          _
      $region112: #{tpu_custom_call.1} parent=5 // pred_fallthru
        _
    $region6: #{tpu_custom_call.1} parent=1 // loop_footer
      %s33 = sadd.s32 1, %s29
    $region7: #{tpu_custom_call.1} parent=1 // loop_footer_branch
      %28 = sbr.rel target = $region3
    $region8: #{tpu_custom_call.1} parent=1 // loop_exit
      _
    %4481 = vsyncpa [#allocation5], 1
    %s4482 = scalar_lea.sflag [#allocation5], 1
    %4483 = vsyncpa %s4482, 1
    %4484 = vsyncpa [#allocation8], 1
    %4485 = vsyncpa [#allocation6], 1
    %s4486 = scalar_lea.sflag [#allocation6], 1
    %4487 = vsyncpa %s4486, 1

</llo_original>
